<compile_context>
chip_gen: v6e
topology: v6e:2x2x1
jax: 0.10.0
libtpu: 0.0.40
codegen_flags: <defaults>
</compile_context>

<pallas_src>
import functools

import numpy as np
import jax
import jax.numpy as jnp
from jax import lax
from jax.experimental import pallas as pl
from jax.experimental.pallas import tpu as pltpu


def _vicreg_kernel(
    # scalar-prefetch (SMEM): upper-triangular block-pair schedule
    di_ref, dj_ref,
    # streamed (tn, td) tiles: x cols di, x cols dj, y cols di, y cols dj
    xi_ref, xj_ref, yi_ref, yj_ref,
    # (1, 1) scalar output in SMEM
    o_ref,
    # scratch
    gx_acc, gy_acc,              # (td, td) f32 block-Gram accumulators
    sum_x, sum_y,                # (dt, 1, td) f32 per-column sums
    ssq_x, ssq_y,                # (dt, 1, td) f32 per-column sums of squares
    repr_acc, cov_acc,           # (1, 1) f32 scalar accumulators
    *, N, D, repr_coef, std_coef, cov_coef, precision):
  p = pl.program_id(0)
  n = pl.program_id(1)
  p_last = pl.num_programs(0) - 1
  n_last = pl.num_programs(1) - 1

  di = di_ref[p]
  dj = dj_ref[p]

  inv_n = 1.0 / N
  inv_nm1 = 1.0 / (N - 1)

  # One-time init of accumulators that persist across the whole grid.
  @pl.when(jnp.logical_and(p == 0, n == 0))
  def _init():
    sum_x[...] = jnp.zeros_like(sum_x)
    sum_y[...] = jnp.zeros_like(sum_y)
    ssq_x[...] = jnp.zeros_like(ssq_x)
    ssq_y[...] = jnp.zeros_like(ssq_y)
    repr_acc[...] = jnp.zeros_like(repr_acc)
    cov_acc[...] = jnp.zeros_like(cov_acc)

  # Per-(di, dj) block: reset Gram accumulators at the first row tile.
  @pl.when(n == 0)
  def _init_block():
    gx_acc[...] = jnp.zeros_like(gx_acc)
    gy_acc[...] = jnp.zeros_like(gy_acc)

  xi = xi_ref[...]
  xj = xj_ref[...]
  yi = yi_ref[...]
  yj = yj_ref[...]

  # Block Gram: contract over the row (N) axis; no transpose of the tiles.
  dn = (((0,), (0,)), ((), ()))
  gx_acc[...] += lax.dot_general(xi, xj, dn, precision=precision,
                                 preferred_element_type=jnp.float32)
  gy_acc[...] += lax.dot_general(yi, yj, dn, precision=precision,
                                 preferred_element_type=jnp.float32)

  # Column statistics and the MSE term are folded into the di == 0 sweep
  # (it visits every column block dj exactly once per row tile), reusing the
  # tiles that are already in VMEM for the Gram -> x / y streamed once here.
  # This VPU work hides under the MXU Gram passes issued above.
  @pl.when(di == 0)
  def _stats():
    xjf = xj.astype(jnp.float32)
    yjf = yj.astype(jnp.float32)
    sum_x[dj] = sum_x[dj] + jnp.sum(xjf, axis=0, keepdims=True)
    sum_y[dj] = sum_y[dj] + jnp.sum(yjf, axis=0, keepdims=True)
    ssq_x[dj] = ssq_x[dj] + jnp.sum(xjf * xjf, axis=0, keepdims=True)
    ssq_y[dj] = ssq_y[dj] + jnp.sum(yjf * yjf, axis=0, keepdims=True)
    d = xjf - yjf
    repr_acc[...] += jnp.sum(d * d, keepdims=True)

  # After the last row tile of this block pair, fold the finished Gram into
  # the running sum(cov^2).  The column sums needed here are complete:
  # block 0's sums finish during pair (0, 0) and every other block's during
  # the di == 0 sweep, both of which precede any pair that consumes them.
  @pl.when(n == n_last)
  def _finish_block():
    si_x = sum_x[di]
    sj_x = sum_x[dj]
    si_y = sum_y[di]
    sj_y = sum_y[dj]
    # Rank-1 outer products; HIGHEST precision is essentially free here and
    # keeps the mean-correction term accurate for bf16 inputs too.
    outer_x = lax.dot_general(si_x, sj_x, dn, precision=lax.Precision.HIGHEST,
                              preferred_element_type=jnp.float32)
    outer_y = lax.dot_general(si_y, sj_y, dn, precision=lax.Precision.HIGHEST,
                              preferred_element_type=jnp.float32)
    cbx = (gx_acc[...] - outer_x * inv_n) * inv_nm1
    cby = (gy_acc[...] - outer_y * inv_n) * inv_nm1
    # Symmetry: an off-diagonal block pair stands in for its mirror image.
    w = jnp.where(di == dj, 1.0, 2.0)
    cov_acc[...] += w * (jnp.sum(cbx * cbx, keepdims=True) +
                         jnp.sum(cby * cby, keepdims=True))

  # Final combine at the very last grid step.
  @pl.when(jnp.logical_and(p == p_last, n == n_last))
  def _final():
    # Unbiased per-column variance from sufficient statistics; this equals
    # diag(cov), so sum(cov^2) - sum(var^2) is the off-diagonal squared sum.
    var_x = (ssq_x[...] - sum_x[...] * sum_x[...] * inv_n) * inv_nm1
    var_y = (ssq_y[...] - sum_y[...] * sum_y[...] * inv_n) * inv_nm1
    std_x = jnp.sqrt(var_x + 1e-4)
    std_y = jnp.sqrt(var_y + 1e-4)
    std_loss = (jnp.sum(jnp.maximum(1.0 - std_x, 0.0)) +
                jnp.sum(jnp.maximum(1.0 - std_y, 0.0))) / (2.0 * D)
    diag_sq = jnp.sum(var_x * var_x) + jnp.sum(var_y * var_y)
    cov_loss = (cov_acc[0, 0] - diag_sq) / D
    repr_loss = repr_acc[0, 0] / (N * D)
    o_ref[0, 0] = (repr_coef * repr_loss + std_coef * std_loss +
                   cov_coef * cov_loss)


def _pick_tile(dim, target, align):
  """Largest multiple of `align` that divides `dim` and is <= target.

  Falls back to the full dimension (always a legal block size) when no
  aligned divisor exists.
  """
  if dim % align != 0:
    return dim
  t = min(target, dim)
  t -= t % align
  while t >= align:
    if dim % t == 0:
      return t
    t -= align
  return dim


def vicreg_loss(out_1, out_2, repr_coef=25.0, std_coef=25.0, cov_coef=1.0,
                block_n=None, block_d=None):
  """VicReg loss forward pass (matches the PyTorch VicRegLoss module)."""
  assert out_1.shape == out_2.shape and out_1.ndim == 2
  N, D = out_1.shape
  assert N >= 2, "variance/covariance use an (N - 1) denominator"

  itemsize = np.dtype(out_1.dtype).itemsize

  # Row (contraction) tile: multiples of 8 (ideally >= 256 for the MXU);
  # column tile: multiples of 128 (lane dim).  bf16 tiles are half the bytes,
  # so stream twice as many rows per step to amortise per-step overhead.
  # Fall back to full dims for small / unaligned shapes.
  tn_target = 256 if itemsize >= 4 else 512
  tn = block_n if block_n is not None else _pick_tile(N, tn_target, 8)
  td = block_d if block_d is not None else _pick_tile(D, 512, 128)
  assert N % tn == 0 and D % td == 0, (N, D, tn, td)
  nt = N // tn
  dt = D // td

  # Upper-triangular block-pair schedule (covariance is symmetric).
  pairs = [(i, j) for i in range(dt) for j in range(i, dt)]
  di_arr = jnp.asarray(np.asarray([p[0] for p in pairs], dtype=np.int32))
  dj_arr = jnp.asarray(np.asarray([p[1] for p in pairs], dtype=np.int32))
  n_pairs = len(pairs)

  # f32 inputs: full-precision MXU passes so diag(Gram) matches the VPU
  # sum-of-squares used for the diagonal subtraction.  bf16 inputs run the
  # MXU at full rate with f32 accumulation.
  precision = lax.Precision.HIGHEST if out_1.dtype == jnp.float32 else None

  kernel = functools.partial(
      _vicreg_kernel, N=N, D=D,
      repr_coef=float(repr_coef), std_coef=float(std_coef),
      cov_coef=float(cov_coef), precision=precision)

  def i_map(p, n, di_ref, dj_ref):
    return (n, di_ref[p])

  def j_map(p, n, di_ref, dj_ref):
    return (n, dj_ref[p])

  tile_spec = lambda m: pl.BlockSpec((tn, td), m)

  # Rough VMEM budget; only raise the scoped limit when the default is tight.
  est = (4 * 2 * tn * td * itemsize        # streamed tiles (double-buffered)
         + 2 * td * td * 4                 # Gram accumulators
         + 2 * td * td * 4                 # centered-block temporaries
         + 4 * dt * 8 * td * 4)            # column statistics (sublane-padded)
  compiler_kwargs = {}
  if est > (12 << 20):
    compiler_kwargs["vmem_limit_bytes"] = int(min(est * 3 // 2 + (4 << 20),
                                                  48 << 20))

  # Advisory cost hint for XLA's scheduler around the custom call.
  mxu_factor = 6 if out_1.dtype == jnp.float32 else 1   # HIGHEST = 6 bf16 passes
  cost = pl.CostEstimate(
      flops=int(4 * n_pairs * N * td * td * mxu_factor),
      transcendentals=int(2 * D),
      bytes_accessed=int(4 * n_pairs * nt * tn * td * itemsize))

  out = pl.pallas_call(
      kernel,
      out_shape=jax.ShapeDtypeStruct((1, 1), jnp.float32),
      grid_spec=pltpu.PrefetchScalarGridSpec(
          num_scalar_prefetch=2,
          grid=(n_pairs, nt),
          in_specs=[
              tile_spec(i_map),   # x, column block di
              tile_spec(j_map),   # x, column block dj
              tile_spec(i_map),   # y, column block di
              tile_spec(j_map),   # y, column block dj
          ],
          out_specs=pl.BlockSpec(memory_space=pltpu.MemorySpace.SMEM),
          scratch_shapes=[
              pltpu.VMEM((td, td), jnp.float32),      # gx_acc
              pltpu.VMEM((td, td), jnp.float32),      # gy_acc
              pltpu.VMEM((dt, 1, td), jnp.float32),   # sum_x
              pltpu.VMEM((dt, 1, td), jnp.float32),   # sum_y
              pltpu.VMEM((dt, 1, td), jnp.float32),   # ssq_x
              pltpu.VMEM((dt, 1, td), jnp.float32),   # ssq_y
              pltpu.VMEM((1, 1), jnp.float32),        # repr_acc
              pltpu.VMEM((1, 1), jnp.float32),        # cov_acc
          ]),
      compiler_params=pltpu.CompilerParams(
          # Both axes carry cross-step state (shared accumulators), so they
          # stay "arbitrary".
          # TODO(synk): shard the block-pair axis across v7x's 2 TensorCores
          # with per-core partial accumulators merged in a final step.
          # TODO(synk): diagonal block pairs DMA the same column block twice
          # (xi == xj); a dedicated dt == 1 path would halve that traffic.
          dimension_semantics=("arbitrary", "arbitrary"),
          **compiler_kwargs),
      cost_estimate=cost,
  )(di_arr, dj_arr, out_1, out_1, out_2, out_2)
  return out[0, 0]


def _reference_vicreg_numpy(x, y, repr_coef=25.0, std_coef=25.0, cov_coef=1.0):
  """float64 ground truth mirroring the PyTorch module exactly."""
  x = np.asarray(x, dtype=np.float64)
  y = np.asarray(y, dtype=np.float64)
  n, d = x.shape
  repr_loss = np.mean((x - y) ** 2)
  xc = x - x.mean(axis=0)
  yc = y - y.mean(axis=0)
  std_x = np.sqrt(xc.var(axis=0, ddof=1) + 1e-4)
  std_y = np.sqrt(yc.var(axis=0, ddof=1) + 1e-4)
  std_loss = (np.mean(np.maximum(1.0 - std_x, 0.0)) / 2.0 +
              np.mean(np.maximum(1.0 - std_y, 0.0)) / 2.0)
  cov_x = xc.T @ xc / (n - 1)
  cov_y = yc.T @ yc / (n - 1)
  off = lambda c: np.sum(c ** 2) - np.sum(np.diag(c) ** 2)
  cov_loss = off(cov_x) / d + off(cov_y) / d
  return float(repr_coef * repr_loss + std_coef * std_loss +
               cov_coef * cov_loss)


if __name__ == "__main__":
  key = jax.random.PRNGKey(0)
  k1, k2 = jax.random.split(key)
  # Small but multi-tile: 3 row tiles x 3 upper-triangular column-block pairs.
  N, D = 96, 256
  out_1 = jax.random.normal(k1, (N, D), dtype=jnp.float32)
  out_2 = out_1 + 0.1 * jax.random.normal(k2, (N, D), dtype=jnp.float32)

  loss = jax.block_until_ready(
      vicreg_loss(out_1, out_2, block_n=32, block_d=128))

  ref = _reference_vicreg_numpy(np.asarray(out_1), np.asarray(out_2))
  assert np.isclose(float(loss), ref, rtol=1e-3, atol=1e-3), (float(loss), ref)
  print("KERNEL_OK")
</pallas_src>

<mosaic_0001>
module attributes {stable_mosaic.version = 11 : i64} {
  func.func @_vicreg_kernel(%arg0: i32, %arg1: i32, %arg2: memref<3xi32, #tpu.memory_space<smem>>, %arg3: memref<3xi32, #tpu.memory_space<smem>>, %arg4: memref<32x128xf32, #tpu.memory_space<vmem>>, %arg5: memref<32x128xf32, #tpu.memory_space<vmem>>, %arg6: memref<32x128xf32, #tpu.memory_space<vmem>>, %arg7: memref<32x128xf32, #tpu.memory_space<vmem>>, %arg8: memref<1x1xf32, #tpu.memory_space<smem>>, %arg9: memref<128x128xf32, #tpu.memory_space<vmem>>, %arg10: memref<128x128xf32, #tpu.memory_space<vmem>>, %arg11: memref<2x1x128xf32, #tpu.memory_space<vmem>>, %arg12: memref<2x1x128xf32, #tpu.memory_space<vmem>>, %arg13: memref<2x1x128xf32, #tpu.memory_space<vmem>>, %arg14: memref<2x1x128xf32, #tpu.memory_space<vmem>>, %arg15: memref<1x1xf32, #tpu.memory_space<vmem>>, %arg16: memref<1x1xf32, #tpu.memory_space<vmem>>) attributes {dimension_semantics = [#tpu.dimension_semantics<arbitrary>, #tpu.dimension_semantics<arbitrary>], iteration_bounds = array<i64: 3, 3>, scalar_prefetch = 2 : i64, scratch_operands = 8 : i64, tpu.core_type = #tpu.core_type<tc>, window_params = [{transform_indices = @transform_0, window_bounds = array<i64: 32, 128>}, {transform_indices = @transform_1, window_bounds = array<i64: 32, 128>}, {transform_indices = @transform_2, window_bounds = array<i64: 32, 128>}, {transform_indices = @transform_3, window_bounds = array<i64: 32, 128>}, {transform_indices = @transform_4, window_bounds = array<i64: 1, 1>}]} {
    %0 = arith.index_cast %arg0 : i32 to index
    %1 = memref.load %arg2[%0] : memref<3xi32, #tpu.memory_space<smem>>
    %2 = arith.index_cast %arg0 : i32 to index
    %3 = memref.load %arg3[%2] : memref<3xi32, #tpu.memory_space<smem>>
    %c0_i32 = arith.constant 0 : i32
    %4 = arith.cmpi eq, %arg0, %c0_i32 : i32
    %c0_i32_0 = arith.constant 0 : i32
    %5 = arith.cmpi eq, %arg1, %c0_i32_0 : i32
    %6 = arith.andi %4, %5 : i1
    %7 = arith.extui %6 : i1 to i32
    %c0_i32_1 = arith.constant 0 : i32
    %8 = arith.cmpi ne, %7, %c0_i32_1 : i32
    scf.if %8 {
      %cst_26 = arith.constant 0.000000e+00 : f32
      %35 = vector.broadcast %cst_26 : f32 to vector<2x1x128xf32>
      %c0_27 = arith.constant 0 : index
      %c0_28 = arith.constant 0 : index
      %c0_29 = arith.constant 0 : index
      %36 = vector.load %arg11[%c0_27, %c0_28, %c0_29] : memref<2x1x128xf32, #tpu.memory_space<vmem>>, vector<2x1x128xf32>
      tpu.vector_store %arg11[%c0_27, %c0_28, %c0_29], %35 {strides = array<i32>} : memref<2x1x128xf32, #tpu.memory_space<vmem>>, vector<2x1x128xf32>,
      %cst_30 = arith.constant 0.000000e+00 : f32
      %37 = vector.broadcast %cst_30 : f32 to vector<2x1x128xf32>
      %c0_31 = arith.constant 0 : index
      %c0_32 = arith.constant 0 : index
      %c0_33 = arith.constant 0 : index
      %38 = vector.load %arg12[%c0_31, %c0_32, %c0_33] : memref<2x1x128xf32, #tpu.memory_space<vmem>>, vector<2x1x128xf32>
      tpu.vector_store %arg12[%c0_31, %c0_32, %c0_33], %37 {strides = array<i32>} : memref<2x1x128xf32, #tpu.memory_space<vmem>>, vector<2x1x128xf32>,
      %cst_34 = arith.constant 0.000000e+00 : f32
      %39 = vector.broadcast %cst_34 : f32 to vector<2x1x128xf32>
      %c0_35 = arith.constant 0 : index
      %c0_36 = arith.constant 0 : index
      %c0_37 = arith.constant 0 : index
      %40 = vector.load %arg13[%c0_35, %c0_36, %c0_37] : memref<2x1x128xf32, #tpu.memory_space<vmem>>, vector<2x1x128xf32>
      tpu.vector_store %arg13[%c0_35, %c0_36, %c0_37], %39 {strides = array<i32>} : memref<2x1x128xf32, #tpu.memory_space<vmem>>, vector<2x1x128xf32>,
      %cst_38 = arith.constant 0.000000e+00 : f32
      %41 = vector.broadcast %cst_38 : f32 to vector<2x1x128xf32>
      %c0_39 = arith.constant 0 : index
      %c0_40 = arith.constant 0 : index
      %c0_41 = arith.constant 0 : index
      %42 = vector.load %arg14[%c0_39, %c0_40, %c0_41] : memref<2x1x128xf32, #tpu.memory_space<vmem>>, vector<2x1x128xf32>
      tpu.vector_store %arg14[%c0_39, %c0_40, %c0_41], %41 {strides = array<i32>} : memref<2x1x128xf32, #tpu.memory_space<vmem>>, vector<2x1x128xf32>,
      %cst_42 = arith.constant 0.000000e+00 : f32
      %43 = vector.broadcast %cst_42 : f32 to vector<1x1xf32>
      %c0_43 = arith.constant 0 : index
      %c0_44 = arith.constant 0 : index
      %44 = vector.load %arg15[%c0_43, %c0_44] : memref<1x1xf32, #tpu.memory_space<vmem>>, vector<1x1xf32>
      tpu.vector_store %arg15[%c0_43, %c0_44], %43 {strides = array<i32>} : memref<1x1xf32, #tpu.memory_space<vmem>>, vector<1x1xf32>,
      %cst_45 = arith.constant 0.000000e+00 : f32
      %45 = vector.broadcast %cst_45 : f32 to vector<1x1xf32>
      %c0_46 = arith.constant 0 : index
      %c0_47 = arith.constant 0 : index
      %46 = vector.load %arg16[%c0_46, %c0_47] : memref<1x1xf32, #tpu.memory_space<vmem>>, vector<1x1xf32>
      tpu.vector_store %arg16[%c0_46, %c0_47], %45 {strides = array<i32>} : memref<1x1xf32, #tpu.memory_space<vmem>>, vector<1x1xf32>,
    } else {
    }
    %c0_i32_2 = arith.constant 0 : i32
    %9 = arith.cmpi eq, %arg1, %c0_i32_2 : i32
    %10 = arith.extui %9 : i1 to i32
    %c0_i32_3 = arith.constant 0 : i32
    %11 = arith.cmpi ne, %10, %c0_i32_3 : i32
    scf.if %11 {
      %cst_26 = arith.constant 0.000000e+00 : f32
      %35 = vector.broadcast %cst_26 : f32 to vector<128x128xf32>
      %c0_27 = arith.constant 0 : index
      %c0_28 = arith.constant 0 : index
      %36 = vector.load %arg9[%c0_27, %c0_28] : memref<128x128xf32, #tpu.memory_space<vmem>>, vector<128x128xf32>
      tpu.vector_store %arg9[%c0_27, %c0_28], %35 {strides = array<i32>} : memref<128x128xf32, #tpu.memory_space<vmem>>, vector<128x128xf32>,
      %cst_29 = arith.constant 0.000000e+00 : f32
      %37 = vector.broadcast %cst_29 : f32 to vector<128x128xf32>
      %c0_30 = arith.constant 0 : index
      %c0_31 = arith.constant 0 : index
      %38 = vector.load %arg10[%c0_30, %c0_31] : memref<128x128xf32, #tpu.memory_space<vmem>>, vector<128x128xf32>
      tpu.vector_store %arg10[%c0_30, %c0_31], %37 {strides = array<i32>} : memref<128x128xf32, #tpu.memory_space<vmem>>, vector<128x128xf32>,
    } else {
    }
    %c0 = arith.constant 0 : index
    %c0_4 = arith.constant 0 : index
    %12 = vector.load %arg4[%c0, %c0_4] : memref<32x128xf32, #tpu.memory_space<vmem>>, vector<32x128xf32>
    %c0_5 = arith.constant 0 : index
    %c0_6 = arith.constant 0 : index
    %13 = vector.load %arg5[%c0_5, %c0_6] : memref<32x128xf32, #tpu.memory_space<vmem>>, vector<32x128xf32>
    %c0_7 = arith.constant 0 : index
    %c0_8 = arith.constant 0 : index
    %14 = vector.load %arg6[%c0_7, %c0_8] : memref<32x128xf32, #tpu.memory_space<vmem>>, vector<32x128xf32>
    %c0_9 = arith.constant 0 : index
    %c0_10 = arith.constant 0 : index
    %15 = vector.load %arg7[%c0_9, %c0_10] : memref<32x128xf32, #tpu.memory_space<vmem>>, vector<32x128xf32>
    %c0_11 = arith.constant 0 : index
    %c0_12 = arith.constant 0 : index
    %16 = vector.load %arg9[%c0_11, %c0_12] : memref<128x128xf32, #tpu.memory_space<vmem>>, vector<128x128xf32>
    %cst = arith.constant dense<0.000000e+00> : vector<128x128xf32>
    %17 = tpu.matmul %12, %13, %cst {dimension_numbers = #tpu.dot_dimension_numbers<[0], [0], [1], [1], [0, 1, 1, 1], [], []>, precision = #tpu.contract_precision<fp32>} : vector<32x128xf32>, vector<32x128xf32>, vector<128x128xf32> -> vector<128x128xf32>
    %18 = arith.addf %16, %17 : vector<128x128xf32>
    %c0_13 = arith.constant 0 : index
    %c0_14 = arith.constant 0 : index
    %19 = vector.load %arg9[%c0_13, %c0_14] : memref<128x128xf32, #tpu.memory_space<vmem>>, vector<128x128xf32>
    tpu.vector_store %arg9[%c0_13, %c0_14], %18 {strides = array<i32>} : memref<128x128xf32, #tpu.memory_space<vmem>>, vector<128x128xf32>,
    %c0_15 = arith.constant 0 : index
    %c0_16 = arith.constant 0 : index
    %20 = vector.load %arg10[%c0_15, %c0_16] : memref<128x128xf32, #tpu.memory_space<vmem>>, vector<128x128xf32>
    %cst_17 = arith.constant dense<0.000000e+00> : vector<128x128xf32>
    %21 = tpu.matmul %14, %15, %cst_17 {dimension_numbers = #tpu.dot_dimension_numbers<[0], [0], [1], [1], [0, 1, 1, 1], [], []>, precision = #tpu.contract_precision<fp32>} : vector<32x128xf32>, vector<32x128xf32>, vector<128x128xf32> -> vector<128x128xf32>
    %22 = arith.addf %20, %21 : vector<128x128xf32>
    %c0_18 = arith.constant 0 : index
    %c0_19 = arith.constant 0 : index
    %23 = vector.load %arg10[%c0_18, %c0_19] : memref<128x128xf32, #tpu.memory_space<vmem>>, vector<128x128xf32>
    tpu.vector_store %arg10[%c0_18, %c0_19], %22 {strides = array<i32>} : memref<128x128xf32, #tpu.memory_space<vmem>>, vector<128x128xf32>,
    %c0_i32_20 = arith.constant 0 : i32
    %24 = arith.cmpi eq, %1, %c0_i32_20 : i32
    %25 = arith.extui %24 : i1 to i32
    %c0_i32_21 = arith.constant 0 : i32
    %26 = arith.cmpi ne, %25, %c0_i32_21 : i32
    scf.if %26 {
      %35 = arith.index_cast %3 : i32 to index
      %c0_26 = arith.constant 0 : index
      %c0_27 = arith.constant 0 : index
      %36 = vector.load %arg11[%35, %c0_26, %c0_27] : memref<2x1x128xf32, #tpu.memory_space<vmem>>, vector<1x1x128xf32>
      %37 = vector.shape_cast %36 : vector<1x1x128xf32> to vector<1x128xf32>
      %cst_28 = arith.constant dense<0.000000e+00> : vector<128xf32>
      %38 = vector.multi_reduction <add>, %13, %cst_28 [0] : vector<32x128xf32> to vector<128xf32>
      %39 = vector.shape_cast %38 : vector<128xf32> to vector<1x128xf32>
      %40 = arith.addf %37, %39 : vector<1x128xf32>
      %41 = arith.index_cast %3 : i32 to index
      %c0_29 = arith.constant 0 : index
      %c0_30 = arith.constant 0 : index
      %42 = vector.load %arg11[%41, %c0_29, %c0_30] : memref<2x1x128xf32, #tpu.memory_space<vmem>>, vector<1x1x128xf32>
      %43 = vector.shape_cast %42 : vector<1x1x128xf32> to vector<1x128xf32>
      %44 = vector.shape_cast %40 : vector<1x128xf32> to vector<1x1x128xf32>
      tpu.vector_store %arg11[%41, %c0_29, %c0_30], %44 {strides = array<i32>} : memref<2x1x128xf32, #tpu.memory_space<vmem>>, vector<1x1x128xf32>,
      %45 = arith.index_cast %3 : i32 to index
      %c0_31 = arith.constant 0 : index
      %c0_32 = arith.constant 0 : index
      %46 = vector.load %arg12[%45, %c0_31, %c0_32] : memref<2x1x128xf32, #tpu.memory_space<vmem>>, vector<1x1x128xf32>
      %47 = vector.shape_cast %46 : vector<1x1x128xf32> to vector<1x128xf32>
      %cst_33 = arith.constant dense<0.000000e+00> : vector<128xf32>
      %48 = vector.multi_reduction <add>, %15, %cst_33 [0] : vector<32x128xf32> to vector<128xf32>
      %49 = vector.shape_cast %48 : vector<128xf32> to vector<1x128xf32>
      %50 = arith.addf %47, %49 : vector<1x128xf32>
      %51 = arith.index_cast %3 : i32 to index
      %c0_34 = arith.constant 0 : index
      %c0_35 = arith.constant 0 : index
      %52 = vector.load %arg12[%51, %c0_34, %c0_35] : memref<2x1x128xf32, #tpu.memory_space<vmem>>, vector<1x1x128xf32>
      %53 = vector.shape_cast %52 : vector<1x1x128xf32> to vector<1x128xf32>
      %54 = vector.shape_cast %50 : vector<1x128xf32> to vector<1x1x128xf32>
      tpu.vector_store %arg12[%51, %c0_34, %c0_35], %54 {strides = array<i32>} : memref<2x1x128xf32, #tpu.memory_space<vmem>>, vector<1x1x128xf32>,
      %55 = arith.index_cast %3 : i32 to index
      %c0_36 = arith.constant 0 : index
      %c0_37 = arith.constant 0 : index
      %56 = vector.load %arg13[%55, %c0_36, %c0_37] : memref<2x1x128xf32, #tpu.memory_space<vmem>>, vector<1x1x128xf32>
      %57 = vector.shape_cast %56 : vector<1x1x128xf32> to vector<1x128xf32>
      %58 = arith.mulf %13, %13 : vector<32x128xf32>
      %cst_38 = arith.constant dense<0.000000e+00> : vector<128xf32>
      %59 = vector.multi_reduction <add>, %58, %cst_38 [0] : vector<32x128xf32> to vector<128xf32>
      %60 = vector.shape_cast %59 : vector<128xf32> to vector<1x128xf32>
      %61 = arith.addf %57, %60 : vector<1x128xf32>
      %62 = arith.index_cast %3 : i32 to index
      %c0_39 = arith.constant 0 : index
      %c0_40 = arith.constant 0 : index
      %63 = vector.load %arg13[%62, %c0_39, %c0_40] : memref<2x1x128xf32, #tpu.memory_space<vmem>>, vector<1x1x128xf32>
      %64 = vector.shape_cast %63 : vector<1x1x128xf32> to vector<1x128xf32>
      %65 = vector.shape_cast %61 : vector<1x128xf32> to vector<1x1x128xf32>
      tpu.vector_store %arg13[%62, %c0_39, %c0_40], %65 {strides = array<i32>} : memref<2x1x128xf32, #tpu.memory_space<vmem>>, vector<1x1x128xf32>,
      %66 = arith.index_cast %3 : i32 to index
      %c0_41 = arith.constant 0 : index
      %c0_42 = arith.constant 0 : index
      %67 = vector.load %arg14[%66, %c0_41, %c0_42] : memref<2x1x128xf32, #tpu.memory_space<vmem>>, vector<1x1x128xf32>
      %68 = vector.shape_cast %67 : vector<1x1x128xf32> to vector<1x128xf32>
      %69 = arith.mulf %15, %15 : vector<32x128xf32>
      %cst_43 = arith.constant dense<0.000000e+00> : vector<128xf32>
      %70 = vector.multi_reduction <add>, %69, %cst_43 [0] : vector<32x128xf32> to vector<128xf32>
      %71 = vector.shape_cast %70 : vector<128xf32> to vector<1x128xf32>
      %72 = arith.addf %68, %71 : vector<1x128xf32>
      %73 = arith.index_cast %3 : i32 to index
      %c0_44 = arith.constant 0 : index
      %c0_45 = arith.constant 0 : index
      %74 = vector.load %arg14[%73, %c0_44, %c0_45] : memref<2x1x128xf32, #tpu.memory_space<vmem>>, vector<1x1x128xf32>
      %75 = vector.shape_cast %74 : vector<1x1x128xf32> to vector<1x128xf32>
      %76 = vector.shape_cast %72 : vector<1x128xf32> to vector<1x1x128xf32>
      tpu.vector_store %arg14[%73, %c0_44, %c0_45], %76 {strides = array<i32>} : memref<2x1x128xf32, #tpu.memory_space<vmem>>, vector<1x1x128xf32>,
      %77 = arith.subf %13, %15 : vector<32x128xf32>
      %c0_46 = arith.constant 0 : index
      %c0_47 = arith.constant 0 : index
      %78 = vector.load %arg15[%c0_46, %c0_47] : memref<1x1xf32, #tpu.memory_space<vmem>>, vector<1x1xf32>
      %79 = arith.mulf %77, %77 : vector<32x128xf32>
      %80 = vector.shape_cast %79 : vector<32x128xf32> to vector<1x32x128xf32>
      %cst_48 = arith.constant dense<0.000000e+00> : vector<1xf32>
      %81 = vector.multi_reduction <add>, %80, %cst_48 [1, 2] : vector<1x32x128xf32> to vector<1xf32>
      %82 = vector.shape_cast %81 : vector<1xf32> to vector<1x1x1xf32>
      %83 = vector.extract %82[0, 0, 0] : f32 from vector<1x1x1xf32>
      %84 = vector.broadcast %83 : f32 to vector<1x1xf32>
      %85 = arith.addf %78, %84 : vector<1x1xf32>
      %c0_49 = arith.constant 0 : index
      %c0_50 = arith.constant 0 : index
      %86 = vector.load %arg15[%c0_49, %c0_50] : memref<1x1xf32, #tpu.memory_space<vmem>>, vector<1x1xf32>
      tpu.vector_store %arg15[%c0_49, %c0_50], %85 {strides = array<i32>} : memref<1x1xf32, #tpu.memory_space<vmem>>, vector<1x1xf32>,
    } else {
    }
    %c2_i32 = arith.constant 2 : i32
    %27 = arith.cmpi eq, %arg1, %c2_i32 : i32
    %28 = arith.extui %27 : i1 to i32
    %c0_i32_22 = arith.constant 0 : i32
    %29 = arith.cmpi ne, %28, %c0_i32_22 : i32
    scf.if %29 {
      %35 = arith.index_cast %1 : i32 to index
      %c0_26 = arith.constant 0 : index
      %c0_27 = arith.constant 0 : index
      %36 = vector.load %arg11[%35, %c0_26, %c0_27] : memref<2x1x128xf32, #tpu.memory_space<vmem>>, vector<1x1x128xf32>
      %37 = vector.shape_cast %36 : vector<1x1x128xf32> to vector<1x128xf32>
      %38 = arith.index_cast %3 : i32 to index
      %c0_28 = arith.constant 0 : index
      %c0_29 = arith.constant 0 : index
      %39 = vector.load %arg11[%38, %c0_28, %c0_29] : memref<2x1x128xf32, #tpu.memory_space<vmem>>, vector<1x1x128xf32>
      %40 = vector.shape_cast %39 : vector<1x1x128xf32> to vector<1x128xf32>
      %41 = arith.index_cast %1 : i32 to index
      %c0_30 = arith.constant 0 : index
      %c0_31 = arith.constant 0 : index
      %42 = vector.load %arg12[%41, %c0_30, %c0_31] : memref<2x1x128xf32, #tpu.memory_space<vmem>>, vector<1x1x128xf32>
      %43 = vector.shape_cast %42 : vector<1x1x128xf32> to vector<1x128xf32>
      %44 = arith.index_cast %3 : i32 to index
      %c0_32 = arith.constant 0 : index
      %c0_33 = arith.constant 0 : index
      %45 = vector.load %arg12[%44, %c0_32, %c0_33] : memref<2x1x128xf32, #tpu.memory_space<vmem>>, vector<1x1x128xf32>
      %46 = vector.shape_cast %45 : vector<1x1x128xf32> to vector<1x128xf32>
      %cst_34 = arith.constant dense<0.000000e+00> : vector<128x128xf32>
      %47 = tpu.matmul %37, %40, %cst_34 {dimension_numbers = #tpu.dot_dimension_numbers<[0], [0], [1], [1], [0, 1, 1, 1], [], []>, precision = #tpu.contract_precision<fp32>} : vector<1x128xf32>, vector<1x128xf32>, vector<128x128xf32> -> vector<128x128xf32>
      %cst_35 = arith.constant dense<0.000000e+00> : vector<128x128xf32>
      %48 = tpu.matmul %43, %46, %cst_35 {dimension_numbers = #tpu.dot_dimension_numbers<[0], [0], [1], [1], [0, 1, 1, 1], [], []>, precision = #tpu.contract_precision<fp32>} : vector<1x128xf32>, vector<1x128xf32>, vector<128x128xf32> -> vector<128x128xf32>
      %c0_36 = arith.constant 0 : index
      %c0_37 = arith.constant 0 : index
      %49 = vector.load %arg9[%c0_36, %c0_37] : memref<128x128xf32, #tpu.memory_space<vmem>>, vector<128x128xf32>
      %cst_38 = arith.constant 0.010416667 : f32
      %50 = vector.broadcast %cst_38 : f32 to vector<128x128xf32>
      %51 = arith.mulf %47, %50 : vector<128x128xf32>
      %52 = arith.subf %49, %51 : vector<128x128xf32>
      %cst_39 = arith.constant 0.0105263162 : f32
      %53 = vector.broadcast %cst_39 : f32 to vector<128x128xf32>
      %54 = arith.mulf %52, %53 : vector<128x128xf32>
      %c0_40 = arith.constant 0 : index
      %c0_41 = arith.constant 0 : index
      %55 = vector.load %arg10[%c0_40, %c0_41] : memref<128x128xf32, #tpu.memory_space<vmem>>, vector<128x128xf32>
      %cst_42 = arith.constant 0.010416667 : f32
      %56 = vector.broadcast %cst_42 : f32 to vector<128x128xf32>
      %57 = arith.mulf %48, %56 : vector<128x128xf32>
      %58 = arith.subf %55, %57 : vector<128x128xf32>
      %cst_43 = arith.constant 0.0105263162 : f32
      %59 = vector.broadcast %cst_43 : f32 to vector<128x128xf32>
      %60 = arith.mulf %58, %59 : vector<128x128xf32>
      %61 = arith.cmpi eq, %1, %3 : i32
      %cst_44 = arith.constant 1.000000e+00 : f32
      %cst_45 = arith.constant 2.000000e+00 : f32
      %62 = arith.select %61, %cst_44, %cst_45 : f32
      %c0_46 = arith.constant 0 : index
      %c0_47 = arith.constant 0 : index
      %63 = vector.load %arg16[%c0_46, %c0_47] : memref<1x1xf32, #tpu.memory_space<vmem>>, vector<1x1xf32>
      %64 = arith.mulf %54, %54 : vector<128x128xf32>
      %65 = vector.shape_cast %64 : vector<128x128xf32> to vector<1x128x128xf32>
      %cst_48 = arith.constant dense<0.000000e+00> : vector<1xf32>
      %66 = vector.multi_reduction <add>, %65, %cst_48 [1, 2] : vector<1x128x128xf32> to vector<1xf32>
      %67 = vector.shape_cast %66 : vector<1xf32> to vector<1x1x1xf32>
      %68 = vector.extract %67[0, 0, 0] : f32 from vector<1x1x1xf32>
      %69 = vector.broadcast %68 : f32 to vector<1x1xf32>
      %70 = arith.mulf %60, %60 : vector<128x128xf32>
      %71 = vector.shape_cast %70 : vector<128x128xf32> to vector<1x128x128xf32>
      %cst_49 = arith.constant dense<0.000000e+00> : vector<1xf32>
      %72 = vector.multi_reduction <add>, %71, %cst_49 [1, 2] : vector<1x128x128xf32> to vector<1xf32>
      %73 = vector.shape_cast %72 : vector<1xf32> to vector<1x1x1xf32>
      %74 = vector.extract %73[0, 0, 0] : f32 from vector<1x1x1xf32>
      %75 = vector.broadcast %74 : f32 to vector<1x1xf32>
      %76 = arith.addf %69, %75 : vector<1x1xf32>
      %77 = vector.broadcast %62 : f32 to vector<1x1xf32>
      %78 = arith.mulf %77, %76 : vector<1x1xf32>
      %79 = arith.addf %63, %78 : vector<1x1xf32>
      %c0_50 = arith.constant 0 : index
      %c0_51 = arith.constant 0 : index
      %80 = vector.load %arg16[%c0_50, %c0_51] : memref<1x1xf32, #tpu.memory_space<vmem>>, vector<1x1xf32>
      tpu.vector_store %arg16[%c0_50, %c0_51], %79 {strides = array<i32>} : memref<1x1xf32, #tpu.memory_space<vmem>>, vector<1x1xf32>,
    } else {
    }
    %c2_i32_23 = arith.constant 2 : i32
    %30 = arith.cmpi eq, %arg0, %c2_i32_23 : i32
    %c2_i32_24 = arith.constant 2 : i32
    %31 = arith.cmpi eq, %arg1, %c2_i32_24 : i32
    %32 = arith.andi %30, %31 : i1
    %33 = arith.extui %32 : i1 to i32
    %c0_i32_25 = arith.constant 0 : i32
    %34 = arith.cmpi ne, %33, %c0_i32_25 : i32
    scf.if %34 {
      %c0_26 = arith.constant 0 : index
      %c0_27 = arith.constant 0 : index
      %c0_28 = arith.constant 0 : index
      %35 = vector.load %arg13[%c0_26, %c0_27, %c0_28] : memref<2x1x128xf32, #tpu.memory_space<vmem>>, vector<2x1x128xf32>
      %c0_29 = arith.constant 0 : index
      %c0_30 = arith.constant 0 : index
      %c0_31 = arith.constant 0 : index
      %36 = vector.load %arg11[%c0_29, %c0_30, %c0_31] : memref<2x1x128xf32, #tpu.memory_space<vmem>>, vector<2x1x128xf32>
      %c0_32 = arith.constant 0 : index
      %c0_33 = arith.constant 0 : index
      %c0_34 = arith.constant 0 : index
      %37 = vector.load %arg11[%c0_32, %c0_33, %c0_34] : memref<2x1x128xf32, #tpu.memory_space<vmem>>, vector<2x1x128xf32>
      %38 = arith.mulf %36, %37 : vector<2x1x128xf32>
      %cst_35 = arith.constant 0.010416667 : f32
      %39 = vector.broadcast %cst_35 : f32 to vector<2x1x128xf32>
      %40 = arith.mulf %38, %39 : vector<2x1x128xf32>
      %41 = arith.subf %35, %40 : vector<2x1x128xf32>
      %cst_36 = arith.constant 0.0105263162 : f32
      %42 = vector.broadcast %cst_36 : f32 to vector<2x1x128xf32>
      %43 = arith.mulf %41, %42 : vector<2x1x128xf32>
      %c0_37 = arith.constant 0 : index
      %c0_38 = arith.constant 0 : index
      %c0_39 = arith.constant 0 : index
      %44 = vector.load %arg14[%c0_37, %c0_38, %c0_39] : memref<2x1x128xf32, #tpu.memory_space<vmem>>, vector<2x1x128xf32>
      %c0_40 = arith.constant 0 : index
      %c0_41 = arith.constant 0 : index
      %c0_42 = arith.constant 0 : index
      %45 = vector.load %arg12[%c0_40, %c0_41, %c0_42] : memref<2x1x128xf32, #tpu.memory_space<vmem>>, vector<2x1x128xf32>
      %c0_43 = arith.constant 0 : index
      %c0_44 = arith.constant 0 : index
      %c0_45 = arith.constant 0 : index
      %46 = vector.load %arg12[%c0_43, %c0_44, %c0_45] : memref<2x1x128xf32, #tpu.memory_space<vmem>>, vector<2x1x128xf32>
      %47 = arith.mulf %45, %46 : vector<2x1x128xf32>
      %cst_46 = arith.constant 0.010416667 : f32
      %48 = vector.broadcast %cst_46 : f32 to vector<2x1x128xf32>
      %49 = arith.mulf %47, %48 : vector<2x1x128xf32>
      %50 = arith.subf %44, %49 : vector<2x1x128xf32>
      %cst_47 = arith.constant 0.0105263162 : f32
      %51 = vector.broadcast %cst_47 : f32 to vector<2x1x128xf32>
      %52 = arith.mulf %50, %51 : vector<2x1x128xf32>
      %cst_48 = arith.constant 9.99999974E-5 : f32
      %53 = vector.broadcast %cst_48 : f32 to vector<2x1x128xf32>
      %54 = arith.addf %43, %53 : vector<2x1x128xf32>
      %55 = math.sqrt %54 : vector<2x1x128xf32>
      %cst_49 = arith.constant 9.99999974E-5 : f32
      %56 = vector.broadcast %cst_49 : f32 to vector<2x1x128xf32>
      %57 = arith.addf %52, %56 : vector<2x1x128xf32>
      %58 = math.sqrt %57 : vector<2x1x128xf32>
      %cst_50 = arith.constant 1.000000e+00 : f32
      %59 = vector.broadcast %cst_50 : f32 to vector<2x1x128xf32>
      %60 = arith.subf %59, %55 : vector<2x1x128xf32>
      %cst_51 = arith.constant 0.000000e+00 : f32
      %61 = vector.broadcast %cst_51 : f32 to vector<2x1x128xf32>
      %62 = arith.maximumf %60, %61 : vector<2x1x128xf32>
      %63 = vector.shape_cast %62 : vector<2x1x128xf32> to vector<1x2x1x128xf32>
      %cst_52 = arith.constant dense<0.000000e+00> : vector<1xf32>
      %64 = vector.multi_reduction <add>, %63, %cst_52 [1, 2, 3] : vector<1x2x1x128xf32> to vector<1xf32>
      %65 = vector.shape_cast %64 : vector<1xf32> to vector<1x1x1x1xf32>
      %66 = vector.extract %65[0, 0, 0, 0] : f32 from vector<1x1x1x1xf32>
      %cst_53 = arith.constant 1.000000e+00 : f32
      %67 = vector.broadcast %cst_53 : f32 to vector<2x1x128xf32>
      %68 = arith.subf %67, %58 : vector<2x1x128xf32>
      %cst_54 = arith.constant 0.000000e+00 : f32
      %69 = vector.broadcast %cst_54 : f32 to vector<2x1x128xf32>
      %70 = arith.maximumf %68, %69 : vector<2x1x128xf32>
      %71 = vector.shape_cast %70 : vector<2x1x128xf32> to vector<1x2x1x128xf32>
      %cst_55 = arith.constant dense<0.000000e+00> : vector<1xf32>
      %72 = vector.multi_reduction <add>, %71, %cst_55 [1, 2, 3] : vector<1x2x1x128xf32> to vector<1xf32>
      %73 = vector.shape_cast %72 : vector<1xf32> to vector<1x1x1x1xf32>
      %74 = vector.extract %73[0, 0, 0, 0] : f32 from vector<1x1x1x1xf32>
      %75 = arith.addf %66, %74 : f32
      %cst_56 = arith.constant 5.120000e+02 : f32
      %76 = arith.divf %75, %cst_56 : f32
      %77 = arith.mulf %43, %43 : vector<2x1x128xf32>
      %78 = vector.shape_cast %77 : vector<2x1x128xf32> to vector<1x2x1x128xf32>
      %cst_57 = arith.constant dense<0.000000e+00> : vector<1xf32>
      %79 = vector.multi_reduction <add>, %78, %cst_57 [1, 2, 3] : vector<1x2x1x128xf32> to vector<1xf32>
      %80 = vector.shape_cast %79 : vector<1xf32> to vector<1x1x1x1xf32>
      %81 = vector.extract %80[0, 0, 0, 0] : f32 from vector<1x1x1x1xf32>
      %82 = arith.mulf %52, %52 : vector<2x1x128xf32>
      %83 = vector.shape_cast %82 : vector<2x1x128xf32> to vector<1x2x1x128xf32>
      %cst_58 = arith.constant dense<0.000000e+00> : vector<1xf32>
      %84 = vector.multi_reduction <add>, %83, %cst_58 [1, 2, 3] : vector<1x2x1x128xf32> to vector<1xf32>
      %85 = vector.shape_cast %84 : vector<1xf32> to vector<1x1x1x1xf32>
      %86 = vector.extract %85[0, 0, 0, 0] : f32 from vector<1x1x1x1xf32>
      %87 = arith.addf %81, %86 : f32
      %c0_59 = arith.constant 0 : index
      %c0_60 = arith.constant 0 : index
      %88 = vector.load %arg16[%c0_59, %c0_60] : memref<1x1xf32, #tpu.memory_space<vmem>>, vector<1x1xf32>
      %89 = vector.extract %88[0, 0] : f32 from vector<1x1xf32>
      %90 = arith.subf %89, %87 : f32
      %cst_61 = arith.constant 2.560000e+02 : f32
      %91 = arith.divf %90, %cst_61 : f32
      %c0_62 = arith.constant 0 : index
      %c0_63 = arith.constant 0 : index
      %92 = vector.load %arg15[%c0_62, %c0_63] : memref<1x1xf32, #tpu.memory_space<vmem>>, vector<1x1xf32>
      %93 = vector.extract %92[0, 0] : f32 from vector<1x1xf32>
      %cst_64 = arith.constant 2.457600e+04 : f32
      %94 = arith.divf %93, %cst_64 : f32
      %cst_65 = arith.constant 2.500000e+01 : f32
      %95 = arith.mulf %cst_65, %94 : f32
      %cst_66 = arith.constant 2.500000e+01 : f32
      %96 = arith.mulf %cst_66, %76 : f32
      %97 = arith.addf %95, %96 : f32
      %cst_67 = arith.constant 1.000000e+00 : f32
      %98 = arith.mulf %cst_67, %91 : f32
      %99 = arith.addf %97, %98 : f32
      %c0_68 = arith.constant 0 : index
      %c0_69 = arith.constant 0 : index
      %100 = memref.load %arg8[%c0_68, %c0_69] : memref<1x1xf32, #tpu.memory_space<smem>>
      memref.store %99, %arg8[%c0_68, %c0_69] : memref<1x1xf32, #tpu.memory_space<smem>>
    } else {
    }
    return
  }
  func.func @transform_0(%arg0: i32, %arg1: i32, %arg2: memref<3xi32, #tpu.memory_space<smem>>, %arg3: memref<3xi32, #tpu.memory_space<smem>>) -> (i32, i32) {
    %0 = arith.index_cast %arg0 : i32 to index
    %1 = memref.load %arg2[%0] : memref<3xi32, #tpu.memory_space<smem>>
    %c0_i32 = arith.constant 0 : i32
    return %arg1, %1 : i32, i32
  }
  func.func @transform_1(%arg0: i32, %arg1: i32, %arg2: memref<3xi32, #tpu.memory_space<smem>>, %arg3: memref<3xi32, #tpu.memory_space<smem>>) -> (i32, i32) {
    %0 = arith.index_cast %arg0 : i32 to index
    %1 = memref.load %arg3[%0] : memref<3xi32, #tpu.memory_space<smem>>
    %c0_i32 = arith.constant 0 : i32
    return %arg1, %1 : i32, i32
  }
  func.func @transform_2(%arg0: i32, %arg1: i32, %arg2: memref<3xi32, #tpu.memory_space<smem>>, %arg3: memref<3xi32, #tpu.memory_space<smem>>) -> (i32, i32) {
    %0 = arith.index_cast %arg0 : i32 to index
    %1 = memref.load %arg2[%0] : memref<3xi32, #tpu.memory_space<smem>>
    %c0_i32 = arith.constant 0 : i32
    return %arg1, %1 : i32, i32
  }
  func.func @transform_3(%arg0: i32, %arg1: i32, %arg2: memref<3xi32, #tpu.memory_space<smem>>, %arg3: memref<3xi32, #tpu.memory_space<smem>>) -> (i32, i32) {
    %0 = arith.index_cast %arg0 : i32 to index
    %1 = memref.load %arg3[%0] : memref<3xi32, #tpu.memory_space<smem>>
    %c0_i32 = arith.constant 0 : i32
    return %arg1, %1 : i32, i32
  }
  func.func @transform_4(%arg0: i32, %arg1: i32, %arg2: memref<3xi32, #tpu.memory_space<smem>>, %arg3: memref<3xi32, #tpu.memory_space<smem>>) -> (i32, i32) {
    %c0_i32 = arith.constant 0 : i32
    %c0_i32_0 = arith.constant 0 : i32
    %c0_i32_1 = arith.constant 0 : i32
    return %c0_i32, %c0_i32_0 : i32, i32
  }
}

</mosaic_0001>

<llo_original>
// kernel: tpu_custom_call.1
$region0: #{tpu_custom_call.1}
  #allocation0 [shape = 'u32[]', space=smem, size = 0x4, offset = 0x4, fixed_abs, tag = 'smem constant byte address 0x4 - core index']
  #allocation1 [shape = 'u32[144,128]{1,0:T(1,128)}', space=vmem, size = 0x12000, scoped, tag = 'internal scratch']
  #allocation2 [shape = 'f32[128,128]{1,0:T(8,128)}', space=vmem, size = 0x10000, scoped, tag = 'scratch operand']
  #allocation3 [shape = 'f32[128,128]{1,0:T(8,128)}', space=vmem, size = 0x10000, scoped, tag = 'scratch operand']
  #allocation4 [shape = 'f32[2,1,128]{2,1,0:T(1,128)}', space=vmem, size = 0x400, scoped, tag = 'scratch operand']
  #allocation5 [shape = 'f32[2,1,128]{2,1,0:T(1,128)}', space=vmem, size = 0x400, scoped, tag = 'scratch operand']
  #allocation6 [shape = 'f32[2,1,128]{2,1,0:T(1,128)}', space=vmem, size = 0x400, scoped, tag = 'scratch operand']
  #allocation7 [shape = 'f32[2,1,128]{2,1,0:T(1,128)}', space=vmem, size = 0x400, scoped, tag = 'scratch operand']
  #allocation8 [shape = 'f32[1,1]{1,0:T(1,128)}', space=vmem, size = 0x200, scoped, tag = 'scratch operand']
  #allocation9 [shape = 'f32[1,1]{1,0:T(1,128)}', space=vmem, size = 0x200, scoped, tag = 'scratch operand']
  #allocation10 [shape = 's32[1]{0}', space=sflag, size = 0x4, scoped, tag = 'scoped memory for tpu_custom_call.1']
  #allocation11 [shape = 'u8[512]{0}', space=smem, size = 0x200, scoped, tag = 'prefetched SMEM operand 0']
  #allocation12 [shape = 'u8[512]{0}', space=smem, size = 0x200, scoped, tag = 'prefetched SMEM operand 1']
  %s0 = inlined_call_operand.hbm [shape: s32[3], index: 0, kind: input, shape index: {}]
  %s1 = inlined_call_operand.vmem [shape: s32[3], index: 1, kind: input, shape index: {}]
  %s2 = inlined_call_operand.hbm [shape: f32[96,256], index: 2, kind: input, shape index: {}]
  %s3 = inlined_call_operand.hbm [shape: f32[96,256], index: 3, kind: input, shape index: {}]
  %s4 = inlined_call_operand.hbm [shape: f32[96,256], index: 4, kind: input, shape index: {}]
  %s5 = inlined_call_operand.hbm [shape: f32[96,256], index: 5, kind: input, shape index: {}]
  %s6 = inlined_call_operand.hbm [shape: f32[1,1], index: 6, kind: output, shape index: {}]
  %s7 = sld [smem:[#allocation0]]
  $region85: #{tpu_custom_call.1} parent=0
    _
  %s9 = ssub.s32 1, %s7
  %s10 = scalar_select 0, %s9, %s7
  %12 = dma.hbm_to_smem %s0, 16, [#allocation11], [#allocation10]
  %s13 = sshll.u32 %s1, 4
  %s14 = int_to_ptr.vmem [resolvable:$true] %s13
  %16 = dma.vmem_to_smem %s14, 16, [#allocation12], [#allocation10]
  %17 = dma.done [#allocation10], 32
  %18 = sfence
  $region1: #{tpu_custom_call.1} parent=0
    #allocation13 [shape = 'u8[32768]{0}', space=vmem, size = 0x8000, scoped, tag = 'input window, operand 2']
    #allocation14 [shape = 's32[2]{0}', space=sflag, size = 0x8, scoped, tag = 'scoped memory for tpu_custom_call.1']
    #allocation15 [shape = 's32[2]{0}', space=sflag, size = 0x8, scoped, tag = 'scoped memory for tpu_custom_call.1']
    #allocation16 [shape = 'u8[32768]{0}', space=vmem, size = 0x8000, scoped, tag = 'input window, operand 3']
    #allocation17 [shape = 's32[2]{0}', space=sflag, size = 0x8, scoped, tag = 'scoped memory for tpu_custom_call.1']
    #allocation18 [shape = 'u8[32768]{0}', space=vmem, size = 0x8000, scoped, tag = 'input window, operand 4']
    #allocation19 [shape = 'u8[32768]{0}', space=vmem, size = 0x8000, scoped, tag = 'input window, operand 5']
    #allocation20 [shape = 's32[2]{0}', space=sflag, size = 0x8, scoped, tag = 'scoped memory for tpu_custom_call.1']
    #allocation21 [shape = 'u8[512]{0}', space=smem, size = 0x200, scoped, tag = 'output window, operand 0, single buffered']
    %19 = vsyncpa [#allocation14], 0
    %s20 = scalar_lea.sflag [#allocation14], 1
    %21 = vsyncpa %s20, 0
    %22 = vsyncpa [#allocation17], 0
    %s23 = scalar_lea.sflag [#allocation17], 1
    %24 = vsyncpa %s23, 0
    %25 = vsyncpa [#allocation20], 0
    %s26 = scalar_lea.sflag [#allocation20], 1
    %27 = vsyncpa %s26, 0
    %28 = vsyncpa [#allocation15], 0
    loop: start=0, step=1, limit=11
    $region2: #{tpu_custom_call.1} parent=1 // loop_pre_header
      _
    $region3: #{tpu_custom_call.1} parent=1 // loop_header
      %s30 = sphi 0, %s34
      %p31 = scmp.ge.s32.totalorder %s30, 11
      %s37 = sphi 0, %s49
      %s38 = sphi 0, %s45
      %s39 = sphi 0, %s37
      %s40 = sphi 0, %s38
      %s41 = sphi 0, %s39
      %s42 = sphi 0, %s40
      %s56 = sphi 0, %s58
      %s59 = sphi 0, %s56
      %s60 = sphi 0, %s59
      %s76 = sphi 0, %s60
      %s86 = sphi 0, %s88
      %s89 = sphi 0, %s86
      %s90 = sphi 0, %s89
      %s106 = sphi 0, %s90
      %s116 = sphi 0, %s118
      %s119 = sphi 0, %s116
      %s120 = sphi 0, %s119
      %s136 = sphi 0, %s120
      %s146 = sphi 0, %s148
      %s149 = sphi 0, %s146
      %s150 = sphi 0, %s149
      %s166 = sphi 0, %s150
      %s170 = sphi 0, %s170
      %s172 = sphi 0, %s170
      %s173 = sphi 0, %s172
      %s187 = sphi 0, %s173
    $region4: #{tpu_custom_call.1} parent=1 // loop_header_branch
      %33 = sbr.rel (%p31) target = $region8
    $region5: #{tpu_custom_call.1} parent=1 // loop_body
      %s35 = ssub.s32 %s30, 1
      %s36 = ssub.s32 %s30, 2
      %s43 = sadd.s32 1, %s38
      %p44 = scmp.ge.s32.totalorder %s43, 3
      %s45 = scalar_select %p44, 0, %s43
      %s46 = sadd.s32 1, %s37
      %s47 = scalar_select %p44, %s46, %s37
      %p48 = scmp.ge.s32.totalorder %s47, 3
      %s49 = scalar_select %p48, 0, %s47
      %s50 = sld [smem:[#allocation11 + %s37]]
      %s51 = sld [smem:[#allocation11 + %s49]]
      %s52 = ssub.s32 %s38, %s45
      %s53 = ssub.s32 %s50, %s51
      %s54 = sor.u32 %s52, %s53
      %p55 = scmp.eq.s32.totalorder %s54, 0
      %s57 = sadd.s32 %s56, 1
      %s58 = scalar_select %p55, %s56, %s57
      %p61 = pneg %p55
      %p62 = scmp.eq.s32.totalorder %s30, 8
      %p63 = por %p61, %p62
      %p64 = scmp.ne.s32.totalorder %s56, %s59
      %p65 = scmp.eq.s32.totalorder %s30, 0
      %p66 = por %p64, %p65
      %p67 = scmp.ne.s32.totalorder %s56, %s59
      %p68 = scmp.eq.s32.totalorder %s35, 8
      %p69 = por %p67, %p68
      %p70 = scmp.ne.s32.totalorder %s59, %s60
      %p71 = scmp.eq.s32.totalorder %s35, 0
      %p72 = por %p70, %p71
      %p73 = scmp.ne.s32.totalorder %s59, %s60
      %p74 = scmp.eq.s32.totalorder %s36, 8
      %p75 = por %p73, %p74
      %p77 = scmp.ne.s32.totalorder %s60, %s76
      %p78 = scmp.eq.s32.totalorder %s36, 0
      %p79 = por %p77, %p78
      %s80 = sld [smem:[#allocation12 + %s37]]
      %s81 = sld [smem:[#allocation12 + %s49]]
      %s82 = ssub.s32 %s38, %s45
      %s83 = ssub.s32 %s80, %s81
      %s84 = sor.u32 %s82, %s83
      %p85 = scmp.eq.s32.totalorder %s84, 0
      %s87 = sadd.s32 %s86, 1
      %s88 = scalar_select %p85, %s86, %s87
      %p91 = pneg %p85
      %p92 = scmp.eq.s32.totalorder %s30, 8
      %p93 = por %p91, %p92
      %p94 = scmp.ne.s32.totalorder %s86, %s89
      %p95 = scmp.eq.s32.totalorder %s30, 0
      %p96 = por %p94, %p95
      %p97 = scmp.ne.s32.totalorder %s86, %s89
      %p98 = scmp.eq.s32.totalorder %s35, 8
      %p99 = por %p97, %p98
      %p100 = scmp.ne.s32.totalorder %s89, %s90
      %p101 = scmp.eq.s32.totalorder %s35, 0
      %p102 = por %p100, %p101
      %p103 = scmp.ne.s32.totalorder %s89, %s90
      %p104 = scmp.eq.s32.totalorder %s36, 8
      %p105 = por %p103, %p104
      %p107 = scmp.ne.s32.totalorder %s90, %s106
      %p108 = scmp.eq.s32.totalorder %s36, 0
      %p109 = por %p107, %p108
      %s110 = sld [smem:[#allocation11 + %s37]]
      %s111 = sld [smem:[#allocation11 + %s49]]
      %s112 = ssub.s32 %s38, %s45
      %s113 = ssub.s32 %s110, %s111
      %s114 = sor.u32 %s112, %s113
      %p115 = scmp.eq.s32.totalorder %s114, 0
      %s117 = sadd.s32 %s116, 1
      %s118 = scalar_select %p115, %s116, %s117
      %p121 = pneg %p115
      %p122 = scmp.eq.s32.totalorder %s30, 8
      %p123 = por %p121, %p122
      %p124 = scmp.ne.s32.totalorder %s116, %s119
      %p125 = scmp.eq.s32.totalorder %s30, 0
      %p126 = por %p124, %p125
      %p127 = scmp.ne.s32.totalorder %s116, %s119
      %p128 = scmp.eq.s32.totalorder %s35, 8
      %p129 = por %p127, %p128
      %p130 = scmp.ne.s32.totalorder %s119, %s120
      %p131 = scmp.eq.s32.totalorder %s35, 0
      %p132 = por %p130, %p131
      %p133 = scmp.ne.s32.totalorder %s119, %s120
      %p134 = scmp.eq.s32.totalorder %s36, 8
      %p135 = por %p133, %p134
      %p137 = scmp.ne.s32.totalorder %s120, %s136
      %p138 = scmp.eq.s32.totalorder %s36, 0
      %p139 = por %p137, %p138
      %s140 = sld [smem:[#allocation12 + %s37]]
      %s141 = sld [smem:[#allocation12 + %s49]]
      %s142 = ssub.s32 %s38, %s45
      %s143 = ssub.s32 %s140, %s141
      %s144 = sor.u32 %s142, %s143
      %p145 = scmp.eq.s32.totalorder %s144, 0
      %s147 = sadd.s32 %s146, 1
      %s148 = scalar_select %p145, %s146, %s147
      %p151 = pneg %p145
      %p152 = scmp.eq.s32.totalorder %s30, 8
      %p153 = por %p151, %p152
      %p154 = scmp.ne.s32.totalorder %s146, %s149
      %p155 = scmp.eq.s32.totalorder %s30, 0
      %p156 = por %p154, %p155
      %p157 = scmp.ne.s32.totalorder %s146, %s149
      %p158 = scmp.eq.s32.totalorder %s35, 8
      %p159 = por %p157, %p158
      %p160 = scmp.ne.s32.totalorder %s149, %s150
      %p161 = scmp.eq.s32.totalorder %s35, 0
      %p162 = por %p160, %p161
      %p163 = scmp.ne.s32.totalorder %s149, %s150
      %p164 = scmp.eq.s32.totalorder %s36, 8
      %p165 = por %p163, %p164
      %p167 = scmp.ne.s32.totalorder %s150, %s166
      %p168 = scmp.eq.s32.totalorder %s36, 0
      %p169 = por %p167, %p168
      %s171 = sadd.s32 %s170, 1
      %p174 = scmp.eq.s32.totalorder %s30, 8
      %p175 = scmp.ne.s32.totalorder %s170, %s172
      %p176 = scmp.eq.s32.totalorder %s30, 0
      %p177 = por %p175, %p176
      %p178 = scmp.ne.s32.totalorder %s170, %s172
      %p179 = scmp.eq.s32.totalorder %s35, 8
      %p180 = por %p178, %p179
      %p181 = scmp.ne.s32.totalorder %s172, %s173
      %p182 = scmp.eq.s32.totalorder %s35, 0
      %p183 = por %p181, %p182
      %p184 = scmp.ne.s32.totalorder %s172, %s173
      %p185 = scmp.eq.s32.totalorder %s36, 8
      %p186 = por %p184, %p185
      %p188 = scmp.ne.s32.totalorder %s173, %s187
      %p189 = scmp.eq.s32.totalorder %s36, 0
      %p190 = por %p188, %p189
      %p191 = scmp.le.s32.totalorder 1, %s30
      %p192 = scmp.lt.s32.totalorder %s30, 10
      %p193 = pnand %p191, %p192
      %p194 = pneg %p193
      // Predicated region
      $region9: #{tpu_custom_call.1} parent=5 // pred_check
        _
      $region10: #{tpu_custom_call.1} parent=5 // pred_check_branch
        %196 = sbr.rel (%p193) target = $region12
      $region11: #{tpu_custom_call.1} parent=5 // pred_region
        %s197 = ssub.s32 %s30, 1
      $region12: #{tpu_custom_call.1} parent=5 // pred_fallthru
        _
      %p198 = scmp.lt.s32.totalorder %s30, 9
      // Predicated region
      $region13: #{tpu_custom_call.1} parent=5 // pred_check
        %p199 = pneg %p198
      $region14: #{tpu_custom_call.1} parent=5 // pred_check_branch
        %201 = sbr.rel (%p199) target = $region16
      $region15: #{tpu_custom_call.1} parent=5 // pred_region
        // Predicated region
        $region17: #{tpu_custom_call.1} parent=15 // pred_check
          %p202 = pneg %p66
        $region18: #{tpu_custom_call.1} parent=15 // pred_check_branch
          %204 = sbr.rel (%p202) target = $region20
        $region19: #{tpu_custom_call.1} parent=15 // pred_region
          %s205 = sand.u32 %s56, 1
          %s206 = scalar_lea.sflag [#allocation14], %s205
          %s207 = sand.u32 %s56, 1
          %s208 = smul.addr %s207, 32
          %s209 = scalar_lea.vmem [#allocation13], %s208
          %s210 = sld [smem:[#allocation11 + %s37]]
          %s211 = smul.u32 4, %s38
          %s213 = ssub.s32 512, 512
          %214 = vsyncadd %s206, %s213
          %s215 = smul.addr %s211, 2
          %s216 = sadd.s32 %s210, %s215
          %s217 = smul.addr %s216, 128
          %s218 = scalar_lea.hbm %s2, %s217
          %s219 = sshll.u32 %s209, 4
          %s220 = int_to_ptr.vmem [resolvable:$true] %s219
          %225 = dma.hbm_to_vmem [thread:$0]  %s218, 512, %s220, %s206, 256, 128, 8
        $region20: #{tpu_custom_call.1} parent=15 // pred_fallthru
          _
        // Predicated region
        $region21: #{tpu_custom_call.1} parent=15 // pred_check
          %p226 = pneg %p96
        $region22: #{tpu_custom_call.1} parent=15 // pred_check_branch
          %228 = sbr.rel (%p226) target = $region24
        $region23: #{tpu_custom_call.1} parent=15 // pred_region
          %s229 = sand.u32 %s30, 1
          %s230 = scalar_lea.sflag [#allocation17], %s229
          %s231 = sand.u32 %s86, 1
          %s232 = smul.addr %s231, 32
          %s233 = scalar_lea.vmem [#allocation16], %s232
          %s234 = sld [smem:[#allocation12 + %s37]]
          %s235 = smul.u32 4, %s38
          %s237 = ssub.s32 512, 512
          %238 = vsyncadd %s230, %s237
          %s239 = smul.addr %s235, 2
          %s240 = sadd.s32 %s234, %s239
          %s241 = smul.addr %s240, 128
          %s242 = scalar_lea.hbm %s3, %s241
          %s243 = sshll.u32 %s233, 4
          %s244 = int_to_ptr.vmem [resolvable:$true] %s243
          %249 = dma.hbm_to_vmem [thread:$0]  %s242, 512, %s244, %s230, 256, 128, 8
        $region24: #{tpu_custom_call.1} parent=15 // pred_fallthru
          _
        // Predicated region
        $region25: #{tpu_custom_call.1} parent=15 // pred_check
          %p250 = pneg %p126
        $region26: #{tpu_custom_call.1} parent=15 // pred_check_branch
          %252 = sbr.rel (%p250) target = $region28
        $region27: #{tpu_custom_call.1} parent=15 // pred_region
          %s253 = sand.u32 %s30, 1
          %s254 = scalar_lea.sflag [#allocation17], %s253
          %s255 = sand.u32 %s116, 1
          %s256 = smul.addr %s255, 32
          %s257 = scalar_lea.vmem [#allocation18], %s256
          %s258 = sld [smem:[#allocation11 + %s37]]
          %s259 = smul.u32 4, %s38
          %s261 = ssub.s32 512, 512
          %262 = vsyncadd %s254, %s261
          %s263 = smul.addr %s259, 2
          %s264 = sadd.s32 %s258, %s263
          %s265 = smul.addr %s264, 128
          %s266 = scalar_lea.hbm %s4, %s265
          %s267 = sshll.u32 %s257, 4
          %s268 = int_to_ptr.vmem [resolvable:$true] %s267
          %273 = dma.hbm_to_vmem [thread:$0]  %s266, 512, %s268, %s254, 256, 128, 8
        $region28: #{tpu_custom_call.1} parent=15 // pred_fallthru
          _
        // Predicated region
        $region29: #{tpu_custom_call.1} parent=15 // pred_check
          %p274 = pneg %p156
        $region30: #{tpu_custom_call.1} parent=15 // pred_check_branch
          %276 = sbr.rel (%p274) target = $region32
        $region31: #{tpu_custom_call.1} parent=15 // pred_region
          %s277 = sand.u32 %s146, 1
          %s278 = scalar_lea.sflag [#allocation20], %s277
          %s279 = sand.u32 %s146, 1
          %s280 = smul.addr %s279, 32
          %s281 = scalar_lea.vmem [#allocation19], %s280
          %s282 = sld [smem:[#allocation12 + %s37]]
          %s283 = smul.u32 4, %s38
          %s285 = ssub.s32 512, 512
          %286 = vsyncadd %s278, %s285
          %s287 = smul.addr %s283, 2
          %s288 = sadd.s32 %s282, %s287
          %s289 = smul.addr %s288, 128
          %s290 = scalar_lea.hbm %s5, %s289
          %s291 = sshll.u32 %s281, 4
          %s292 = int_to_ptr.vmem [resolvable:$true] %s291
          %297 = dma.hbm_to_vmem [thread:$0]  %s290, 512, %s292, %s278, 256, 128, 8
        $region32: #{tpu_custom_call.1} parent=15 // pred_fallthru
          _
      $region16: #{tpu_custom_call.1} parent=5 // pred_fallthru
        _
      %p298 = scmp.le.s32.totalorder 1, %s30
      %p299 = scmp.lt.s32.totalorder %s30, 10
      %p300 = pnand %p298, %p299
      %p301 = pneg %p300
      // Predicated region
      $region33: #{tpu_custom_call.1} parent=5 // pred_check
        _
      $region34: #{tpu_custom_call.1} parent=5 // pred_check_branch
        %303 = sbr.rel (%p300) target = $region36
      $region35: #{tpu_custom_call.1} parent=5 // pred_region
        %s304 = ssub.s32 %s30, 1
        %s305 = sand.u32 %s59, 1
        %s306 = scalar_lea.sflag [#allocation14], %s305
        %s307 = sand.u32 %s59, 1
        %s308 = smul.addr %s307, 32
        %s309 = scalar_lea.vmem [#allocation13], %s308
        // Predicated region
        $region37: #{tpu_custom_call.1} parent=35 // pred_check
          %p310 = pneg %p72
        $region38: #{tpu_custom_call.1} parent=35 // pred_check_branch
          %312 = sbr.rel (%p310) target = $region40
        $region39: #{tpu_custom_call.1} parent=35 // pred_region
          %313 = dma.done %s306, 512
        $region40: #{tpu_custom_call.1} parent=35 // pred_fallthru
          _
        %s314 = sand.u32 %s35, 1
        %s315 = scalar_lea.sflag [#allocation17], %s314
        %s316 = sand.u32 %s89, 1
        %s317 = smul.addr %s316, 32
        %s318 = scalar_lea.vmem [#allocation16], %s317
        // Predicated region
        $region41: #{tpu_custom_call.1} parent=35 // pred_check
          %p319 = pneg %p102
        $region42: #{tpu_custom_call.1} parent=35 // pred_check_branch
          %321 = sbr.rel (%p319) target = $region44
        $region43: #{tpu_custom_call.1} parent=35 // pred_region
          %322 = dma.done %s315, 512
        $region44: #{tpu_custom_call.1} parent=35 // pred_fallthru
          _
        %s323 = sand.u32 %s35, 1
        %s324 = scalar_lea.sflag [#allocation17], %s323
        %s325 = sand.u32 %s119, 1
        %s326 = smul.addr %s325, 32
        %s327 = scalar_lea.vmem [#allocation18], %s326
        // Predicated region
        $region45: #{tpu_custom_call.1} parent=35 // pred_check
          %p328 = pneg %p132
        $region46: #{tpu_custom_call.1} parent=35 // pred_check_branch
          %330 = sbr.rel (%p328) target = $region48
        $region47: #{tpu_custom_call.1} parent=35 // pred_region
          %331 = dma.done %s324, 512
        $region48: #{tpu_custom_call.1} parent=35 // pred_fallthru
          _
        %s332 = sand.u32 %s149, 1
        %s333 = scalar_lea.sflag [#allocation20], %s332
        %s334 = sand.u32 %s149, 1
        %s335 = smul.addr %s334, 32
        %s336 = scalar_lea.vmem [#allocation19], %s335
        // Predicated region
        $region49: #{tpu_custom_call.1} parent=35 // pred_check
          %p337 = pneg %p162
        $region50: #{tpu_custom_call.1} parent=35 // pred_check_branch
          %339 = sbr.rel (%p337) target = $region52
        $region51: #{tpu_custom_call.1} parent=35 // pred_region
          %340 = dma.done %s333, 512
        $region52: #{tpu_custom_call.1} parent=35 // pred_fallthru
          _
        %s341 = sand.u32 %s59, 1
        %s342 = scalar_lea.sflag [#allocation14], %s341
        %s343 = sand.u32 %s59, 1
        %s344 = smul.addr %s343, 32
        %s345 = scalar_lea.vmem [#allocation13], %s344
        %p346 = pneg %p72
        %p347 = pneg %p69
        %s348 = sand.u32 %s35, 1
        %s349 = scalar_lea.sflag [#allocation17], %s348
        %s350 = sand.u32 %s89, 1
        %s351 = smul.addr %s350, 32
        %s352 = scalar_lea.vmem [#allocation16], %s351
        %p353 = pneg %p102
        %p354 = pneg %p99
        %s355 = sand.u32 %s35, 1
        %s356 = scalar_lea.sflag [#allocation17], %s355
        %s357 = sand.u32 %s119, 1
        %s358 = smul.addr %s357, 32
        %s359 = scalar_lea.vmem [#allocation18], %s358
        %p360 = pneg %p132
        %p361 = pneg %p129
        %s362 = sand.u32 %s149, 1
        %s363 = scalar_lea.sflag [#allocation20], %s362
        %s364 = sand.u32 %s149, 1
        %s365 = smul.addr %s364, 32
        %s366 = scalar_lea.vmem [#allocation19], %s365
        %p367 = pneg %p162
        %p368 = pneg %p159
        %p369 = pneg %p183
        %p370 = pneg %p180
        %s371 = sld [smem:[#allocation11 + %s39]]
        %s372 = smul.u32 4, %s40
        %s373 = sld [smem:[#allocation12 + %s39]]
        %s374 = smul.u32 4, %s40
        %s375 = sld [smem:[#allocation11 + %s39]]
        %s376 = smul.u32 4, %s40
        %s377 = sld [smem:[#allocation12 + %s39]]
        %s378 = smul.u32 4, %s40
        %s379 = sld [smem:[#allocation11 + %s39]]
        %s380 = sld [smem:[#allocation12 + %s39]]
        %p381 = scmp.eq.s32.totalorder %s39, 0
        %p382 = scmp.eq.s32.totalorder %s40, 0
        %p383 = pnand %p381, %p382
        %p384 = pneg %p383
        // Predicated region
        $region53: #{tpu_custom_call.1} parent=35 // pred_check
          _
        $region54: #{tpu_custom_call.1} parent=35 // pred_check_branch
          %386 = sbr.rel (%p383) target = $region56
        $region55: #{tpu_custom_call.1} parent=35 // pred_region
          %387 = vst [vmem:[#allocation4] sm:$0x1] 0.0
          %388 = vst [vmem:[#allocation4 + $0x1] sm:$0x1] 0.0
          %389 = vst [vmem:[#allocation5] sm:$0x1] 0.0
          %390 = vst [vmem:[#allocation5 + $0x1] sm:$0x1] 0.0
          %391 = vst [vmem:[#allocation6] sm:$0x1] 0.0
          %392 = vst [vmem:[#allocation6 + $0x1] sm:$0x1] 0.0
          %393 = vst [vmem:[#allocation7] sm:$0x1] 0.0
          %394 = vst [vmem:[#allocation7 + $0x1] sm:$0x1] 0.0
          %vm395 = vcmask 0
          %396 = vst.msk [vmem:[#allocation8] sm:$0x1] %vm395, 0.0
          %397 = vst.msk [vmem:[#allocation9] sm:$0x1] %vm395, 0.0
        $region56: #{tpu_custom_call.1} parent=35 // pred_fallthru
          _
        // Predicated region
        $region57: #{tpu_custom_call.1} parent=35 // pred_check
          %p398 = pneg %p382
        $region58: #{tpu_custom_call.1} parent=35 // pred_check_branch
          %400 = sbr.rel (%p398) target = $region60
        $region59: #{tpu_custom_call.1} parent=35 // pred_region
          %401 = vst [vmem:[#allocation2] sm:$0xff] 0.0
          %402 = vst [vmem:[#allocation2 + $0x8] sm:$0xff] 0.0
          %403 = vst [vmem:[#allocation2 + $0x10] sm:$0xff] 0.0
          %404 = vst [vmem:[#allocation2 + $0x18] sm:$0xff] 0.0
          %405 = vst [vmem:[#allocation2 + $0x20] sm:$0xff] 0.0
          %406 = vst [vmem:[#allocation2 + $0x28] sm:$0xff] 0.0
          %407 = vst [vmem:[#allocation2 + $0x30] sm:$0xff] 0.0
          %408 = vst [vmem:[#allocation2 + $0x38] sm:$0xff] 0.0
          %409 = vst [vmem:[#allocation2 + $0x40] sm:$0xff] 0.0
          %410 = vst [vmem:[#allocation2 + $0x48] sm:$0xff] 0.0
          %411 = vst [vmem:[#allocation2 + $0x50] sm:$0xff] 0.0
          %412 = vst [vmem:[#allocation2 + $0x58] sm:$0xff] 0.0
          %413 = vst [vmem:[#allocation2 + $0x60] sm:$0xff] 0.0
          %414 = vst [vmem:[#allocation2 + $0x68] sm:$0xff] 0.0
          %415 = vst [vmem:[#allocation2 + $0x70] sm:$0xff] 0.0
          %416 = vst [vmem:[#allocation2 + $0x78] sm:$0xff] 0.0
          %417 = vst [vmem:[#allocation3] sm:$0xff] 0.0
          %418 = vst [vmem:[#allocation3 + $0x8] sm:$0xff] 0.0
          %419 = vst [vmem:[#allocation3 + $0x10] sm:$0xff] 0.0
          %420 = vst [vmem:[#allocation3 + $0x18] sm:$0xff] 0.0
          %421 = vst [vmem:[#allocation3 + $0x20] sm:$0xff] 0.0
          %422 = vst [vmem:[#allocation3 + $0x28] sm:$0xff] 0.0
          %423 = vst [vmem:[#allocation3 + $0x30] sm:$0xff] 0.0
          %424 = vst [vmem:[#allocation3 + $0x38] sm:$0xff] 0.0
          %425 = vst [vmem:[#allocation3 + $0x40] sm:$0xff] 0.0
          %426 = vst [vmem:[#allocation3 + $0x48] sm:$0xff] 0.0
          %427 = vst [vmem:[#allocation3 + $0x50] sm:$0xff] 0.0
          %428 = vst [vmem:[#allocation3 + $0x58] sm:$0xff] 0.0
          %429 = vst [vmem:[#allocation3 + $0x60] sm:$0xff] 0.0
          %430 = vst [vmem:[#allocation3 + $0x68] sm:$0xff] 0.0
          %431 = vst [vmem:[#allocation3 + $0x70] sm:$0xff] 0.0
          %432 = vst [vmem:[#allocation3 + $0x78] sm:$0xff] 0.0
        $region60: #{tpu_custom_call.1} parent=35 // pred_fallthru
          _
        %v433 = vld [vmem:[%s309] sm:$0xff]
        %v434 = vld [vmem:[%s309 + $0x8] sm:$0xff]
        %v435 = vld [vmem:[%s309 + $0x10] sm:$0xff]
        %v436 = vld [vmem:[%s309 + $0x18] sm:$0xff]
        %v437 = vld [vmem:[%s318] sm:$0xff]
        %v438 = vld [vmem:[%s318 + $0x8] sm:$0xff]
        %v439 = vld [vmem:[%s318 + $0x10] sm:$0xff]
        %v440 = vld [vmem:[%s318 + $0x18] sm:$0xff]
        %v441 = vld [vmem:[%s327] sm:$0xff]
        %v442 = vld [vmem:[%s327 + $0x8] sm:$0xff]
        %v443 = vld [vmem:[%s327 + $0x10] sm:$0xff]
        %v444 = vld [vmem:[%s327 + $0x18] sm:$0xff]
        %v445 = vld [vmem:[%s336] sm:$0xff]
        %v446 = vld [vmem:[%s336 + $0x8] sm:$0xff]
        %v447 = vld [vmem:[%s336 + $0x10] sm:$0xff]
        %v448 = vld [vmem:[%s336 + $0x18] sm:$0xff]
        %v449 = vld [vmem:[#allocation2] sm:$0xff]
        %v450 = vld [vmem:[#allocation2 + $0x8] sm:$0xff]
        %v451 = vld [vmem:[#allocation2 + $0x10] sm:$0xff]
        %v452 = vld [vmem:[#allocation2 + $0x18] sm:$0xff]
        %v453 = vld [vmem:[#allocation2 + $0x20] sm:$0xff]
        %v454 = vld [vmem:[#allocation2 + $0x28] sm:$0xff]
        %v455 = vld [vmem:[#allocation2 + $0x30] sm:$0xff]
        %v456 = vld [vmem:[#allocation2 + $0x38] sm:$0xff]
        %v457 = vld [vmem:[#allocation2 + $0x40] sm:$0xff]
        %v458 = vld [vmem:[#allocation2 + $0x48] sm:$0xff]
        %v459 = vld [vmem:[#allocation2 + $0x50] sm:$0xff]
        %v460 = vld [vmem:[#allocation2 + $0x58] sm:$0xff]
        %v461 = vld [vmem:[#allocation2 + $0x60] sm:$0xff]
        %v462 = vld [vmem:[#allocation2 + $0x68] sm:$0xff]
        %v463 = vld [vmem:[#allocation2 + $0x70] sm:$0xff]
        %v464 = vld [vmem:[#allocation2 + $0x78] sm:$0xff]
        %465 = vxpose.xlu0.b32.start [1/16] %v433, 128
        %466 = vxpose.xlu0.b32.cont [2/16] %v434, 128
        %467 = vxpose.xlu0.b32.cont [3/16] %v435, 128
        %468 = vxpose.xlu0.b32.cont [4/16] %v436, 128
        %469 = vxpose.xlu0.b32.cont [5/16] 0.0, 128
        %470 = vxpose.xlu0.b32.cont [6/16] 0.0, 128
        %471 = vxpose.xlu0.b32.cont [7/16] 0.0, 128
        %472 = vxpose.xlu0.b32.cont [8/16] 0.0, 128
        %473 = vxpose.xlu0.b32.cont [9/16] 0.0, 128
        %474 = vxpose.xlu0.b32.cont [10/16] 0.0, 128
        %475 = vxpose.xlu0.b32.cont [11/16] 0.0, 128
        %476 = vxpose.xlu0.b32.cont [12/16] 0.0, 128
        %477 = vxpose.xlu0.b32.cont [13/16] 0.0, 128
        %478 = vxpose.xlu0.b32.cont [14/16] 0.0, 128
        %479 = vxpose.xlu0.b32.cont [15/16] 0.0, 128
        %480 = vxpose.xlu0.b32.end [16/16] 0.0, 128
        %v481 = vpop.trf.xlu0
        %v482 = vpop.trf.xlu0
        %v483 = vpop.trf.xlu0
        %v484 = vpop.trf.xlu0
        %v485 = vpop.trf.xlu0
        %v486 = vpop.trf.xlu0
        %v487 = vpop.trf.xlu0
        %v488 = vpop.trf.xlu0
        %v489 = vpop.trf.xlu0
        %v490 = vpop.trf.xlu0
        %v491 = vpop.trf.xlu0
        %v492 = vpop.trf.xlu0
        %v493 = vpop.trf.xlu0
        %v494 = vpop.trf.xlu0
        %v495 = vpop.trf.xlu0
        %v496 = vpop.trf.xlu0
        %vm497 = vcmask 261120
        %v499 = vsel %vm497, %v481, 0
        %v502 = vsel %vm497, %v482, 0
        %v505 = vsel %vm497, %v483, 0
        %v508 = vsel %vm497, %v484, 0
        %v511 = vsel %vm497, %v485, 0
        %v514 = vsel %vm497, %v486, 0
        %v517 = vsel %vm497, %v487, 0
        %v520 = vsel %vm497, %v488, 0
        %v523 = vsel %vm497, %v489, 0
        %v526 = vsel %vm497, %v490, 0
        %v529 = vsel %vm497, %v491, 0
        %v532 = vsel %vm497, %v492, 0
        %v535 = vsel %vm497, %v493, 0
        %v538 = vsel %vm497, %v494, 0
        %v541 = vsel %vm497, %v495, 0
        %v544 = vsel %vm497, %v496, 0
        %546 = vmatprep.subr.mxu0 0.0
        %547 = vmatpush1.msra.mxu0 0.0
        %548 = vmatprep.subr.mxu0 0.0
        %549 = vmatpush1.msra.mxu0 0.0
        %550 = vmatprep.subr.mxu0 0.0
        %551 = vmatpush1.msra.mxu0 0.0
        %552 = vmatprep.subr.mxu0 0.0
        %553 = vmatpush1.msra.mxu0 0.0
        %554 = vmatprep.subr.mxu0 0.0
        %555 = vmatpush1.msra.mxu0 0.0
        %556 = vmatprep.subr.mxu0 0.0
        %557 = vmatpush1.msra.mxu0 0.0
        %558 = vmatprep.subr.mxu0 0.0
        %559 = vmatpush1.msra.mxu0 0.0
        %560 = vmatprep.subr.mxu0 0.0
        %561 = vmatpush1.msra.mxu0 0.0
        %562 = vmatprep.subr.mxu0 0.0
        %563 = vmatpush1.msra.mxu0 0.0
        %564 = vmatprep.subr.mxu0 0.0
        %565 = vmatpush1.msra.mxu0 0.0
        %566 = vmatprep.subr.mxu0 0.0
        %567 = vmatpush1.msra.mxu0 0.0
        %568 = vmatprep.subr.mxu0 0.0
        %569 = vmatpush1.msra.mxu0 0.0
        %570 = vmatprep.subr.mxu0 0.0
        %v571 = vand.u32 %v440, 4294901760
        %572 = vmatpush1.msra.mxu0 %v571
        %573 = vmatprep.subr.mxu0 0.0
        %v574 = vand.u32 %v439, 4294901760
        %575 = vmatpush1.msra.mxu0 %v574
        %576 = vmatprep.subr.mxu0 0.0
        %v577 = vand.u32 %v438, 4294901760
        %578 = vmatpush1.msra.mxu0 %v577
        %579 = vmatprep.subr.mxu0 0.0
        %v580 = vand.u32 %v437, 4294901760
        %581 = vmatpush1.msra.mxu0 %v580
        %582 = vmatprep.subr.mxu0 0.0
        %583 = vmatpush2.msra.mxu0 0.0
        %584 = vmatprep.subr.mxu0 0.0
        %585 = vmatpush2.msra.mxu0 0.0
        %586 = vmatprep.subr.mxu0 0.0
        %587 = vmatpush2.msra.mxu0 0.0
        %588 = vmatprep.subr.mxu0 0.0
        %589 = vmatpush2.msra.mxu0 0.0
        %590 = vmatprep.subr.mxu0 0.0
        %591 = vmatpush2.msra.mxu0 0.0
        %592 = vmatprep.subr.mxu0 0.0
        %593 = vmatpush2.msra.mxu0 0.0
        %594 = vmatprep.subr.mxu0 0.0
        %595 = vmatpush2.msra.mxu0 0.0
        %596 = vmatprep.subr.mxu0 0.0
        %597 = vmatpush2.msra.mxu0 0.0
        %598 = vmatprep.subr.mxu0 0.0
        %599 = vmatpush2.msra.mxu0 0.0
        %600 = vmatprep.subr.mxu0 0.0
        %601 = vmatpush2.msra.mxu0 0.0
        %602 = vmatprep.subr.mxu0 0.0
        %603 = vmatpush2.msra.mxu0 0.0
        %604 = vmatprep.subr.mxu0 0.0
        %605 = vmatpush2.msra.mxu0 0.0
        %606 = vmatprep.subr.mxu0 0.0
        %607 = vmatpush2.msra.mxu0 0.0
        %608 = vmatprep.subr.mxu0 0.0
        %609 = vmatpush2.msra.mxu0 0.0
        %610 = vmatprep.subr.mxu0 0.0
        %611 = vmatpush2.msra.mxu0 0.0
        %612 = vmatprep.subr.mxu0 0.0
        %613 = vmatpush2.msra.mxu0 0.0
        %614 = vmatprep.mubr.f32.mxu0 0.0
        %v615 = vand.u32 %v499, 4294901760
        %v616 = vsub.f32 %v499, %v615
        %v617 = vand.u32 %v616, 4294901760
        %v618 = vsub.f32 %v616, %v617
        %v619 = vand.u32 %v618, 4294901760
        %620 = vmatmul.mubr.f32.gmra.mxu0 %v619
        %v621 = vpop.f32.mrf.mxu0
        %v622 = vadd.f32 0.0, %v621
        %v623 = vpop.f32.mrf.mxu0
        %624 = vmatprep.mubr.f32.mxu0 0.0
        %v625 = vand.u32 %v502, 4294901760
        %v626 = vsub.f32 %v502, %v625
        %v627 = vand.u32 %v626, 4294901760
        %v628 = vsub.f32 %v626, %v627
        %v629 = vand.u32 %v628, 4294901760
        %630 = vmatmul.mubr.f32.gmra.mxu0 %v629
        %v631 = vpop.f32.mrf.mxu0
        %v632 = vadd.f32 0.0, %v631
        %v633 = vpop.f32.mrf.mxu0
        %634 = vmatprep.mubr.f32.mxu0 0.0
        %v635 = vand.u32 %v505, 4294901760
        %v636 = vsub.f32 %v505, %v635
        %v637 = vand.u32 %v636, 4294901760
        %v638 = vsub.f32 %v636, %v637
        %v639 = vand.u32 %v638, 4294901760
        %640 = vmatmul.mubr.f32.gmra.mxu0 %v639
        %v641 = vpop.f32.mrf.mxu0
        %v642 = vadd.f32 0.0, %v641
        %v643 = vpop.f32.mrf.mxu0
        %644 = vmatprep.mubr.f32.mxu0 0.0
        %v645 = vand.u32 %v508, 4294901760
        %v646 = vsub.f32 %v508, %v645
        %v647 = vand.u32 %v646, 4294901760
        %v648 = vsub.f32 %v646, %v647
        %v649 = vand.u32 %v648, 4294901760
        %650 = vmatmul.mubr.f32.gmra.mxu0 %v649
        %v651 = vpop.f32.mrf.mxu0
        %v652 = vadd.f32 0.0, %v651
        %v653 = vpop.f32.mrf.mxu0
        %654 = vmatprep.mubr.f32.mxu0 0.0
        %v655 = vand.u32 %v511, 4294901760
        %v656 = vsub.f32 %v511, %v655
        %v657 = vand.u32 %v656, 4294901760
        %v658 = vsub.f32 %v656, %v657
        %v659 = vand.u32 %v658, 4294901760
        %660 = vmatmul.mubr.f32.gmra.mxu0 %v659
        %v661 = vpop.f32.mrf.mxu0
        %v662 = vadd.f32 0.0, %v661
        %v663 = vpop.f32.mrf.mxu0
        %664 = vmatprep.mubr.f32.mxu0 0.0
        %v665 = vand.u32 %v514, 4294901760
        %v666 = vsub.f32 %v514, %v665
        %v667 = vand.u32 %v666, 4294901760
        %v668 = vsub.f32 %v666, %v667
        %v669 = vand.u32 %v668, 4294901760
        %670 = vmatmul.mubr.f32.gmra.mxu0 %v669
        %v671 = vpop.f32.mrf.mxu0
        %v672 = vadd.f32 0.0, %v671
        %v673 = vpop.f32.mrf.mxu0
        %674 = vmatprep.mubr.f32.mxu0 0.0
        %v675 = vand.u32 %v517, 4294901760
        %v676 = vsub.f32 %v517, %v675
        %v677 = vand.u32 %v676, 4294901760
        %v678 = vsub.f32 %v676, %v677
        %v679 = vand.u32 %v678, 4294901760
        %680 = vmatmul.mubr.f32.gmra.mxu0 %v679
        %v681 = vpop.f32.mrf.mxu0
        %v682 = vadd.f32 0.0, %v681
        %v683 = vpop.f32.mrf.mxu0
        %684 = vmatprep.mubr.f32.mxu0 0.0
        %v685 = vand.u32 %v520, 4294901760
        %v686 = vsub.f32 %v520, %v685
        %v687 = vand.u32 %v686, 4294901760
        %v688 = vsub.f32 %v686, %v687
        %v689 = vand.u32 %v688, 4294901760
        %690 = vmatmul.mubr.f32.gmra.mxu0 %v689
        %v691 = vpop.f32.mrf.mxu0
        %v692 = vadd.f32 0.0, %v691
        %v693 = vpop.f32.mrf.mxu0
        %694 = vmatprep.mubr.f32.mxu0 0.0
        %v695 = vand.u32 %v523, 4294901760
        %v696 = vsub.f32 %v523, %v695
        %v697 = vand.u32 %v696, 4294901760
        %v698 = vsub.f32 %v696, %v697
        %v699 = vand.u32 %v698, 4294901760
        %700 = vmatmul.mubr.f32.gmra.mxu0 %v699
        %v701 = vpop.f32.mrf.mxu0
        %v702 = vadd.f32 0.0, %v701
        %v703 = vpop.f32.mrf.mxu0
        %704 = vmatprep.mubr.f32.mxu0 0.0
        %v705 = vand.u32 %v526, 4294901760
        %v706 = vsub.f32 %v526, %v705
        %v707 = vand.u32 %v706, 4294901760
        %v708 = vsub.f32 %v706, %v707
        %v709 = vand.u32 %v708, 4294901760
        %710 = vmatmul.mubr.f32.gmra.mxu0 %v709
        %v711 = vpop.f32.mrf.mxu0
        %v712 = vadd.f32 0.0, %v711
        %v713 = vpop.f32.mrf.mxu0
        %714 = vmatprep.mubr.f32.mxu0 0.0
        %v715 = vand.u32 %v529, 4294901760
        %v716 = vsub.f32 %v529, %v715
        %v717 = vand.u32 %v716, 4294901760
        %v718 = vsub.f32 %v716, %v717
        %v719 = vand.u32 %v718, 4294901760
        %720 = vmatmul.mubr.f32.gmra.mxu0 %v719
        %v721 = vpop.f32.mrf.mxu0
        %v722 = vadd.f32 0.0, %v721
        %v723 = vpop.f32.mrf.mxu0
        %724 = vmatprep.mubr.f32.mxu0 0.0
        %v725 = vand.u32 %v532, 4294901760
        %v726 = vsub.f32 %v532, %v725
        %v727 = vand.u32 %v726, 4294901760
        %v728 = vsub.f32 %v726, %v727
        %v729 = vand.u32 %v728, 4294901760
        %730 = vmatmul.mubr.f32.gmra.mxu0 %v729
        %v731 = vpop.f32.mrf.mxu0
        %v732 = vadd.f32 0.0, %v731
        %v733 = vpop.f32.mrf.mxu0
        %734 = vmatprep.mubr.f32.mxu0 0.0
        %v735 = vand.u32 %v535, 4294901760
        %v736 = vsub.f32 %v535, %v735
        %v737 = vand.u32 %v736, 4294901760
        %v738 = vsub.f32 %v736, %v737
        %v739 = vand.u32 %v738, 4294901760
        %740 = vmatmul.mubr.f32.gmra.mxu0 %v739
        %v741 = vpop.f32.mrf.mxu0
        %v742 = vadd.f32 0.0, %v741
        %v743 = vpop.f32.mrf.mxu0
        %744 = vmatprep.mubr.f32.mxu0 0.0
        %v745 = vand.u32 %v538, 4294901760
        %v746 = vsub.f32 %v538, %v745
        %v747 = vand.u32 %v746, 4294901760
        %v748 = vsub.f32 %v746, %v747
        %v749 = vand.u32 %v748, 4294901760
        %750 = vmatmul.mubr.f32.gmra.mxu0 %v749
        %v751 = vpop.f32.mrf.mxu0
        %v752 = vadd.f32 0.0, %v751
        %v753 = vpop.f32.mrf.mxu0
        %754 = vmatprep.mubr.f32.mxu0 0.0
        %v755 = vand.u32 %v541, 4294901760
        %v756 = vsub.f32 %v541, %v755
        %v757 = vand.u32 %v756, 4294901760
        %v758 = vsub.f32 %v756, %v757
        %v759 = vand.u32 %v758, 4294901760
        %760 = vmatmul.mubr.f32.gmra.mxu0 %v759
        %v761 = vpop.f32.mrf.mxu0
        %v762 = vadd.f32 0.0, %v761
        %v763 = vpop.f32.mrf.mxu0
        %764 = vmatprep.mubr.f32.mxu0 0.0
        %v765 = vand.u32 %v544, 4294901760
        %v766 = vsub.f32 %v544, %v765
        %v767 = vand.u32 %v766, 4294901760
        %v768 = vsub.f32 %v766, %v767
        %v769 = vand.u32 %v768, 4294901760
        %770 = vmatmul.mubr.f32.gmra.mxu0 %v769
        %v771 = vpop.f32.mrf.mxu0
        %v772 = vadd.f32 0.0, %v771
        %v773 = vpop.f32.mrf.mxu0
        %774 = vdwg.mxu0
        %775 = vmatprep.subr.mxu0 0.0
        %776 = vmatpush1.msra.mxu0 0.0
        %777 = vmatprep.subr.mxu0 0.0
        %778 = vmatpush1.msra.mxu0 0.0
        %779 = vmatprep.subr.mxu0 0.0
        %780 = vmatpush1.msra.mxu0 0.0
        %781 = vmatprep.subr.mxu0 0.0
        %782 = vmatpush1.msra.mxu0 0.0
        %783 = vmatprep.subr.mxu0 0.0
        %784 = vmatpush1.msra.mxu0 0.0
        %785 = vmatprep.subr.mxu0 0.0
        %786 = vmatpush1.msra.mxu0 0.0
        %787 = vmatprep.subr.mxu0 0.0
        %788 = vmatpush1.msra.mxu0 0.0
        %789 = vmatprep.subr.mxu0 0.0
        %790 = vmatpush1.msra.mxu0 0.0
        %791 = vmatprep.subr.mxu0 0.0
        %792 = vmatpush1.msra.mxu0 0.0
        %793 = vmatprep.subr.mxu0 0.0
        %794 = vmatpush1.msra.mxu0 0.0
        %795 = vmatprep.subr.mxu0 0.0
        %796 = vmatpush1.msra.mxu0 0.0
        %797 = vmatprep.subr.mxu0 0.0
        %798 = vmatpush1.msra.mxu0 0.0
        %799 = vmatprep.subr.mxu0 0.0
        %v800 = vand.u32 %v440, 4294901760
        %v801 = vsub.f32 %v440, %v800
        %v802 = vand.u32 %v801, 4294901760
        %v803 = vsub.f32 %v801, %v802
        %v804 = vand.u32 %v803, 4294901760
        %805 = vmatpush1.msra.mxu0 %v804
        %806 = vmatprep.subr.mxu0 0.0
        %v807 = vand.u32 %v439, 4294901760
        %v808 = vsub.f32 %v439, %v807
        %v809 = vand.u32 %v808, 4294901760
        %v810 = vsub.f32 %v808, %v809
        %v811 = vand.u32 %v810, 4294901760
        %812 = vmatpush1.msra.mxu0 %v811
        %813 = vmatprep.subr.mxu0 0.0
        %v814 = vand.u32 %v438, 4294901760
        %v815 = vsub.f32 %v438, %v814
        %v816 = vand.u32 %v815, 4294901760
        %v817 = vsub.f32 %v815, %v816
        %v818 = vand.u32 %v817, 4294901760
        %819 = vmatpush1.msra.mxu0 %v818
        %820 = vmatprep.subr.mxu0 0.0
        %v821 = vand.u32 %v437, 4294901760
        %v822 = vsub.f32 %v437, %v821
        %v823 = vand.u32 %v822, 4294901760
        %v824 = vsub.f32 %v822, %v823
        %v825 = vand.u32 %v824, 4294901760
        %826 = vmatpush1.msra.mxu0 %v825
        %827 = vmatprep.subr.mxu0 0.0
        %828 = vmatpush2.msra.mxu0 0.0
        %829 = vmatprep.subr.mxu0 0.0
        %830 = vmatpush2.msra.mxu0 0.0
        %831 = vmatprep.subr.mxu0 0.0
        %832 = vmatpush2.msra.mxu0 0.0
        %833 = vmatprep.subr.mxu0 0.0
        %834 = vmatpush2.msra.mxu0 0.0
        %835 = vmatprep.subr.mxu0 0.0
        %836 = vmatpush2.msra.mxu0 0.0
        %837 = vmatprep.subr.mxu0 0.0
        %838 = vmatpush2.msra.mxu0 0.0
        %839 = vmatprep.subr.mxu0 0.0
        %840 = vmatpush2.msra.mxu0 0.0
        %841 = vmatprep.subr.mxu0 0.0
        %842 = vmatpush2.msra.mxu0 0.0
        %843 = vmatprep.subr.mxu0 0.0
        %844 = vmatpush2.msra.mxu0 0.0
        %845 = vmatprep.subr.mxu0 0.0
        %846 = vmatpush2.msra.mxu0 0.0
        %847 = vmatprep.subr.mxu0 0.0
        %848 = vmatpush2.msra.mxu0 0.0
        %849 = vmatprep.subr.mxu0 0.0
        %850 = vmatpush2.msra.mxu0 0.0
        %851 = vmatprep.subr.mxu0 0.0
        %852 = vmatpush2.msra.mxu0 0.0
        %853 = vmatprep.subr.mxu0 0.0
        %854 = vmatpush2.msra.mxu0 0.0
        %855 = vmatprep.subr.mxu0 0.0
        %856 = vmatpush2.msra.mxu0 0.0
        %857 = vmatprep.subr.mxu0 0.0
        %858 = vmatpush2.msra.mxu0 0.0
        %859 = vmatprep.mubr.f32.mxu0 0.0
        %v860 = vand.u32 %v499, 4294901760
        %861 = vmatmul.mubr.f32.gmra.mxu0 %v860
        %v862 = vpop.f32.mrf.mxu0
        %v863 = vadd.f32 %v622, %v862
        %v864 = vpop.f32.mrf.mxu0
        %865 = vmatprep.mubr.f32.mxu0 0.0
        %v866 = vand.u32 %v502, 4294901760
        %867 = vmatmul.mubr.f32.gmra.mxu0 %v866
        %v868 = vpop.f32.mrf.mxu0
        %v869 = vadd.f32 %v632, %v868
        %v870 = vpop.f32.mrf.mxu0
        %871 = vmatprep.mubr.f32.mxu0 0.0
        %v872 = vand.u32 %v505, 4294901760
        %873 = vmatmul.mubr.f32.gmra.mxu0 %v872
        %v874 = vpop.f32.mrf.mxu0
        %v875 = vadd.f32 %v642, %v874
        %v876 = vpop.f32.mrf.mxu0
        %877 = vmatprep.mubr.f32.mxu0 0.0
        %v878 = vand.u32 %v508, 4294901760
        %879 = vmatmul.mubr.f32.gmra.mxu0 %v878
        %v880 = vpop.f32.mrf.mxu0
        %v881 = vadd.f32 %v652, %v880
        %v882 = vpop.f32.mrf.mxu0
        %883 = vmatprep.mubr.f32.mxu0 0.0
        %v884 = vand.u32 %v511, 4294901760
        %885 = vmatmul.mubr.f32.gmra.mxu0 %v884
        %v886 = vpop.f32.mrf.mxu0
        %v887 = vadd.f32 %v662, %v886
        %v888 = vpop.f32.mrf.mxu0
        %889 = vmatprep.mubr.f32.mxu0 0.0
        %v890 = vand.u32 %v514, 4294901760
        %891 = vmatmul.mubr.f32.gmra.mxu0 %v890
        %v892 = vpop.f32.mrf.mxu0
        %v893 = vadd.f32 %v672, %v892
        %v894 = vpop.f32.mrf.mxu0
        %895 = vmatprep.mubr.f32.mxu0 0.0
        %v896 = vand.u32 %v517, 4294901760
        %897 = vmatmul.mubr.f32.gmra.mxu0 %v896
        %v898 = vpop.f32.mrf.mxu0
        %v899 = vadd.f32 %v682, %v898
        %v900 = vpop.f32.mrf.mxu0
        %901 = vmatprep.mubr.f32.mxu0 0.0
        %v902 = vand.u32 %v520, 4294901760
        %903 = vmatmul.mubr.f32.gmra.mxu0 %v902
        %v904 = vpop.f32.mrf.mxu0
        %v905 = vadd.f32 %v692, %v904
        %v906 = vpop.f32.mrf.mxu0
        %907 = vmatprep.mubr.f32.mxu0 0.0
        %v908 = vand.u32 %v523, 4294901760
        %909 = vmatmul.mubr.f32.gmra.mxu0 %v908
        %v910 = vpop.f32.mrf.mxu0
        %v911 = vadd.f32 %v702, %v910
        %v912 = vpop.f32.mrf.mxu0
        %913 = vmatprep.mubr.f32.mxu0 0.0
        %v914 = vand.u32 %v526, 4294901760
        %915 = vmatmul.mubr.f32.gmra.mxu0 %v914
        %v916 = vpop.f32.mrf.mxu0
        %v917 = vadd.f32 %v712, %v916
        %v918 = vpop.f32.mrf.mxu0
        %919 = vmatprep.mubr.f32.mxu0 0.0
        %v920 = vand.u32 %v529, 4294901760
        %921 = vmatmul.mubr.f32.gmra.mxu0 %v920
        %v922 = vpop.f32.mrf.mxu0
        %v923 = vadd.f32 %v722, %v922
        %v924 = vpop.f32.mrf.mxu0
        %925 = vmatprep.mubr.f32.mxu0 0.0
        %v926 = vand.u32 %v532, 4294901760
        %927 = vmatmul.mubr.f32.gmra.mxu0 %v926
        %v928 = vpop.f32.mrf.mxu0
        %v929 = vadd.f32 %v732, %v928
        %v930 = vpop.f32.mrf.mxu0
        %931 = vmatprep.mubr.f32.mxu0 0.0
        %v932 = vand.u32 %v535, 4294901760
        %933 = vmatmul.mubr.f32.gmra.mxu0 %v932
        %v934 = vpop.f32.mrf.mxu0
        %v935 = vadd.f32 %v742, %v934
        %v936 = vpop.f32.mrf.mxu0
        %937 = vmatprep.mubr.f32.mxu0 0.0
        %v938 = vand.u32 %v538, 4294901760
        %939 = vmatmul.mubr.f32.gmra.mxu0 %v938
        %v940 = vpop.f32.mrf.mxu0
        %v941 = vadd.f32 %v752, %v940
        %v942 = vpop.f32.mrf.mxu0
        %943 = vmatprep.mubr.f32.mxu0 0.0
        %v944 = vand.u32 %v541, 4294901760
        %945 = vmatmul.mubr.f32.gmra.mxu0 %v944
        %v946 = vpop.f32.mrf.mxu0
        %v947 = vadd.f32 %v762, %v946
        %v948 = vpop.f32.mrf.mxu0
        %949 = vmatprep.mubr.f32.mxu0 0.0
        %v950 = vand.u32 %v544, 4294901760
        %951 = vmatmul.mubr.f32.gmra.mxu0 %v950
        %v952 = vpop.f32.mrf.mxu0
        %v953 = vadd.f32 %v772, %v952
        %v954 = vpop.f32.mrf.mxu0
        %955 = vdwg.mxu0
        %956 = vmatprep.subr.mxu0 0.0
        %957 = vmatpush1.msra.mxu0 0.0
        %958 = vmatprep.subr.mxu0 0.0
        %959 = vmatpush1.msra.mxu0 0.0
        %960 = vmatprep.subr.mxu0 0.0
        %961 = vmatpush1.msra.mxu0 0.0
        %962 = vmatprep.subr.mxu0 0.0
        %963 = vmatpush1.msra.mxu0 0.0
        %964 = vmatprep.subr.mxu0 0.0
        %965 = vmatpush1.msra.mxu0 0.0
        %966 = vmatprep.subr.mxu0 0.0
        %967 = vmatpush1.msra.mxu0 0.0
        %968 = vmatprep.subr.mxu0 0.0
        %969 = vmatpush1.msra.mxu0 0.0
        %970 = vmatprep.subr.mxu0 0.0
        %971 = vmatpush1.msra.mxu0 0.0
        %972 = vmatprep.subr.mxu0 0.0
        %973 = vmatpush1.msra.mxu0 0.0
        %974 = vmatprep.subr.mxu0 0.0
        %975 = vmatpush1.msra.mxu0 0.0
        %976 = vmatprep.subr.mxu0 0.0
        %977 = vmatpush1.msra.mxu0 0.0
        %978 = vmatprep.subr.mxu0 0.0
        %979 = vmatpush1.msra.mxu0 0.0
        %980 = vmatprep.subr.mxu0 0.0
        %v981 = vand.u32 %v440, 4294901760
        %v982 = vsub.f32 %v440, %v981
        %983 = vmatpush1.msra.mxu0 %v982
        %984 = vmatprep.subr.mxu0 0.0
        %v985 = vand.u32 %v439, 4294901760
        %v986 = vsub.f32 %v439, %v985
        %987 = vmatpush1.msra.mxu0 %v986
        %988 = vmatprep.subr.mxu0 0.0
        %v989 = vand.u32 %v438, 4294901760
        %v990 = vsub.f32 %v438, %v989
        %991 = vmatpush1.msra.mxu0 %v990
        %992 = vmatprep.subr.mxu0 0.0
        %v993 = vand.u32 %v437, 4294901760
        %v994 = vsub.f32 %v437, %v993
        %995 = vmatpush1.msra.mxu0 %v994
        %996 = vmatprep.subr.mxu0 0.0
        %997 = vmatpush2.msra.mxu0 0.0
        %998 = vmatprep.subr.mxu0 0.0
        %999 = vmatpush2.msra.mxu0 0.0
        %1000 = vmatprep.subr.mxu0 0.0
        %1001 = vmatpush2.msra.mxu0 0.0
        %1002 = vmatprep.subr.mxu0 0.0
        %1003 = vmatpush2.msra.mxu0 0.0
        %1004 = vmatprep.subr.mxu0 0.0
        %1005 = vmatpush2.msra.mxu0 0.0
        %1006 = vmatprep.subr.mxu0 0.0
        %1007 = vmatpush2.msra.mxu0 0.0
        %1008 = vmatprep.subr.mxu0 0.0
        %1009 = vmatpush2.msra.mxu0 0.0
        %1010 = vmatprep.subr.mxu0 0.0
        %1011 = vmatpush2.msra.mxu0 0.0
        %1012 = vmatprep.subr.mxu0 0.0
        %1013 = vmatpush2.msra.mxu0 0.0
        %1014 = vmatprep.subr.mxu0 0.0
        %1015 = vmatpush2.msra.mxu0 0.0
        %1016 = vmatprep.subr.mxu0 0.0
        %1017 = vmatpush2.msra.mxu0 0.0
        %1018 = vmatprep.subr.mxu0 0.0
        %1019 = vmatpush2.msra.mxu0 0.0
        %1020 = vmatprep.subr.mxu0 0.0
        %1021 = vmatpush2.msra.mxu0 0.0
        %1022 = vmatprep.subr.mxu0 0.0
        %1023 = vmatpush2.msra.mxu0 0.0
        %1024 = vmatprep.subr.mxu0 0.0
        %1025 = vmatpush2.msra.mxu0 0.0
        %1026 = vmatprep.subr.mxu0 0.0
        %1027 = vmatpush2.msra.mxu0 0.0
        %1028 = vmatprep.mubr.f32.mxu0 0.0
        %v1029 = vand.u32 %v499, 4294901760
        %v1030 = vsub.f32 %v499, %v1029
        %1031 = vmatmul.mubr.f32.gmra.mxu0 %v1030
        %v1032 = vpop.f32.mrf.mxu0
        %v1033 = vadd.f32 %v863, %v1032
        %v1034 = vpop.f32.mrf.mxu0
        %1035 = vmatprep.mubr.f32.mxu0 0.0
        %v1036 = vand.u32 %v502, 4294901760
        %v1037 = vsub.f32 %v502, %v1036
        %1038 = vmatmul.mubr.f32.gmra.mxu0 %v1037
        %v1039 = vpop.f32.mrf.mxu0
        %v1040 = vadd.f32 %v869, %v1039
        %v1041 = vpop.f32.mrf.mxu0
        %1042 = vmatprep.mubr.f32.mxu0 0.0
        %v1043 = vand.u32 %v505, 4294901760
        %v1044 = vsub.f32 %v505, %v1043
        %1045 = vmatmul.mubr.f32.gmra.mxu0 %v1044
        %v1046 = vpop.f32.mrf.mxu0
        %v1047 = vadd.f32 %v875, %v1046
        %v1048 = vpop.f32.mrf.mxu0
        %1049 = vmatprep.mubr.f32.mxu0 0.0
        %v1050 = vand.u32 %v508, 4294901760
        %v1051 = vsub.f32 %v508, %v1050
        %1052 = vmatmul.mubr.f32.gmra.mxu0 %v1051
        %v1053 = vpop.f32.mrf.mxu0
        %v1054 = vadd.f32 %v881, %v1053
        %v1055 = vpop.f32.mrf.mxu0
        %1056 = vmatprep.mubr.f32.mxu0 0.0
        %v1057 = vand.u32 %v511, 4294901760
        %v1058 = vsub.f32 %v511, %v1057
        %1059 = vmatmul.mubr.f32.gmra.mxu0 %v1058
        %v1060 = vpop.f32.mrf.mxu0
        %v1061 = vadd.f32 %v887, %v1060
        %v1062 = vpop.f32.mrf.mxu0
        %1063 = vmatprep.mubr.f32.mxu0 0.0
        %v1064 = vand.u32 %v514, 4294901760
        %v1065 = vsub.f32 %v514, %v1064
        %1066 = vmatmul.mubr.f32.gmra.mxu0 %v1065
        %v1067 = vpop.f32.mrf.mxu0
        %v1068 = vadd.f32 %v893, %v1067
        %v1069 = vpop.f32.mrf.mxu0
        %1070 = vmatprep.mubr.f32.mxu0 0.0
        %v1071 = vand.u32 %v517, 4294901760
        %v1072 = vsub.f32 %v517, %v1071
        %1073 = vmatmul.mubr.f32.gmra.mxu0 %v1072
        %v1074 = vpop.f32.mrf.mxu0
        %v1075 = vadd.f32 %v899, %v1074
        %v1076 = vpop.f32.mrf.mxu0
        %1077 = vmatprep.mubr.f32.mxu0 0.0
        %v1078 = vand.u32 %v520, 4294901760
        %v1079 = vsub.f32 %v520, %v1078
        %1080 = vmatmul.mubr.f32.gmra.mxu0 %v1079
        %v1081 = vpop.f32.mrf.mxu0
        %v1082 = vadd.f32 %v905, %v1081
        %v1083 = vpop.f32.mrf.mxu0
        %1084 = vmatprep.mubr.f32.mxu0 0.0
        %v1085 = vand.u32 %v523, 4294901760
        %v1086 = vsub.f32 %v523, %v1085
        %1087 = vmatmul.mubr.f32.gmra.mxu0 %v1086
        %v1088 = vpop.f32.mrf.mxu0
        %v1089 = vadd.f32 %v911, %v1088
        %v1090 = vpop.f32.mrf.mxu0
        %1091 = vmatprep.mubr.f32.mxu0 0.0
        %v1092 = vand.u32 %v526, 4294901760
        %v1093 = vsub.f32 %v526, %v1092
        %1094 = vmatmul.mubr.f32.gmra.mxu0 %v1093
        %v1095 = vpop.f32.mrf.mxu0
        %v1096 = vadd.f32 %v917, %v1095
        %v1097 = vpop.f32.mrf.mxu0
        %1098 = vmatprep.mubr.f32.mxu0 0.0
        %v1099 = vand.u32 %v529, 4294901760
        %v1100 = vsub.f32 %v529, %v1099
        %1101 = vmatmul.mubr.f32.gmra.mxu0 %v1100
        %v1102 = vpop.f32.mrf.mxu0
        %v1103 = vadd.f32 %v923, %v1102
        %v1104 = vpop.f32.mrf.mxu0
        %1105 = vmatprep.mubr.f32.mxu0 0.0
        %v1106 = vand.u32 %v532, 4294901760
        %v1107 = vsub.f32 %v532, %v1106
        %1108 = vmatmul.mubr.f32.gmra.mxu0 %v1107
        %v1109 = vpop.f32.mrf.mxu0
        %v1110 = vadd.f32 %v929, %v1109
        %v1111 = vpop.f32.mrf.mxu0
        %1112 = vmatprep.mubr.f32.mxu0 0.0
        %v1113 = vand.u32 %v535, 4294901760
        %v1114 = vsub.f32 %v535, %v1113
        %1115 = vmatmul.mubr.f32.gmra.mxu0 %v1114
        %v1116 = vpop.f32.mrf.mxu0
        %v1117 = vadd.f32 %v935, %v1116
        %v1118 = vpop.f32.mrf.mxu0
        %1119 = vmatprep.mubr.f32.mxu0 0.0
        %v1120 = vand.u32 %v538, 4294901760
        %v1121 = vsub.f32 %v538, %v1120
        %1122 = vmatmul.mubr.f32.gmra.mxu0 %v1121
        %v1123 = vpop.f32.mrf.mxu0
        %v1124 = vadd.f32 %v941, %v1123
        %v1125 = vpop.f32.mrf.mxu0
        %1126 = vmatprep.mubr.f32.mxu0 0.0
        %v1127 = vand.u32 %v541, 4294901760
        %v1128 = vsub.f32 %v541, %v1127
        %1129 = vmatmul.mubr.f32.gmra.mxu0 %v1128
        %v1130 = vpop.f32.mrf.mxu0
        %v1131 = vadd.f32 %v947, %v1130
        %v1132 = vpop.f32.mrf.mxu0
        %1133 = vmatprep.mubr.f32.mxu0 0.0
        %v1134 = vand.u32 %v544, 4294901760
        %v1135 = vsub.f32 %v544, %v1134
        %1136 = vmatmul.mubr.f32.gmra.mxu0 %v1135
        %v1137 = vpop.f32.mrf.mxu0
        %v1138 = vadd.f32 %v953, %v1137
        %v1139 = vpop.f32.mrf.mxu0
        %1140 = vdwg.mxu0
        %1141 = vmatprep.subr.mxu0 0.0
        %1142 = vmatpush1.msra.mxu0 0.0
        %1143 = vmatprep.subr.mxu0 0.0
        %1144 = vmatpush1.msra.mxu0 0.0
        %1145 = vmatprep.subr.mxu0 0.0
        %1146 = vmatpush1.msra.mxu0 0.0
        %1147 = vmatprep.subr.mxu0 0.0
        %1148 = vmatpush1.msra.mxu0 0.0
        %1149 = vmatprep.subr.mxu0 0.0
        %1150 = vmatpush1.msra.mxu0 0.0
        %1151 = vmatprep.subr.mxu0 0.0
        %1152 = vmatpush1.msra.mxu0 0.0
        %1153 = vmatprep.subr.mxu0 0.0
        %1154 = vmatpush1.msra.mxu0 0.0
        %1155 = vmatprep.subr.mxu0 0.0
        %1156 = vmatpush1.msra.mxu0 0.0
        %1157 = vmatprep.subr.mxu0 0.0
        %1158 = vmatpush1.msra.mxu0 0.0
        %1159 = vmatprep.subr.mxu0 0.0
        %1160 = vmatpush1.msra.mxu0 0.0
        %1161 = vmatprep.subr.mxu0 0.0
        %1162 = vmatpush1.msra.mxu0 0.0
        %1163 = vmatprep.subr.mxu0 0.0
        %1164 = vmatpush1.msra.mxu0 0.0
        %1165 = vmatprep.subr.mxu0 0.0
        %v1166 = vand.u32 %v440, 4294901760
        %1167 = vmatpush1.msra.mxu0 %v1166
        %1168 = vmatprep.subr.mxu0 0.0
        %v1169 = vand.u32 %v439, 4294901760
        %1170 = vmatpush1.msra.mxu0 %v1169
        %1171 = vmatprep.subr.mxu0 0.0
        %v1172 = vand.u32 %v438, 4294901760
        %1173 = vmatpush1.msra.mxu0 %v1172
        %1174 = vmatprep.subr.mxu0 0.0
        %v1175 = vand.u32 %v437, 4294901760
        %1176 = vmatpush1.msra.mxu0 %v1175
        %1177 = vmatprep.subr.mxu0 0.0
        %1178 = vmatpush2.msra.mxu0 0.0
        %1179 = vmatprep.subr.mxu0 0.0
        %1180 = vmatpush2.msra.mxu0 0.0
        %1181 = vmatprep.subr.mxu0 0.0
        %1182 = vmatpush2.msra.mxu0 0.0
        %1183 = vmatprep.subr.mxu0 0.0
        %1184 = vmatpush2.msra.mxu0 0.0
        %1185 = vmatprep.subr.mxu0 0.0
        %1186 = vmatpush2.msra.mxu0 0.0
        %1187 = vmatprep.subr.mxu0 0.0
        %1188 = vmatpush2.msra.mxu0 0.0
        %1189 = vmatprep.subr.mxu0 0.0
        %1190 = vmatpush2.msra.mxu0 0.0
        %1191 = vmatprep.subr.mxu0 0.0
        %1192 = vmatpush2.msra.mxu0 0.0
        %1193 = vmatprep.subr.mxu0 0.0
        %1194 = vmatpush2.msra.mxu0 0.0
        %1195 = vmatprep.subr.mxu0 0.0
        %1196 = vmatpush2.msra.mxu0 0.0
        %1197 = vmatprep.subr.mxu0 0.0
        %1198 = vmatpush2.msra.mxu0 0.0
        %1199 = vmatprep.subr.mxu0 0.0
        %1200 = vmatpush2.msra.mxu0 0.0
        %1201 = vmatprep.subr.mxu0 0.0
        %1202 = vmatpush2.msra.mxu0 0.0
        %1203 = vmatprep.subr.mxu0 0.0
        %1204 = vmatpush2.msra.mxu0 0.0
        %1205 = vmatprep.subr.mxu0 0.0
        %1206 = vmatpush2.msra.mxu0 0.0
        %1207 = vmatprep.subr.mxu0 0.0
        %1208 = vmatpush2.msra.mxu0 0.0
        %1209 = vmatprep.mubr.f32.mxu0 0.0
        %v1210 = vand.u32 %v499, 4294901760
        %v1211 = vsub.f32 %v499, %v1210
        %v1212 = vand.u32 %v1211, 4294901760
        %1213 = vmatmul.mubr.f32.gmra.mxu0 %v1212
        %v1214 = vpop.f32.mrf.mxu0
        %v1215 = vadd.f32 %v1033, %v1214
        %v1216 = vpop.f32.mrf.mxu0
        %1217 = vmatprep.mubr.f32.mxu0 0.0
        %v1218 = vand.u32 %v502, 4294901760
        %v1219 = vsub.f32 %v502, %v1218
        %v1220 = vand.u32 %v1219, 4294901760
        %1221 = vmatmul.mubr.f32.gmra.mxu0 %v1220
        %v1222 = vpop.f32.mrf.mxu0
        %v1223 = vadd.f32 %v1040, %v1222
        %v1224 = vpop.f32.mrf.mxu0
        %1225 = vmatprep.mubr.f32.mxu0 0.0
        %v1226 = vand.u32 %v505, 4294901760
        %v1227 = vsub.f32 %v505, %v1226
        %v1228 = vand.u32 %v1227, 4294901760
        %1229 = vmatmul.mubr.f32.gmra.mxu0 %v1228
        %v1230 = vpop.f32.mrf.mxu0
        %v1231 = vadd.f32 %v1047, %v1230
        %v1232 = vpop.f32.mrf.mxu0
        %1233 = vmatprep.mubr.f32.mxu0 0.0
        %v1234 = vand.u32 %v508, 4294901760
        %v1235 = vsub.f32 %v508, %v1234
        %v1236 = vand.u32 %v1235, 4294901760
        %1237 = vmatmul.mubr.f32.gmra.mxu0 %v1236
        %v1238 = vpop.f32.mrf.mxu0
        %v1239 = vadd.f32 %v1054, %v1238
        %v1240 = vpop.f32.mrf.mxu0
        %1241 = vmatprep.mubr.f32.mxu0 0.0
        %v1242 = vand.u32 %v511, 4294901760
        %v1243 = vsub.f32 %v511, %v1242
        %v1244 = vand.u32 %v1243, 4294901760
        %1245 = vmatmul.mubr.f32.gmra.mxu0 %v1244
        %v1246 = vpop.f32.mrf.mxu0
        %v1247 = vadd.f32 %v1061, %v1246
        %v1248 = vpop.f32.mrf.mxu0
        %1249 = vmatprep.mubr.f32.mxu0 0.0
        %v1250 = vand.u32 %v514, 4294901760
        %v1251 = vsub.f32 %v514, %v1250
        %v1252 = vand.u32 %v1251, 4294901760
        %1253 = vmatmul.mubr.f32.gmra.mxu0 %v1252
        %v1254 = vpop.f32.mrf.mxu0
        %v1255 = vadd.f32 %v1068, %v1254
        %v1256 = vpop.f32.mrf.mxu0
        %1257 = vmatprep.mubr.f32.mxu0 0.0
        %v1258 = vand.u32 %v517, 4294901760
        %v1259 = vsub.f32 %v517, %v1258
        %v1260 = vand.u32 %v1259, 4294901760
        %1261 = vmatmul.mubr.f32.gmra.mxu0 %v1260
        %v1262 = vpop.f32.mrf.mxu0
        %v1263 = vadd.f32 %v1075, %v1262
        %v1264 = vpop.f32.mrf.mxu0
        %1265 = vmatprep.mubr.f32.mxu0 0.0
        %v1266 = vand.u32 %v520, 4294901760
        %v1267 = vsub.f32 %v520, %v1266
        %v1268 = vand.u32 %v1267, 4294901760
        %1269 = vmatmul.mubr.f32.gmra.mxu0 %v1268
        %v1270 = vpop.f32.mrf.mxu0
        %v1271 = vadd.f32 %v1082, %v1270
        %v1272 = vpop.f32.mrf.mxu0
        %1273 = vmatprep.mubr.f32.mxu0 0.0
        %v1274 = vand.u32 %v523, 4294901760
        %v1275 = vsub.f32 %v523, %v1274
        %v1276 = vand.u32 %v1275, 4294901760
        %1277 = vmatmul.mubr.f32.gmra.mxu0 %v1276
        %v1278 = vpop.f32.mrf.mxu0
        %v1279 = vadd.f32 %v1089, %v1278
        %v1280 = vpop.f32.mrf.mxu0
        %1281 = vmatprep.mubr.f32.mxu0 0.0
        %v1282 = vand.u32 %v526, 4294901760
        %v1283 = vsub.f32 %v526, %v1282
        %v1284 = vand.u32 %v1283, 4294901760
        %1285 = vmatmul.mubr.f32.gmra.mxu0 %v1284
        %v1286 = vpop.f32.mrf.mxu0
        %v1287 = vadd.f32 %v1096, %v1286
        %v1288 = vpop.f32.mrf.mxu0
        %1289 = vmatprep.mubr.f32.mxu0 0.0
        %v1290 = vand.u32 %v529, 4294901760
        %v1291 = vsub.f32 %v529, %v1290
        %v1292 = vand.u32 %v1291, 4294901760
        %1293 = vmatmul.mubr.f32.gmra.mxu0 %v1292
        %v1294 = vpop.f32.mrf.mxu0
        %v1295 = vadd.f32 %v1103, %v1294
        %v1296 = vpop.f32.mrf.mxu0
        %1297 = vmatprep.mubr.f32.mxu0 0.0
        %v1298 = vand.u32 %v532, 4294901760
        %v1299 = vsub.f32 %v532, %v1298
        %v1300 = vand.u32 %v1299, 4294901760
        %1301 = vmatmul.mubr.f32.gmra.mxu0 %v1300
        %v1302 = vpop.f32.mrf.mxu0
        %v1303 = vadd.f32 %v1110, %v1302
        %v1304 = vpop.f32.mrf.mxu0
        %1305 = vmatprep.mubr.f32.mxu0 0.0
        %v1306 = vand.u32 %v535, 4294901760
        %v1307 = vsub.f32 %v535, %v1306
        %v1308 = vand.u32 %v1307, 4294901760
        %1309 = vmatmul.mubr.f32.gmra.mxu0 %v1308
        %v1310 = vpop.f32.mrf.mxu0
        %v1311 = vadd.f32 %v1117, %v1310
        %v1312 = vpop.f32.mrf.mxu0
        %1313 = vmatprep.mubr.f32.mxu0 0.0
        %v1314 = vand.u32 %v538, 4294901760
        %v1315 = vsub.f32 %v538, %v1314
        %v1316 = vand.u32 %v1315, 4294901760
        %1317 = vmatmul.mubr.f32.gmra.mxu0 %v1316
        %v1318 = vpop.f32.mrf.mxu0
        %v1319 = vadd.f32 %v1124, %v1318
        %v1320 = vpop.f32.mrf.mxu0
        %1321 = vmatprep.mubr.f32.mxu0 0.0
        %v1322 = vand.u32 %v541, 4294901760
        %v1323 = vsub.f32 %v541, %v1322
        %v1324 = vand.u32 %v1323, 4294901760
        %1325 = vmatmul.mubr.f32.gmra.mxu0 %v1324
        %v1326 = vpop.f32.mrf.mxu0
        %v1327 = vadd.f32 %v1131, %v1326
        %v1328 = vpop.f32.mrf.mxu0
        %1329 = vmatprep.mubr.f32.mxu0 0.0
        %v1330 = vand.u32 %v544, 4294901760
        %v1331 = vsub.f32 %v544, %v1330
        %v1332 = vand.u32 %v1331, 4294901760
        %1333 = vmatmul.mubr.f32.gmra.mxu0 %v1332
        %v1334 = vpop.f32.mrf.mxu0
        %v1335 = vadd.f32 %v1138, %v1334
        %v1336 = vpop.f32.mrf.mxu0
        %1337 = vdwg.mxu0
        %1338 = vmatprep.subr.mxu0 0.0
        %1339 = vmatpush1.msra.mxu0 0.0
        %1340 = vmatprep.subr.mxu0 0.0
        %1341 = vmatpush1.msra.mxu0 0.0
        %1342 = vmatprep.subr.mxu0 0.0
        %1343 = vmatpush1.msra.mxu0 0.0
        %1344 = vmatprep.subr.mxu0 0.0
        %1345 = vmatpush1.msra.mxu0 0.0
        %1346 = vmatprep.subr.mxu0 0.0
        %1347 = vmatpush1.msra.mxu0 0.0
        %1348 = vmatprep.subr.mxu0 0.0
        %1349 = vmatpush1.msra.mxu0 0.0
        %1350 = vmatprep.subr.mxu0 0.0
        %1351 = vmatpush1.msra.mxu0 0.0
        %1352 = vmatprep.subr.mxu0 0.0
        %1353 = vmatpush1.msra.mxu0 0.0
        %1354 = vmatprep.subr.mxu0 0.0
        %1355 = vmatpush1.msra.mxu0 0.0
        %1356 = vmatprep.subr.mxu0 0.0
        %1357 = vmatpush1.msra.mxu0 0.0
        %1358 = vmatprep.subr.mxu0 0.0
        %1359 = vmatpush1.msra.mxu0 0.0
        %1360 = vmatprep.subr.mxu0 0.0
        %1361 = vmatpush1.msra.mxu0 0.0
        %1362 = vmatprep.subr.mxu0 0.0
        %v1363 = vand.u32 %v440, 4294901760
        %v1364 = vsub.f32 %v440, %v1363
        %v1365 = vand.u32 %v1364, 4294901760
        %1366 = vmatpush1.msra.mxu0 %v1365
        %1367 = vmatprep.subr.mxu0 0.0
        %v1368 = vand.u32 %v439, 4294901760
        %v1369 = vsub.f32 %v439, %v1368
        %v1370 = vand.u32 %v1369, 4294901760
        %1371 = vmatpush1.msra.mxu0 %v1370
        %1372 = vmatprep.subr.mxu0 0.0
        %v1373 = vand.u32 %v438, 4294901760
        %v1374 = vsub.f32 %v438, %v1373
        %v1375 = vand.u32 %v1374, 4294901760
        %1376 = vmatpush1.msra.mxu0 %v1375
        %1377 = vmatprep.subr.mxu0 0.0
        %v1378 = vand.u32 %v437, 4294901760
        %v1379 = vsub.f32 %v437, %v1378
        %v1380 = vand.u32 %v1379, 4294901760
        %1381 = vmatpush1.msra.mxu0 %v1380
        %1382 = vmatprep.subr.mxu0 0.0
        %1383 = vmatpush2.msra.mxu0 0.0
        %1384 = vmatprep.subr.mxu0 0.0
        %1385 = vmatpush2.msra.mxu0 0.0
        %1386 = vmatprep.subr.mxu0 0.0
        %1387 = vmatpush2.msra.mxu0 0.0
        %1388 = vmatprep.subr.mxu0 0.0
        %1389 = vmatpush2.msra.mxu0 0.0
        %1390 = vmatprep.subr.mxu0 0.0
        %1391 = vmatpush2.msra.mxu0 0.0
        %1392 = vmatprep.subr.mxu0 0.0
        %1393 = vmatpush2.msra.mxu0 0.0
        %1394 = vmatprep.subr.mxu0 0.0
        %1395 = vmatpush2.msra.mxu0 0.0
        %1396 = vmatprep.subr.mxu0 0.0
        %1397 = vmatpush2.msra.mxu0 0.0
        %1398 = vmatprep.subr.mxu0 0.0
        %1399 = vmatpush2.msra.mxu0 0.0
        %1400 = vmatprep.subr.mxu0 0.0
        %1401 = vmatpush2.msra.mxu0 0.0
        %1402 = vmatprep.subr.mxu0 0.0
        %1403 = vmatpush2.msra.mxu0 0.0
        %1404 = vmatprep.subr.mxu0 0.0
        %1405 = vmatpush2.msra.mxu0 0.0
        %1406 = vmatprep.subr.mxu0 0.0
        %1407 = vmatpush2.msra.mxu0 0.0
        %1408 = vmatprep.subr.mxu0 0.0
        %1409 = vmatpush2.msra.mxu0 0.0
        %1410 = vmatprep.subr.mxu0 0.0
        %1411 = vmatpush2.msra.mxu0 0.0
        %1412 = vmatprep.subr.mxu0 0.0
        %1413 = vmatpush2.msra.mxu0 0.0
        %1414 = vmatprep.mubr.f32.mxu0 0.0
        %v1415 = vand.u32 %v499, 4294901760
        %1416 = vmatmul.mubr.f32.gmra.mxu0 %v1415
        %v1417 = vpop.f32.mrf.mxu0
        %v1418 = vadd.f32 %v1215, %v1417
        %v1419 = vpop.f32.mrf.mxu0
        %1420 = vmatprep.mubr.f32.mxu0 0.0
        %v1421 = vand.u32 %v502, 4294901760
        %1422 = vmatmul.mubr.f32.gmra.mxu0 %v1421
        %v1423 = vpop.f32.mrf.mxu0
        %v1424 = vadd.f32 %v1223, %v1423
        %v1425 = vpop.f32.mrf.mxu0
        %1426 = vmatprep.mubr.f32.mxu0 0.0
        %v1427 = vand.u32 %v505, 4294901760
        %1428 = vmatmul.mubr.f32.gmra.mxu0 %v1427
        %v1429 = vpop.f32.mrf.mxu0
        %v1430 = vadd.f32 %v1231, %v1429
        %v1431 = vpop.f32.mrf.mxu0
        %1432 = vmatprep.mubr.f32.mxu0 0.0
        %v1433 = vand.u32 %v508, 4294901760
        %1434 = vmatmul.mubr.f32.gmra.mxu0 %v1433
        %v1435 = vpop.f32.mrf.mxu0
        %v1436 = vadd.f32 %v1239, %v1435
        %v1437 = vpop.f32.mrf.mxu0
        %1438 = vmatprep.mubr.f32.mxu0 0.0
        %v1439 = vand.u32 %v511, 4294901760
        %1440 = vmatmul.mubr.f32.gmra.mxu0 %v1439
        %v1441 = vpop.f32.mrf.mxu0
        %v1442 = vadd.f32 %v1247, %v1441
        %v1443 = vpop.f32.mrf.mxu0
        %1444 = vmatprep.mubr.f32.mxu0 0.0
        %v1445 = vand.u32 %v514, 4294901760
        %1446 = vmatmul.mubr.f32.gmra.mxu0 %v1445
        %v1447 = vpop.f32.mrf.mxu0
        %v1448 = vadd.f32 %v1255, %v1447
        %v1449 = vpop.f32.mrf.mxu0
        %1450 = vmatprep.mubr.f32.mxu0 0.0
        %v1451 = vand.u32 %v517, 4294901760
        %1452 = vmatmul.mubr.f32.gmra.mxu0 %v1451
        %v1453 = vpop.f32.mrf.mxu0
        %v1454 = vadd.f32 %v1263, %v1453
        %v1455 = vpop.f32.mrf.mxu0
        %1456 = vmatprep.mubr.f32.mxu0 0.0
        %v1457 = vand.u32 %v520, 4294901760
        %1458 = vmatmul.mubr.f32.gmra.mxu0 %v1457
        %v1459 = vpop.f32.mrf.mxu0
        %v1460 = vadd.f32 %v1271, %v1459
        %v1461 = vpop.f32.mrf.mxu0
        %1462 = vmatprep.mubr.f32.mxu0 0.0
        %v1463 = vand.u32 %v523, 4294901760
        %1464 = vmatmul.mubr.f32.gmra.mxu0 %v1463
        %v1465 = vpop.f32.mrf.mxu0
        %v1466 = vadd.f32 %v1279, %v1465
        %v1467 = vpop.f32.mrf.mxu0
        %1468 = vmatprep.mubr.f32.mxu0 0.0
        %v1469 = vand.u32 %v526, 4294901760
        %1470 = vmatmul.mubr.f32.gmra.mxu0 %v1469
        %v1471 = vpop.f32.mrf.mxu0
        %v1472 = vadd.f32 %v1287, %v1471
        %v1473 = vpop.f32.mrf.mxu0
        %1474 = vmatprep.mubr.f32.mxu0 0.0
        %v1475 = vand.u32 %v529, 4294901760
        %1476 = vmatmul.mubr.f32.gmra.mxu0 %v1475
        %v1477 = vpop.f32.mrf.mxu0
        %v1478 = vadd.f32 %v1295, %v1477
        %v1479 = vpop.f32.mrf.mxu0
        %1480 = vmatprep.mubr.f32.mxu0 0.0
        %v1481 = vand.u32 %v532, 4294901760
        %1482 = vmatmul.mubr.f32.gmra.mxu0 %v1481
        %v1483 = vpop.f32.mrf.mxu0
        %v1484 = vadd.f32 %v1303, %v1483
        %v1485 = vpop.f32.mrf.mxu0
        %1486 = vmatprep.mubr.f32.mxu0 0.0
        %v1487 = vand.u32 %v535, 4294901760
        %1488 = vmatmul.mubr.f32.gmra.mxu0 %v1487
        %v1489 = vpop.f32.mrf.mxu0
        %v1490 = vadd.f32 %v1311, %v1489
        %v1491 = vpop.f32.mrf.mxu0
        %1492 = vmatprep.mubr.f32.mxu0 0.0
        %v1493 = vand.u32 %v538, 4294901760
        %1494 = vmatmul.mubr.f32.gmra.mxu0 %v1493
        %v1495 = vpop.f32.mrf.mxu0
        %v1496 = vadd.f32 %v1319, %v1495
        %v1497 = vpop.f32.mrf.mxu0
        %1498 = vmatprep.mubr.f32.mxu0 0.0
        %v1499 = vand.u32 %v541, 4294901760
        %1500 = vmatmul.mubr.f32.gmra.mxu0 %v1499
        %v1501 = vpop.f32.mrf.mxu0
        %v1502 = vadd.f32 %v1327, %v1501
        %v1503 = vpop.f32.mrf.mxu0
        %1504 = vmatprep.mubr.f32.mxu0 0.0
        %v1505 = vand.u32 %v544, 4294901760
        %1506 = vmatmul.mubr.f32.gmra.mxu0 %v1505
        %v1507 = vpop.f32.mrf.mxu0
        %v1508 = vadd.f32 %v1335, %v1507
        %v1509 = vpop.f32.mrf.mxu0
        %1510 = vdwg.mxu0
        %1511 = vmatprep.subr.mxu0 0.0
        %1512 = vmatpush1.msra.mxu0 0.0
        %1513 = vmatprep.subr.mxu0 0.0
        %1514 = vmatpush1.msra.mxu0 0.0
        %1515 = vmatprep.subr.mxu0 0.0
        %1516 = vmatpush1.msra.mxu0 0.0
        %1517 = vmatprep.subr.mxu0 0.0
        %1518 = vmatpush1.msra.mxu0 0.0
        %1519 = vmatprep.subr.mxu0 0.0
        %1520 = vmatpush1.msra.mxu0 0.0
        %1521 = vmatprep.subr.mxu0 0.0
        %1522 = vmatpush1.msra.mxu0 0.0
        %1523 = vmatprep.subr.mxu0 0.0
        %1524 = vmatpush1.msra.mxu0 0.0
        %1525 = vmatprep.subr.mxu0 0.0
        %1526 = vmatpush1.msra.mxu0 0.0
        %1527 = vmatprep.subr.mxu0 0.0
        %1528 = vmatpush1.msra.mxu0 0.0
        %1529 = vmatprep.subr.mxu0 0.0
        %1530 = vmatpush1.msra.mxu0 0.0
        %1531 = vmatprep.subr.mxu0 0.0
        %1532 = vmatpush1.msra.mxu0 0.0
        %1533 = vmatprep.subr.mxu0 0.0
        %1534 = vmatpush1.msra.mxu0 0.0
        %1535 = vmatprep.subr.mxu0 0.0
        %v1536 = vand.u32 %v440, 4294901760
        %1537 = vmatpush1.msra.mxu0 %v1536
        %1538 = vmatprep.subr.mxu0 0.0
        %v1539 = vand.u32 %v439, 4294901760
        %1540 = vmatpush1.msra.mxu0 %v1539
        %1541 = vmatprep.subr.mxu0 0.0
        %v1542 = vand.u32 %v438, 4294901760
        %1543 = vmatpush1.msra.mxu0 %v1542
        %1544 = vmatprep.subr.mxu0 0.0
        %v1545 = vand.u32 %v437, 4294901760
        %1546 = vmatpush1.msra.mxu0 %v1545
        %1547 = vmatprep.subr.mxu0 0.0
        %1548 = vmatpush2.msra.mxu0 0.0
        %1549 = vmatprep.subr.mxu0 0.0
        %1550 = vmatpush2.msra.mxu0 0.0
        %1551 = vmatprep.subr.mxu0 0.0
        %1552 = vmatpush2.msra.mxu0 0.0
        %1553 = vmatprep.subr.mxu0 0.0
        %1554 = vmatpush2.msra.mxu0 0.0
        %1555 = vmatprep.subr.mxu0 0.0
        %1556 = vmatpush2.msra.mxu0 0.0
        %1557 = vmatprep.subr.mxu0 0.0
        %1558 = vmatpush2.msra.mxu0 0.0
        %1559 = vmatprep.subr.mxu0 0.0
        %1560 = vmatpush2.msra.mxu0 0.0
        %1561 = vmatprep.subr.mxu0 0.0
        %1562 = vmatpush2.msra.mxu0 0.0
        %1563 = vmatprep.subr.mxu0 0.0
        %1564 = vmatpush2.msra.mxu0 0.0
        %1565 = vmatprep.subr.mxu0 0.0
        %1566 = vmatpush2.msra.mxu0 0.0
        %1567 = vmatprep.subr.mxu0 0.0
        %1568 = vmatpush2.msra.mxu0 0.0
        %1569 = vmatprep.subr.mxu0 0.0
        %1570 = vmatpush2.msra.mxu0 0.0
        %1571 = vmatprep.subr.mxu0 0.0
        %1572 = vmatpush2.msra.mxu0 0.0
        %1573 = vmatprep.subr.mxu0 0.0
        %1574 = vmatpush2.msra.mxu0 0.0
        %1575 = vmatprep.subr.mxu0 0.0
        %1576 = vmatpush2.msra.mxu0 0.0
        %1577 = vmatprep.subr.mxu0 0.0
        %1578 = vmatpush2.msra.mxu0 0.0
        %1579 = vmatprep.mubr.f32.mxu0 0.0
        %v1580 = vand.u32 %v499, 4294901760
        %1581 = vmatmul.mubr.f32.gmra.mxu0 %v1580
        %v1582 = vpop.f32.mrf.mxu0
        %v1583 = vadd.f32 %v1418, %v1582
        %v1584 = vpop.f32.mrf.mxu0
        %1585 = vmatprep.mubr.f32.mxu0 0.0
        %v1586 = vand.u32 %v502, 4294901760
        %1587 = vmatmul.mubr.f32.gmra.mxu0 %v1586
        %v1588 = vpop.f32.mrf.mxu0
        %v1589 = vadd.f32 %v1424, %v1588
        %v1590 = vpop.f32.mrf.mxu0
        %1591 = vmatprep.mubr.f32.mxu0 0.0
        %v1592 = vand.u32 %v505, 4294901760
        %1593 = vmatmul.mubr.f32.gmra.mxu0 %v1592
        %v1594 = vpop.f32.mrf.mxu0
        %v1595 = vadd.f32 %v1430, %v1594
        %v1596 = vpop.f32.mrf.mxu0
        %1597 = vmatprep.mubr.f32.mxu0 0.0
        %v1598 = vand.u32 %v508, 4294901760
        %1599 = vmatmul.mubr.f32.gmra.mxu0 %v1598
        %v1600 = vpop.f32.mrf.mxu0
        %v1601 = vadd.f32 %v1436, %v1600
        %v1602 = vpop.f32.mrf.mxu0
        %1603 = vmatprep.mubr.f32.mxu0 0.0
        %v1604 = vand.u32 %v511, 4294901760
        %1605 = vmatmul.mubr.f32.gmra.mxu0 %v1604
        %v1606 = vpop.f32.mrf.mxu0
        %v1607 = vadd.f32 %v1442, %v1606
        %v1608 = vpop.f32.mrf.mxu0
        %1609 = vmatprep.mubr.f32.mxu0 0.0
        %v1610 = vand.u32 %v514, 4294901760
        %1611 = vmatmul.mubr.f32.gmra.mxu0 %v1610
        %v1612 = vpop.f32.mrf.mxu0
        %v1613 = vadd.f32 %v1448, %v1612
        %v1614 = vpop.f32.mrf.mxu0
        %1615 = vmatprep.mubr.f32.mxu0 0.0
        %v1616 = vand.u32 %v517, 4294901760
        %1617 = vmatmul.mubr.f32.gmra.mxu0 %v1616
        %v1618 = vpop.f32.mrf.mxu0
        %v1619 = vadd.f32 %v1454, %v1618
        %v1620 = vpop.f32.mrf.mxu0
        %1621 = vmatprep.mubr.f32.mxu0 0.0
        %v1622 = vand.u32 %v520, 4294901760
        %1623 = vmatmul.mubr.f32.gmra.mxu0 %v1622
        %v1624 = vpop.f32.mrf.mxu0
        %v1625 = vadd.f32 %v1460, %v1624
        %v1626 = vpop.f32.mrf.mxu0
        %1627 = vmatprep.mubr.f32.mxu0 0.0
        %v1628 = vand.u32 %v523, 4294901760
        %1629 = vmatmul.mubr.f32.gmra.mxu0 %v1628
        %v1630 = vpop.f32.mrf.mxu0
        %v1631 = vadd.f32 %v1466, %v1630
        %v1632 = vpop.f32.mrf.mxu0
        %1633 = vmatprep.mubr.f32.mxu0 0.0
        %v1634 = vand.u32 %v526, 4294901760
        %1635 = vmatmul.mubr.f32.gmra.mxu0 %v1634
        %v1636 = vpop.f32.mrf.mxu0
        %v1637 = vadd.f32 %v1472, %v1636
        %v1638 = vpop.f32.mrf.mxu0
        %1639 = vmatprep.mubr.f32.mxu0 0.0
        %v1640 = vand.u32 %v529, 4294901760
        %1641 = vmatmul.mubr.f32.gmra.mxu0 %v1640
        %v1642 = vpop.f32.mrf.mxu0
        %v1643 = vadd.f32 %v1478, %v1642
        %v1644 = vpop.f32.mrf.mxu0
        %1645 = vmatprep.mubr.f32.mxu0 0.0
        %v1646 = vand.u32 %v532, 4294901760
        %1647 = vmatmul.mubr.f32.gmra.mxu0 %v1646
        %v1648 = vpop.f32.mrf.mxu0
        %v1649 = vadd.f32 %v1484, %v1648
        %v1650 = vpop.f32.mrf.mxu0
        %1651 = vmatprep.mubr.f32.mxu0 0.0
        %v1652 = vand.u32 %v535, 4294901760
        %1653 = vmatmul.mubr.f32.gmra.mxu0 %v1652
        %v1654 = vpop.f32.mrf.mxu0
        %v1655 = vadd.f32 %v1490, %v1654
        %v1656 = vpop.f32.mrf.mxu0
        %1657 = vmatprep.mubr.f32.mxu0 0.0
        %v1658 = vand.u32 %v538, 4294901760
        %1659 = vmatmul.mubr.f32.gmra.mxu0 %v1658
        %v1660 = vpop.f32.mrf.mxu0
        %v1661 = vadd.f32 %v1496, %v1660
        %v1662 = vpop.f32.mrf.mxu0
        %1663 = vmatprep.mubr.f32.mxu0 0.0
        %v1664 = vand.u32 %v541, 4294901760
        %1665 = vmatmul.mubr.f32.gmra.mxu0 %v1664
        %v1666 = vpop.f32.mrf.mxu0
        %v1667 = vadd.f32 %v1502, %v1666
        %v1668 = vpop.f32.mrf.mxu0
        %1669 = vmatprep.mubr.f32.mxu0 0.0
        %v1670 = vand.u32 %v544, 4294901760
        %1671 = vmatmul.mubr.f32.gmra.mxu0 %v1670
        %v1672 = vpop.f32.mrf.mxu0
        %v1673 = vadd.f32 %v1508, %v1672
        %v1674 = vpop.f32.mrf.mxu0
        %1675 = vdwg.mxu0
        %v1676 = vadd.f32 %v449, %v1583
        %v1677 = vadd.f32 %v450, %v1589
        %v1678 = vadd.f32 %v451, %v1595
        %v1679 = vadd.f32 %v452, %v1601
        %v1680 = vadd.f32 %v453, %v1607
        %v1681 = vadd.f32 %v454, %v1613
        %v1682 = vadd.f32 %v455, %v1619
        %v1683 = vadd.f32 %v456, %v1625
        %v1684 = vadd.f32 %v457, %v1631
        %v1685 = vadd.f32 %v458, %v1637
        %v1686 = vadd.f32 %v459, %v1643
        %v1687 = vadd.f32 %v460, %v1649
        %v1688 = vadd.f32 %v461, %v1655
        %v1689 = vadd.f32 %v462, %v1661
        %v1690 = vadd.f32 %v463, %v1667
        %v1691 = vadd.f32 %v464, %v1673
        %1692 = vst [vmem:[#allocation2] sm:$0xff] %v1676
        %1693 = vst [vmem:[#allocation2 + $0x8] sm:$0xff] %v1677
        %1694 = vst [vmem:[#allocation2 + $0x10] sm:$0xff] %v1678
        %1695 = vst [vmem:[#allocation2 + $0x18] sm:$0xff] %v1679
        %1696 = vst [vmem:[#allocation2 + $0x20] sm:$0xff] %v1680
        %1697 = vst [vmem:[#allocation2 + $0x28] sm:$0xff] %v1681
        %1698 = vst [vmem:[#allocation2 + $0x30] sm:$0xff] %v1682
        %1699 = vst [vmem:[#allocation2 + $0x38] sm:$0xff] %v1683
        %1700 = vst [vmem:[#allocation2 + $0x40] sm:$0xff] %v1684
        %1701 = vst [vmem:[#allocation2 + $0x48] sm:$0xff] %v1685
        %1702 = vst [vmem:[#allocation2 + $0x50] sm:$0xff] %v1686
        %1703 = vst [vmem:[#allocation2 + $0x58] sm:$0xff] %v1687
        %1704 = vst [vmem:[#allocation2 + $0x60] sm:$0xff] %v1688
        %1705 = vst [vmem:[#allocation2 + $0x68] sm:$0xff] %v1689
        %1706 = vst [vmem:[#allocation2 + $0x70] sm:$0xff] %v1690
        %1707 = vst [vmem:[#allocation2 + $0x78] sm:$0xff] %v1691
        %v1708 = vld [vmem:[#allocation3] sm:$0xff]
        %v1709 = vld [vmem:[#allocation3 + $0x8] sm:$0xff]
        %v1710 = vld [vmem:[#allocation3 + $0x10] sm:$0xff]
        %v1711 = vld [vmem:[#allocation3 + $0x18] sm:$0xff]
        %v1712 = vld [vmem:[#allocation3 + $0x20] sm:$0xff]
        %v1713 = vld [vmem:[#allocation3 + $0x28] sm:$0xff]
        %v1714 = vld [vmem:[#allocation3 + $0x30] sm:$0xff]
        %v1715 = vld [vmem:[#allocation3 + $0x38] sm:$0xff]
        %v1716 = vld [vmem:[#allocation3 + $0x40] sm:$0xff]
        %v1717 = vld [vmem:[#allocation3 + $0x48] sm:$0xff]
        %v1718 = vld [vmem:[#allocation3 + $0x50] sm:$0xff]
        %v1719 = vld [vmem:[#allocation3 + $0x58] sm:$0xff]
        %v1720 = vld [vmem:[#allocation3 + $0x60] sm:$0xff]
        %v1721 = vld [vmem:[#allocation3 + $0x68] sm:$0xff]
        %v1722 = vld [vmem:[#allocation3 + $0x70] sm:$0xff]
        %v1723 = vld [vmem:[#allocation3 + $0x78] sm:$0xff]
        %1724 = vxpose.xlu0.b32.start [1/16] %v441, 128
        %1725 = vxpose.xlu0.b32.cont [2/16] %v442, 128
        %1726 = vxpose.xlu0.b32.cont [3/16] %v443, 128
        %1727 = vxpose.xlu0.b32.cont [4/16] %v444, 128
        %1728 = vxpose.xlu0.b32.cont [5/16] 0.0, 128
        %1729 = vxpose.xlu0.b32.cont [6/16] 0.0, 128
        %1730 = vxpose.xlu0.b32.cont [7/16] 0.0, 128
        %1731 = vxpose.xlu0.b32.cont [8/16] 0.0, 128
        %1732 = vxpose.xlu0.b32.cont [9/16] 0.0, 128
        %1733 = vxpose.xlu0.b32.cont [10/16] 0.0, 128
        %1734 = vxpose.xlu0.b32.cont [11/16] 0.0, 128
        %1735 = vxpose.xlu0.b32.cont [12/16] 0.0, 128
        %1736 = vxpose.xlu0.b32.cont [13/16] 0.0, 128
        %1737 = vxpose.xlu0.b32.cont [14/16] 0.0, 128
        %1738 = vxpose.xlu0.b32.cont [15/16] 0.0, 128
        %1739 = vxpose.xlu0.b32.end [16/16] 0.0, 128
        %v1740 = vpop.trf.xlu0
        %v1741 = vpop.trf.xlu0
        %v1742 = vpop.trf.xlu0
        %v1743 = vpop.trf.xlu0
        %v1744 = vpop.trf.xlu0
        %v1745 = vpop.trf.xlu0
        %v1746 = vpop.trf.xlu0
        %v1747 = vpop.trf.xlu0
        %v1748 = vpop.trf.xlu0
        %v1749 = vpop.trf.xlu0
        %v1750 = vpop.trf.xlu0
        %v1751 = vpop.trf.xlu0
        %v1752 = vpop.trf.xlu0
        %v1753 = vpop.trf.xlu0
        %v1754 = vpop.trf.xlu0
        %v1755 = vpop.trf.xlu0
        %v1757 = vsel %vm497, %v1740, 0
        %v1760 = vsel %vm497, %v1741, 0
        %v1763 = vsel %vm497, %v1742, 0
        %v1766 = vsel %vm497, %v1743, 0
        %v1769 = vsel %vm497, %v1744, 0
        %v1772 = vsel %vm497, %v1745, 0
        %v1775 = vsel %vm497, %v1746, 0
        %v1778 = vsel %vm497, %v1747, 0
        %v1781 = vsel %vm497, %v1748, 0
        %v1784 = vsel %vm497, %v1749, 0
        %v1787 = vsel %vm497, %v1750, 0
        %v1790 = vsel %vm497, %v1751, 0
        %v1793 = vsel %vm497, %v1752, 0
        %v1796 = vsel %vm497, %v1753, 0
        %v1799 = vsel %vm497, %v1754, 0
        %v1802 = vsel %vm497, %v1755, 0
        %1804 = vmatprep.subr.mxu0 0.0
        %1805 = vmatpush1.msra.mxu0 0.0
        %1806 = vmatprep.subr.mxu0 0.0
        %1807 = vmatpush1.msra.mxu0 0.0
        %1808 = vmatprep.subr.mxu0 0.0
        %1809 = vmatpush1.msra.mxu0 0.0
        %1810 = vmatprep.subr.mxu0 0.0
        %1811 = vmatpush1.msra.mxu0 0.0
        %1812 = vmatprep.subr.mxu0 0.0
        %1813 = vmatpush1.msra.mxu0 0.0
        %1814 = vmatprep.subr.mxu0 0.0
        %1815 = vmatpush1.msra.mxu0 0.0
        %1816 = vmatprep.subr.mxu0 0.0
        %1817 = vmatpush1.msra.mxu0 0.0
        %1818 = vmatprep.subr.mxu0 0.0
        %1819 = vmatpush1.msra.mxu0 0.0
        %1820 = vmatprep.subr.mxu0 0.0
        %1821 = vmatpush1.msra.mxu0 0.0
        %1822 = vmatprep.subr.mxu0 0.0
        %1823 = vmatpush1.msra.mxu0 0.0
        %1824 = vmatprep.subr.mxu0 0.0
        %1825 = vmatpush1.msra.mxu0 0.0
        %1826 = vmatprep.subr.mxu0 0.0
        %1827 = vmatpush1.msra.mxu0 0.0
        %1828 = vmatprep.subr.mxu0 0.0
        %v1829 = vand.u32 %v448, 4294901760
        %1830 = vmatpush1.msra.mxu0 %v1829
        %1831 = vmatprep.subr.mxu0 0.0
        %v1832 = vand.u32 %v447, 4294901760
        %1833 = vmatpush1.msra.mxu0 %v1832
        %1834 = vmatprep.subr.mxu0 0.0
        %v1835 = vand.u32 %v446, 4294901760
        %1836 = vmatpush1.msra.mxu0 %v1835
        %1837 = vmatprep.subr.mxu0 0.0
        %v1838 = vand.u32 %v445, 4294901760
        %1839 = vmatpush1.msra.mxu0 %v1838
        %1840 = vmatprep.subr.mxu0 0.0
        %1841 = vmatpush2.msra.mxu0 0.0
        %1842 = vmatprep.subr.mxu0 0.0
        %1843 = vmatpush2.msra.mxu0 0.0
        %1844 = vmatprep.subr.mxu0 0.0
        %1845 = vmatpush2.msra.mxu0 0.0
        %1846 = vmatprep.subr.mxu0 0.0
        %1847 = vmatpush2.msra.mxu0 0.0
        %1848 = vmatprep.subr.mxu0 0.0
        %1849 = vmatpush2.msra.mxu0 0.0
        %1850 = vmatprep.subr.mxu0 0.0
        %1851 = vmatpush2.msra.mxu0 0.0
        %1852 = vmatprep.subr.mxu0 0.0
        %1853 = vmatpush2.msra.mxu0 0.0
        %1854 = vmatprep.subr.mxu0 0.0
        %1855 = vmatpush2.msra.mxu0 0.0
        %1856 = vmatprep.subr.mxu0 0.0
        %1857 = vmatpush2.msra.mxu0 0.0
        %1858 = vmatprep.subr.mxu0 0.0
        %1859 = vmatpush2.msra.mxu0 0.0
        %1860 = vmatprep.subr.mxu0 0.0
        %1861 = vmatpush2.msra.mxu0 0.0
        %1862 = vmatprep.subr.mxu0 0.0
        %1863 = vmatpush2.msra.mxu0 0.0
        %1864 = vmatprep.subr.mxu0 0.0
        %1865 = vmatpush2.msra.mxu0 0.0
        %1866 = vmatprep.subr.mxu0 0.0
        %1867 = vmatpush2.msra.mxu0 0.0
        %1868 = vmatprep.subr.mxu0 0.0
        %1869 = vmatpush2.msra.mxu0 0.0
        %1870 = vmatprep.subr.mxu0 0.0
        %1871 = vmatpush2.msra.mxu0 0.0
        %1872 = vmatprep.mubr.f32.mxu0 0.0
        %v1873 = vand.u32 %v1757, 4294901760
        %v1874 = vsub.f32 %v1757, %v1873
        %v1875 = vand.u32 %v1874, 4294901760
        %v1876 = vsub.f32 %v1874, %v1875
        %v1877 = vand.u32 %v1876, 4294901760
        %1878 = vmatmul.mubr.f32.gmra.mxu0 %v1877
        %v1879 = vpop.f32.mrf.mxu0
        %v1880 = vadd.f32 0.0, %v1879
        %v1881 = vpop.f32.mrf.mxu0
        %1882 = vmatprep.mubr.f32.mxu0 0.0
        %v1883 = vand.u32 %v1760, 4294901760
        %v1884 = vsub.f32 %v1760, %v1883
        %v1885 = vand.u32 %v1884, 4294901760
        %v1886 = vsub.f32 %v1884, %v1885
        %v1887 = vand.u32 %v1886, 4294901760
        %1888 = vmatmul.mubr.f32.gmra.mxu0 %v1887
        %v1889 = vpop.f32.mrf.mxu0
        %v1890 = vadd.f32 0.0, %v1889
        %v1891 = vpop.f32.mrf.mxu0
        %1892 = vmatprep.mubr.f32.mxu0 0.0
        %v1893 = vand.u32 %v1763, 4294901760
        %v1894 = vsub.f32 %v1763, %v1893
        %v1895 = vand.u32 %v1894, 4294901760
        %v1896 = vsub.f32 %v1894, %v1895
        %v1897 = vand.u32 %v1896, 4294901760
        %1898 = vmatmul.mubr.f32.gmra.mxu0 %v1897
        %v1899 = vpop.f32.mrf.mxu0
        %v1900 = vadd.f32 0.0, %v1899
        %v1901 = vpop.f32.mrf.mxu0
        %1902 = vmatprep.mubr.f32.mxu0 0.0
        %v1903 = vand.u32 %v1766, 4294901760
        %v1904 = vsub.f32 %v1766, %v1903
        %v1905 = vand.u32 %v1904, 4294901760
        %v1906 = vsub.f32 %v1904, %v1905
        %v1907 = vand.u32 %v1906, 4294901760
        %1908 = vmatmul.mubr.f32.gmra.mxu0 %v1907
        %v1909 = vpop.f32.mrf.mxu0
        %v1910 = vadd.f32 0.0, %v1909
        %v1911 = vpop.f32.mrf.mxu0
        %1912 = vmatprep.mubr.f32.mxu0 0.0
        %v1913 = vand.u32 %v1769, 4294901760
        %v1914 = vsub.f32 %v1769, %v1913
        %v1915 = vand.u32 %v1914, 4294901760
        %v1916 = vsub.f32 %v1914, %v1915
        %v1917 = vand.u32 %v1916, 4294901760
        %1918 = vmatmul.mubr.f32.gmra.mxu0 %v1917
        %v1919 = vpop.f32.mrf.mxu0
        %v1920 = vadd.f32 0.0, %v1919
        %v1921 = vpop.f32.mrf.mxu0
        %1922 = vmatprep.mubr.f32.mxu0 0.0
        %v1923 = vand.u32 %v1772, 4294901760
        %v1924 = vsub.f32 %v1772, %v1923
        %v1925 = vand.u32 %v1924, 4294901760
        %v1926 = vsub.f32 %v1924, %v1925
        %v1927 = vand.u32 %v1926, 4294901760
        %1928 = vmatmul.mubr.f32.gmra.mxu0 %v1927
        %v1929 = vpop.f32.mrf.mxu0
        %v1930 = vadd.f32 0.0, %v1929
        %v1931 = vpop.f32.mrf.mxu0
        %1932 = vmatprep.mubr.f32.mxu0 0.0
        %v1933 = vand.u32 %v1775, 4294901760
        %v1934 = vsub.f32 %v1775, %v1933
        %v1935 = vand.u32 %v1934, 4294901760
        %v1936 = vsub.f32 %v1934, %v1935
        %v1937 = vand.u32 %v1936, 4294901760
        %1938 = vmatmul.mubr.f32.gmra.mxu0 %v1937
        %v1939 = vpop.f32.mrf.mxu0
        %v1940 = vadd.f32 0.0, %v1939
        %v1941 = vpop.f32.mrf.mxu0
        %1942 = vmatprep.mubr.f32.mxu0 0.0
        %v1943 = vand.u32 %v1778, 4294901760
        %v1944 = vsub.f32 %v1778, %v1943
        %v1945 = vand.u32 %v1944, 4294901760
        %v1946 = vsub.f32 %v1944, %v1945
        %v1947 = vand.u32 %v1946, 4294901760
        %1948 = vmatmul.mubr.f32.gmra.mxu0 %v1947
        %v1949 = vpop.f32.mrf.mxu0
        %v1950 = vadd.f32 0.0, %v1949
        %v1951 = vpop.f32.mrf.mxu0
        %1952 = vmatprep.mubr.f32.mxu0 0.0
        %v1953 = vand.u32 %v1781, 4294901760
        %v1954 = vsub.f32 %v1781, %v1953
        %v1955 = vand.u32 %v1954, 4294901760
        %v1956 = vsub.f32 %v1954, %v1955
        %v1957 = vand.u32 %v1956, 4294901760
        %1958 = vmatmul.mubr.f32.gmra.mxu0 %v1957
        %v1959 = vpop.f32.mrf.mxu0
        %v1960 = vadd.f32 0.0, %v1959
        %v1961 = vpop.f32.mrf.mxu0
        %1962 = vmatprep.mubr.f32.mxu0 0.0
        %v1963 = vand.u32 %v1784, 4294901760
        %v1964 = vsub.f32 %v1784, %v1963
        %v1965 = vand.u32 %v1964, 4294901760
        %v1966 = vsub.f32 %v1964, %v1965
        %v1967 = vand.u32 %v1966, 4294901760
        %1968 = vmatmul.mubr.f32.gmra.mxu0 %v1967
        %v1969 = vpop.f32.mrf.mxu0
        %v1970 = vadd.f32 0.0, %v1969
        %v1971 = vpop.f32.mrf.mxu0
        %1972 = vmatprep.mubr.f32.mxu0 0.0
        %v1973 = vand.u32 %v1787, 4294901760
        %v1974 = vsub.f32 %v1787, %v1973
        %v1975 = vand.u32 %v1974, 4294901760
        %v1976 = vsub.f32 %v1974, %v1975
        %v1977 = vand.u32 %v1976, 4294901760
        %1978 = vmatmul.mubr.f32.gmra.mxu0 %v1977
        %v1979 = vpop.f32.mrf.mxu0
        %v1980 = vadd.f32 0.0, %v1979
        %v1981 = vpop.f32.mrf.mxu0
        %1982 = vmatprep.mubr.f32.mxu0 0.0
        %v1983 = vand.u32 %v1790, 4294901760
        %v1984 = vsub.f32 %v1790, %v1983
        %v1985 = vand.u32 %v1984, 4294901760
        %v1986 = vsub.f32 %v1984, %v1985
        %v1987 = vand.u32 %v1986, 4294901760
        %1988 = vmatmul.mubr.f32.gmra.mxu0 %v1987
        %v1989 = vpop.f32.mrf.mxu0
        %v1990 = vadd.f32 0.0, %v1989
        %v1991 = vpop.f32.mrf.mxu0
        %1992 = vmatprep.mubr.f32.mxu0 0.0
        %v1993 = vand.u32 %v1793, 4294901760
        %v1994 = vsub.f32 %v1793, %v1993
        %v1995 = vand.u32 %v1994, 4294901760
        %v1996 = vsub.f32 %v1994, %v1995
        %v1997 = vand.u32 %v1996, 4294901760
        %1998 = vmatmul.mubr.f32.gmra.mxu0 %v1997
        %v1999 = vpop.f32.mrf.mxu0
        %v2000 = vadd.f32 0.0, %v1999
        %v2001 = vpop.f32.mrf.mxu0
        %2002 = vmatprep.mubr.f32.mxu0 0.0
        %v2003 = vand.u32 %v1796, 4294901760
        %v2004 = vsub.f32 %v1796, %v2003
        %v2005 = vand.u32 %v2004, 4294901760
        %v2006 = vsub.f32 %v2004, %v2005
        %v2007 = vand.u32 %v2006, 4294901760
        %2008 = vmatmul.mubr.f32.gmra.mxu0 %v2007
        %v2009 = vpop.f32.mrf.mxu0
        %v2010 = vadd.f32 0.0, %v2009
        %v2011 = vpop.f32.mrf.mxu0
        %2012 = vmatprep.mubr.f32.mxu0 0.0
        %v2013 = vand.u32 %v1799, 4294901760
        %v2014 = vsub.f32 %v1799, %v2013
        %v2015 = vand.u32 %v2014, 4294901760
        %v2016 = vsub.f32 %v2014, %v2015
        %v2017 = vand.u32 %v2016, 4294901760
        %2018 = vmatmul.mubr.f32.gmra.mxu0 %v2017
        %v2019 = vpop.f32.mrf.mxu0
        %v2020 = vadd.f32 0.0, %v2019
        %v2021 = vpop.f32.mrf.mxu0
        %2022 = vmatprep.mubr.f32.mxu0 0.0
        %v2023 = vand.u32 %v1802, 4294901760
        %v2024 = vsub.f32 %v1802, %v2023
        %v2025 = vand.u32 %v2024, 4294901760
        %v2026 = vsub.f32 %v2024, %v2025
        %v2027 = vand.u32 %v2026, 4294901760
        %2028 = vmatmul.mubr.f32.gmra.mxu0 %v2027
        %v2029 = vpop.f32.mrf.mxu0
        %v2030 = vadd.f32 0.0, %v2029
        %v2031 = vpop.f32.mrf.mxu0
        %2032 = vdwg.mxu0
        %2033 = vmatprep.subr.mxu0 0.0
        %2034 = vmatpush1.msra.mxu0 0.0
        %2035 = vmatprep.subr.mxu0 0.0
        %2036 = vmatpush1.msra.mxu0 0.0
        %2037 = vmatprep.subr.mxu0 0.0
        %2038 = vmatpush1.msra.mxu0 0.0
        %2039 = vmatprep.subr.mxu0 0.0
        %2040 = vmatpush1.msra.mxu0 0.0
        %2041 = vmatprep.subr.mxu0 0.0
        %2042 = vmatpush1.msra.mxu0 0.0
        %2043 = vmatprep.subr.mxu0 0.0
        %2044 = vmatpush1.msra.mxu0 0.0
        %2045 = vmatprep.subr.mxu0 0.0
        %2046 = vmatpush1.msra.mxu0 0.0
        %2047 = vmatprep.subr.mxu0 0.0
        %2048 = vmatpush1.msra.mxu0 0.0
        %2049 = vmatprep.subr.mxu0 0.0
        %2050 = vmatpush1.msra.mxu0 0.0
        %2051 = vmatprep.subr.mxu0 0.0
        %2052 = vmatpush1.msra.mxu0 0.0
        %2053 = vmatprep.subr.mxu0 0.0
        %2054 = vmatpush1.msra.mxu0 0.0
        %2055 = vmatprep.subr.mxu0 0.0
        %2056 = vmatpush1.msra.mxu0 0.0
        %2057 = vmatprep.subr.mxu0 0.0
        %v2058 = vand.u32 %v448, 4294901760
        %v2059 = vsub.f32 %v448, %v2058
        %v2060 = vand.u32 %v2059, 4294901760
        %v2061 = vsub.f32 %v2059, %v2060
        %v2062 = vand.u32 %v2061, 4294901760
        %2063 = vmatpush1.msra.mxu0 %v2062
        %2064 = vmatprep.subr.mxu0 0.0
        %v2065 = vand.u32 %v447, 4294901760
        %v2066 = vsub.f32 %v447, %v2065
        %v2067 = vand.u32 %v2066, 4294901760
        %v2068 = vsub.f32 %v2066, %v2067
        %v2069 = vand.u32 %v2068, 4294901760
        %2070 = vmatpush1.msra.mxu0 %v2069
        %2071 = vmatprep.subr.mxu0 0.0
        %v2072 = vand.u32 %v446, 4294901760
        %v2073 = vsub.f32 %v446, %v2072
        %v2074 = vand.u32 %v2073, 4294901760
        %v2075 = vsub.f32 %v2073, %v2074
        %v2076 = vand.u32 %v2075, 4294901760
        %2077 = vmatpush1.msra.mxu0 %v2076
        %2078 = vmatprep.subr.mxu0 0.0
        %v2079 = vand.u32 %v445, 4294901760
        %v2080 = vsub.f32 %v445, %v2079
        %v2081 = vand.u32 %v2080, 4294901760
        %v2082 = vsub.f32 %v2080, %v2081
        %v2083 = vand.u32 %v2082, 4294901760
        %2084 = vmatpush1.msra.mxu0 %v2083
        %2085 = vmatprep.subr.mxu0 0.0
        %2086 = vmatpush2.msra.mxu0 0.0
        %2087 = vmatprep.subr.mxu0 0.0
        %2088 = vmatpush2.msra.mxu0 0.0
        %2089 = vmatprep.subr.mxu0 0.0
        %2090 = vmatpush2.msra.mxu0 0.0
        %2091 = vmatprep.subr.mxu0 0.0
        %2092 = vmatpush2.msra.mxu0 0.0
        %2093 = vmatprep.subr.mxu0 0.0
        %2094 = vmatpush2.msra.mxu0 0.0
        %2095 = vmatprep.subr.mxu0 0.0
        %2096 = vmatpush2.msra.mxu0 0.0
        %2097 = vmatprep.subr.mxu0 0.0
        %2098 = vmatpush2.msra.mxu0 0.0
        %2099 = vmatprep.subr.mxu0 0.0
        %2100 = vmatpush2.msra.mxu0 0.0
        %2101 = vmatprep.subr.mxu0 0.0
        %2102 = vmatpush2.msra.mxu0 0.0
        %2103 = vmatprep.subr.mxu0 0.0
        %2104 = vmatpush2.msra.mxu0 0.0
        %2105 = vmatprep.subr.mxu0 0.0
        %2106 = vmatpush2.msra.mxu0 0.0
        %2107 = vmatprep.subr.mxu0 0.0
        %2108 = vmatpush2.msra.mxu0 0.0
        %2109 = vmatprep.subr.mxu0 0.0
        %2110 = vmatpush2.msra.mxu0 0.0
        %2111 = vmatprep.subr.mxu0 0.0
        %2112 = vmatpush2.msra.mxu0 0.0
        %2113 = vmatprep.subr.mxu0 0.0
        %2114 = vmatpush2.msra.mxu0 0.0
        %2115 = vmatprep.subr.mxu0 0.0
        %2116 = vmatpush2.msra.mxu0 0.0
        %2117 = vmatprep.mubr.f32.mxu0 0.0
        %v2118 = vand.u32 %v1757, 4294901760
        %2119 = vmatmul.mubr.f32.gmra.mxu0 %v2118
        %v2120 = vpop.f32.mrf.mxu0
        %v2121 = vadd.f32 %v1880, %v2120
        %v2122 = vpop.f32.mrf.mxu0
        %2123 = vmatprep.mubr.f32.mxu0 0.0
        %v2124 = vand.u32 %v1760, 4294901760
        %2125 = vmatmul.mubr.f32.gmra.mxu0 %v2124
        %v2126 = vpop.f32.mrf.mxu0
        %v2127 = vadd.f32 %v1890, %v2126
        %v2128 = vpop.f32.mrf.mxu0
        %2129 = vmatprep.mubr.f32.mxu0 0.0
        %v2130 = vand.u32 %v1763, 4294901760
        %2131 = vmatmul.mubr.f32.gmra.mxu0 %v2130
        %v2132 = vpop.f32.mrf.mxu0
        %v2133 = vadd.f32 %v1900, %v2132
        %v2134 = vpop.f32.mrf.mxu0
        %2135 = vmatprep.mubr.f32.mxu0 0.0
        %v2136 = vand.u32 %v1766, 4294901760
        %2137 = vmatmul.mubr.f32.gmra.mxu0 %v2136
        %v2138 = vpop.f32.mrf.mxu0
        %v2139 = vadd.f32 %v1910, %v2138
        %v2140 = vpop.f32.mrf.mxu0
        %2141 = vmatprep.mubr.f32.mxu0 0.0
        %v2142 = vand.u32 %v1769, 4294901760
        %2143 = vmatmul.mubr.f32.gmra.mxu0 %v2142
        %v2144 = vpop.f32.mrf.mxu0
        %v2145 = vadd.f32 %v1920, %v2144
        %v2146 = vpop.f32.mrf.mxu0
        %2147 = vmatprep.mubr.f32.mxu0 0.0
        %v2148 = vand.u32 %v1772, 4294901760
        %2149 = vmatmul.mubr.f32.gmra.mxu0 %v2148
        %v2150 = vpop.f32.mrf.mxu0
        %v2151 = vadd.f32 %v1930, %v2150
        %v2152 = vpop.f32.mrf.mxu0
        %2153 = vmatprep.mubr.f32.mxu0 0.0
        %v2154 = vand.u32 %v1775, 4294901760
        %2155 = vmatmul.mubr.f32.gmra.mxu0 %v2154
        %v2156 = vpop.f32.mrf.mxu0
        %v2157 = vadd.f32 %v1940, %v2156
        %v2158 = vpop.f32.mrf.mxu0
        %2159 = vmatprep.mubr.f32.mxu0 0.0
        %v2160 = vand.u32 %v1778, 4294901760
        %2161 = vmatmul.mubr.f32.gmra.mxu0 %v2160
        %v2162 = vpop.f32.mrf.mxu0
        %v2163 = vadd.f32 %v1950, %v2162
        %v2164 = vpop.f32.mrf.mxu0
        %2165 = vmatprep.mubr.f32.mxu0 0.0
        %v2166 = vand.u32 %v1781, 4294901760
        %2167 = vmatmul.mubr.f32.gmra.mxu0 %v2166
        %v2168 = vpop.f32.mrf.mxu0
        %v2169 = vadd.f32 %v1960, %v2168
        %v2170 = vpop.f32.mrf.mxu0
        %2171 = vmatprep.mubr.f32.mxu0 0.0
        %v2172 = vand.u32 %v1784, 4294901760
        %2173 = vmatmul.mubr.f32.gmra.mxu0 %v2172
        %v2174 = vpop.f32.mrf.mxu0
        %v2175 = vadd.f32 %v1970, %v2174
        %v2176 = vpop.f32.mrf.mxu0
        %2177 = vmatprep.mubr.f32.mxu0 0.0
        %v2178 = vand.u32 %v1787, 4294901760
        %2179 = vmatmul.mubr.f32.gmra.mxu0 %v2178
        %v2180 = vpop.f32.mrf.mxu0
        %v2181 = vadd.f32 %v1980, %v2180
        %v2182 = vpop.f32.mrf.mxu0
        %2183 = vmatprep.mubr.f32.mxu0 0.0
        %v2184 = vand.u32 %v1790, 4294901760
        %2185 = vmatmul.mubr.f32.gmra.mxu0 %v2184
        %v2186 = vpop.f32.mrf.mxu0
        %v2187 = vadd.f32 %v1990, %v2186
        %v2188 = vpop.f32.mrf.mxu0
        %2189 = vmatprep.mubr.f32.mxu0 0.0
        %v2190 = vand.u32 %v1793, 4294901760
        %2191 = vmatmul.mubr.f32.gmra.mxu0 %v2190
        %v2192 = vpop.f32.mrf.mxu0
        %v2193 = vadd.f32 %v2000, %v2192
        %v2194 = vpop.f32.mrf.mxu0
        %2195 = vmatprep.mubr.f32.mxu0 0.0
        %v2196 = vand.u32 %v1796, 4294901760
        %2197 = vmatmul.mubr.f32.gmra.mxu0 %v2196
        %v2198 = vpop.f32.mrf.mxu0
        %v2199 = vadd.f32 %v2010, %v2198
        %v2200 = vpop.f32.mrf.mxu0
        %2201 = vmatprep.mubr.f32.mxu0 0.0
        %v2202 = vand.u32 %v1799, 4294901760
        %2203 = vmatmul.mubr.f32.gmra.mxu0 %v2202
        %v2204 = vpop.f32.mrf.mxu0
        %v2205 = vadd.f32 %v2020, %v2204
        %v2206 = vpop.f32.mrf.mxu0
        %2207 = vmatprep.mubr.f32.mxu0 0.0
        %v2208 = vand.u32 %v1802, 4294901760
        %2209 = vmatmul.mubr.f32.gmra.mxu0 %v2208
        %v2210 = vpop.f32.mrf.mxu0
        %v2211 = vadd.f32 %v2030, %v2210
        %v2212 = vpop.f32.mrf.mxu0
        %2213 = vdwg.mxu0
        %2214 = vmatprep.subr.mxu0 0.0
        %2215 = vmatpush1.msra.mxu0 0.0
        %2216 = vmatprep.subr.mxu0 0.0
        %2217 = vmatpush1.msra.mxu0 0.0
        %2218 = vmatprep.subr.mxu0 0.0
        %2219 = vmatpush1.msra.mxu0 0.0
        %2220 = vmatprep.subr.mxu0 0.0
        %2221 = vmatpush1.msra.mxu0 0.0
        %2222 = vmatprep.subr.mxu0 0.0
        %2223 = vmatpush1.msra.mxu0 0.0
        %2224 = vmatprep.subr.mxu0 0.0
        %2225 = vmatpush1.msra.mxu0 0.0
        %2226 = vmatprep.subr.mxu0 0.0
        %2227 = vmatpush1.msra.mxu0 0.0
        %2228 = vmatprep.subr.mxu0 0.0
        %2229 = vmatpush1.msra.mxu0 0.0
        %2230 = vmatprep.subr.mxu0 0.0
        %2231 = vmatpush1.msra.mxu0 0.0
        %2232 = vmatprep.subr.mxu0 0.0
        %2233 = vmatpush1.msra.mxu0 0.0
        %2234 = vmatprep.subr.mxu0 0.0
        %2235 = vmatpush1.msra.mxu0 0.0
        %2236 = vmatprep.subr.mxu0 0.0
        %2237 = vmatpush1.msra.mxu0 0.0
        %2238 = vmatprep.subr.mxu0 0.0
        %v2239 = vand.u32 %v448, 4294901760
        %v2240 = vsub.f32 %v448, %v2239
        %2241 = vmatpush1.msra.mxu0 %v2240
        %2242 = vmatprep.subr.mxu0 0.0
        %v2243 = vand.u32 %v447, 4294901760
        %v2244 = vsub.f32 %v447, %v2243
        %2245 = vmatpush1.msra.mxu0 %v2244
        %2246 = vmatprep.subr.mxu0 0.0
        %v2247 = vand.u32 %v446, 4294901760
        %v2248 = vsub.f32 %v446, %v2247
        %2249 = vmatpush1.msra.mxu0 %v2248
        %2250 = vmatprep.subr.mxu0 0.0
        %v2251 = vand.u32 %v445, 4294901760
        %v2252 = vsub.f32 %v445, %v2251
        %2253 = vmatpush1.msra.mxu0 %v2252
        %2254 = vmatprep.subr.mxu0 0.0
        %2255 = vmatpush2.msra.mxu0 0.0
        %2256 = vmatprep.subr.mxu0 0.0
        %2257 = vmatpush2.msra.mxu0 0.0
        %2258 = vmatprep.subr.mxu0 0.0
        %2259 = vmatpush2.msra.mxu0 0.0
        %2260 = vmatprep.subr.mxu0 0.0
        %2261 = vmatpush2.msra.mxu0 0.0
        %2262 = vmatprep.subr.mxu0 0.0
        %2263 = vmatpush2.msra.mxu0 0.0
        %2264 = vmatprep.subr.mxu0 0.0
        %2265 = vmatpush2.msra.mxu0 0.0
        %2266 = vmatprep.subr.mxu0 0.0
        %2267 = vmatpush2.msra.mxu0 0.0
        %2268 = vmatprep.subr.mxu0 0.0
        %2269 = vmatpush2.msra.mxu0 0.0
        %2270 = vmatprep.subr.mxu0 0.0
        %2271 = vmatpush2.msra.mxu0 0.0
        %2272 = vmatprep.subr.mxu0 0.0
        %2273 = vmatpush2.msra.mxu0 0.0
        %2274 = vmatprep.subr.mxu0 0.0
        %2275 = vmatpush2.msra.mxu0 0.0
        %2276 = vmatprep.subr.mxu0 0.0
        %2277 = vmatpush2.msra.mxu0 0.0
        %2278 = vmatprep.subr.mxu0 0.0
        %2279 = vmatpush2.msra.mxu0 0.0
        %2280 = vmatprep.subr.mxu0 0.0
        %2281 = vmatpush2.msra.mxu0 0.0
        %2282 = vmatprep.subr.mxu0 0.0
        %2283 = vmatpush2.msra.mxu0 0.0
        %2284 = vmatprep.subr.mxu0 0.0
        %2285 = vmatpush2.msra.mxu0 0.0
        %2286 = vmatprep.mubr.f32.mxu0 0.0
        %v2287 = vand.u32 %v1757, 4294901760
        %v2288 = vsub.f32 %v1757, %v2287
        %2289 = vmatmul.mubr.f32.gmra.mxu0 %v2288
        %v2290 = vpop.f32.mrf.mxu0
        %v2291 = vadd.f32 %v2121, %v2290
        %v2292 = vpop.f32.mrf.mxu0
        %2293 = vmatprep.mubr.f32.mxu0 0.0
        %v2294 = vand.u32 %v1760, 4294901760
        %v2295 = vsub.f32 %v1760, %v2294
        %2296 = vmatmul.mubr.f32.gmra.mxu0 %v2295
        %v2297 = vpop.f32.mrf.mxu0
        %v2298 = vadd.f32 %v2127, %v2297
        %v2299 = vpop.f32.mrf.mxu0
        %2300 = vmatprep.mubr.f32.mxu0 0.0
        %v2301 = vand.u32 %v1763, 4294901760
        %v2302 = vsub.f32 %v1763, %v2301
        %2303 = vmatmul.mubr.f32.gmra.mxu0 %v2302
        %v2304 = vpop.f32.mrf.mxu0
        %v2305 = vadd.f32 %v2133, %v2304
        %v2306 = vpop.f32.mrf.mxu0
        %2307 = vmatprep.mubr.f32.mxu0 0.0
        %v2308 = vand.u32 %v1766, 4294901760
        %v2309 = vsub.f32 %v1766, %v2308
        %2310 = vmatmul.mubr.f32.gmra.mxu0 %v2309
        %v2311 = vpop.f32.mrf.mxu0
        %v2312 = vadd.f32 %v2139, %v2311
        %v2313 = vpop.f32.mrf.mxu0
        %2314 = vmatprep.mubr.f32.mxu0 0.0
        %v2315 = vand.u32 %v1769, 4294901760
        %v2316 = vsub.f32 %v1769, %v2315
        %2317 = vmatmul.mubr.f32.gmra.mxu0 %v2316
        %v2318 = vpop.f32.mrf.mxu0
        %v2319 = vadd.f32 %v2145, %v2318
        %v2320 = vpop.f32.mrf.mxu0
        %2321 = vmatprep.mubr.f32.mxu0 0.0
        %v2322 = vand.u32 %v1772, 4294901760
        %v2323 = vsub.f32 %v1772, %v2322
        %2324 = vmatmul.mubr.f32.gmra.mxu0 %v2323
        %v2325 = vpop.f32.mrf.mxu0
        %v2326 = vadd.f32 %v2151, %v2325
        %v2327 = vpop.f32.mrf.mxu0
        %2328 = vmatprep.mubr.f32.mxu0 0.0
        %v2329 = vand.u32 %v1775, 4294901760
        %v2330 = vsub.f32 %v1775, %v2329
        %2331 = vmatmul.mubr.f32.gmra.mxu0 %v2330
        %v2332 = vpop.f32.mrf.mxu0
        %v2333 = vadd.f32 %v2157, %v2332
        %v2334 = vpop.f32.mrf.mxu0
        %2335 = vmatprep.mubr.f32.mxu0 0.0
        %v2336 = vand.u32 %v1778, 4294901760
        %v2337 = vsub.f32 %v1778, %v2336
        %2338 = vmatmul.mubr.f32.gmra.mxu0 %v2337
        %v2339 = vpop.f32.mrf.mxu0
        %v2340 = vadd.f32 %v2163, %v2339
        %v2341 = vpop.f32.mrf.mxu0
        %2342 = vmatprep.mubr.f32.mxu0 0.0
        %v2343 = vand.u32 %v1781, 4294901760
        %v2344 = vsub.f32 %v1781, %v2343
        %2345 = vmatmul.mubr.f32.gmra.mxu0 %v2344
        %v2346 = vpop.f32.mrf.mxu0
        %v2347 = vadd.f32 %v2169, %v2346
        %v2348 = vpop.f32.mrf.mxu0
        %2349 = vmatprep.mubr.f32.mxu0 0.0
        %v2350 = vand.u32 %v1784, 4294901760
        %v2351 = vsub.f32 %v1784, %v2350
        %2352 = vmatmul.mubr.f32.gmra.mxu0 %v2351
        %v2353 = vpop.f32.mrf.mxu0
        %v2354 = vadd.f32 %v2175, %v2353
        %v2355 = vpop.f32.mrf.mxu0
        %2356 = vmatprep.mubr.f32.mxu0 0.0
        %v2357 = vand.u32 %v1787, 4294901760
        %v2358 = vsub.f32 %v1787, %v2357
        %2359 = vmatmul.mubr.f32.gmra.mxu0 %v2358
        %v2360 = vpop.f32.mrf.mxu0
        %v2361 = vadd.f32 %v2181, %v2360
        %v2362 = vpop.f32.mrf.mxu0
        %2363 = vmatprep.mubr.f32.mxu0 0.0
        %v2364 = vand.u32 %v1790, 4294901760
        %v2365 = vsub.f32 %v1790, %v2364
        %2366 = vmatmul.mubr.f32.gmra.mxu0 %v2365
        %v2367 = vpop.f32.mrf.mxu0
        %v2368 = vadd.f32 %v2187, %v2367
        %v2369 = vpop.f32.mrf.mxu0
        %2370 = vmatprep.mubr.f32.mxu0 0.0
        %v2371 = vand.u32 %v1793, 4294901760
        %v2372 = vsub.f32 %v1793, %v2371
        %2373 = vmatmul.mubr.f32.gmra.mxu0 %v2372
        %v2374 = vpop.f32.mrf.mxu0
        %v2375 = vadd.f32 %v2193, %v2374
        %v2376 = vpop.f32.mrf.mxu0
        %2377 = vmatprep.mubr.f32.mxu0 0.0
        %v2378 = vand.u32 %v1796, 4294901760
        %v2379 = vsub.f32 %v1796, %v2378
        %2380 = vmatmul.mubr.f32.gmra.mxu0 %v2379
        %v2381 = vpop.f32.mrf.mxu0
        %v2382 = vadd.f32 %v2199, %v2381
        %v2383 = vpop.f32.mrf.mxu0
        %2384 = vmatprep.mubr.f32.mxu0 0.0
        %v2385 = vand.u32 %v1799, 4294901760
        %v2386 = vsub.f32 %v1799, %v2385
        %2387 = vmatmul.mubr.f32.gmra.mxu0 %v2386
        %v2388 = vpop.f32.mrf.mxu0
        %v2389 = vadd.f32 %v2205, %v2388
        %v2390 = vpop.f32.mrf.mxu0
        %2391 = vmatprep.mubr.f32.mxu0 0.0
        %v2392 = vand.u32 %v1802, 4294901760
        %v2393 = vsub.f32 %v1802, %v2392
        %2394 = vmatmul.mubr.f32.gmra.mxu0 %v2393
        %v2395 = vpop.f32.mrf.mxu0
        %v2396 = vadd.f32 %v2211, %v2395
        %v2397 = vpop.f32.mrf.mxu0
        %2398 = vdwg.mxu0
        %2399 = vmatprep.subr.mxu0 0.0
        %2400 = vmatpush1.msra.mxu0 0.0
        %2401 = vmatprep.subr.mxu0 0.0
        %2402 = vmatpush1.msra.mxu0 0.0
        %2403 = vmatprep.subr.mxu0 0.0
        %2404 = vmatpush1.msra.mxu0 0.0
        %2405 = vmatprep.subr.mxu0 0.0
        %2406 = vmatpush1.msra.mxu0 0.0
        %2407 = vmatprep.subr.mxu0 0.0
        %2408 = vmatpush1.msra.mxu0 0.0
        %2409 = vmatprep.subr.mxu0 0.0
        %2410 = vmatpush1.msra.mxu0 0.0
        %2411 = vmatprep.subr.mxu0 0.0
        %2412 = vmatpush1.msra.mxu0 0.0
        %2413 = vmatprep.subr.mxu0 0.0
        %2414 = vmatpush1.msra.mxu0 0.0
        %2415 = vmatprep.subr.mxu0 0.0
        %2416 = vmatpush1.msra.mxu0 0.0
        %2417 = vmatprep.subr.mxu0 0.0
        %2418 = vmatpush1.msra.mxu0 0.0
        %2419 = vmatprep.subr.mxu0 0.0
        %2420 = vmatpush1.msra.mxu0 0.0
        %2421 = vmatprep.subr.mxu0 0.0
        %2422 = vmatpush1.msra.mxu0 0.0
        %2423 = vmatprep.subr.mxu0 0.0
        %v2424 = vand.u32 %v448, 4294901760
        %2425 = vmatpush1.msra.mxu0 %v2424
        %2426 = vmatprep.subr.mxu0 0.0
        %v2427 = vand.u32 %v447, 4294901760
        %2428 = vmatpush1.msra.mxu0 %v2427
        %2429 = vmatprep.subr.mxu0 0.0
        %v2430 = vand.u32 %v446, 4294901760
        %2431 = vmatpush1.msra.mxu0 %v2430
        %2432 = vmatprep.subr.mxu0 0.0
        %v2433 = vand.u32 %v445, 4294901760
        %2434 = vmatpush1.msra.mxu0 %v2433
        %2435 = vmatprep.subr.mxu0 0.0
        %2436 = vmatpush2.msra.mxu0 0.0
        %2437 = vmatprep.subr.mxu0 0.0
        %2438 = vmatpush2.msra.mxu0 0.0
        %2439 = vmatprep.subr.mxu0 0.0
        %2440 = vmatpush2.msra.mxu0 0.0
        %2441 = vmatprep.subr.mxu0 0.0
        %2442 = vmatpush2.msra.mxu0 0.0
        %2443 = vmatprep.subr.mxu0 0.0
        %2444 = vmatpush2.msra.mxu0 0.0
        %2445 = vmatprep.subr.mxu0 0.0
        %2446 = vmatpush2.msra.mxu0 0.0
        %2447 = vmatprep.subr.mxu0 0.0
        %2448 = vmatpush2.msra.mxu0 0.0
        %2449 = vmatprep.subr.mxu0 0.0
        %2450 = vmatpush2.msra.mxu0 0.0
        %2451 = vmatprep.subr.mxu0 0.0
        %2452 = vmatpush2.msra.mxu0 0.0
        %2453 = vmatprep.subr.mxu0 0.0
        %2454 = vmatpush2.msra.mxu0 0.0
        %2455 = vmatprep.subr.mxu0 0.0
        %2456 = vmatpush2.msra.mxu0 0.0
        %2457 = vmatprep.subr.mxu0 0.0
        %2458 = vmatpush2.msra.mxu0 0.0
        %2459 = vmatprep.subr.mxu0 0.0
        %2460 = vmatpush2.msra.mxu0 0.0
        %2461 = vmatprep.subr.mxu0 0.0
        %2462 = vmatpush2.msra.mxu0 0.0
        %2463 = vmatprep.subr.mxu0 0.0
        %2464 = vmatpush2.msra.mxu0 0.0
        %2465 = vmatprep.subr.mxu0 0.0
        %2466 = vmatpush2.msra.mxu0 0.0
        %2467 = vmatprep.mubr.f32.mxu0 0.0
        %v2468 = vand.u32 %v1757, 4294901760
        %v2469 = vsub.f32 %v1757, %v2468
        %v2470 = vand.u32 %v2469, 4294901760
        %2471 = vmatmul.mubr.f32.gmra.mxu0 %v2470
        %v2472 = vpop.f32.mrf.mxu0
        %v2473 = vadd.f32 %v2291, %v2472
        %v2474 = vpop.f32.mrf.mxu0
        %2475 = vmatprep.mubr.f32.mxu0 0.0
        %v2476 = vand.u32 %v1760, 4294901760
        %v2477 = vsub.f32 %v1760, %v2476
        %v2478 = vand.u32 %v2477, 4294901760
        %2479 = vmatmul.mubr.f32.gmra.mxu0 %v2478
        %v2480 = vpop.f32.mrf.mxu0
        %v2481 = vadd.f32 %v2298, %v2480
        %v2482 = vpop.f32.mrf.mxu0
        %2483 = vmatprep.mubr.f32.mxu0 0.0
        %v2484 = vand.u32 %v1763, 4294901760
        %v2485 = vsub.f32 %v1763, %v2484
        %v2486 = vand.u32 %v2485, 4294901760
        %2487 = vmatmul.mubr.f32.gmra.mxu0 %v2486
        %v2488 = vpop.f32.mrf.mxu0
        %v2489 = vadd.f32 %v2305, %v2488
        %v2490 = vpop.f32.mrf.mxu0
        %2491 = vmatprep.mubr.f32.mxu0 0.0
        %v2492 = vand.u32 %v1766, 4294901760
        %v2493 = vsub.f32 %v1766, %v2492
        %v2494 = vand.u32 %v2493, 4294901760
        %2495 = vmatmul.mubr.f32.gmra.mxu0 %v2494
        %v2496 = vpop.f32.mrf.mxu0
        %v2497 = vadd.f32 %v2312, %v2496
        %v2498 = vpop.f32.mrf.mxu0
        %2499 = vmatprep.mubr.f32.mxu0 0.0
        %v2500 = vand.u32 %v1769, 4294901760
        %v2501 = vsub.f32 %v1769, %v2500
        %v2502 = vand.u32 %v2501, 4294901760
        %2503 = vmatmul.mubr.f32.gmra.mxu0 %v2502
        %v2504 = vpop.f32.mrf.mxu0
        %v2505 = vadd.f32 %v2319, %v2504
        %v2506 = vpop.f32.mrf.mxu0
        %2507 = vmatprep.mubr.f32.mxu0 0.0
        %v2508 = vand.u32 %v1772, 4294901760
        %v2509 = vsub.f32 %v1772, %v2508
        %v2510 = vand.u32 %v2509, 4294901760
        %2511 = vmatmul.mubr.f32.gmra.mxu0 %v2510
        %v2512 = vpop.f32.mrf.mxu0
        %v2513 = vadd.f32 %v2326, %v2512
        %v2514 = vpop.f32.mrf.mxu0
        %2515 = vmatprep.mubr.f32.mxu0 0.0
        %v2516 = vand.u32 %v1775, 4294901760
        %v2517 = vsub.f32 %v1775, %v2516
        %v2518 = vand.u32 %v2517, 4294901760
        %2519 = vmatmul.mubr.f32.gmra.mxu0 %v2518
        %v2520 = vpop.f32.mrf.mxu0
        %v2521 = vadd.f32 %v2333, %v2520
        %v2522 = vpop.f32.mrf.mxu0
        %2523 = vmatprep.mubr.f32.mxu0 0.0
        %v2524 = vand.u32 %v1778, 4294901760
        %v2525 = vsub.f32 %v1778, %v2524
        %v2526 = vand.u32 %v2525, 4294901760
        %2527 = vmatmul.mubr.f32.gmra.mxu0 %v2526
        %v2528 = vpop.f32.mrf.mxu0
        %v2529 = vadd.f32 %v2340, %v2528
        %v2530 = vpop.f32.mrf.mxu0
        %2531 = vmatprep.mubr.f32.mxu0 0.0
        %v2532 = vand.u32 %v1781, 4294901760
        %v2533 = vsub.f32 %v1781, %v2532
        %v2534 = vand.u32 %v2533, 4294901760
        %2535 = vmatmul.mubr.f32.gmra.mxu0 %v2534
        %v2536 = vpop.f32.mrf.mxu0
        %v2537 = vadd.f32 %v2347, %v2536
        %v2538 = vpop.f32.mrf.mxu0
        %2539 = vmatprep.mubr.f32.mxu0 0.0
        %v2540 = vand.u32 %v1784, 4294901760
        %v2541 = vsub.f32 %v1784, %v2540
        %v2542 = vand.u32 %v2541, 4294901760
        %2543 = vmatmul.mubr.f32.gmra.mxu0 %v2542
        %v2544 = vpop.f32.mrf.mxu0
        %v2545 = vadd.f32 %v2354, %v2544
        %v2546 = vpop.f32.mrf.mxu0
        %2547 = vmatprep.mubr.f32.mxu0 0.0
        %v2548 = vand.u32 %v1787, 4294901760
        %v2549 = vsub.f32 %v1787, %v2548
        %v2550 = vand.u32 %v2549, 4294901760
        %2551 = vmatmul.mubr.f32.gmra.mxu0 %v2550
        %v2552 = vpop.f32.mrf.mxu0
        %v2553 = vadd.f32 %v2361, %v2552
        %v2554 = vpop.f32.mrf.mxu0
        %2555 = vmatprep.mubr.f32.mxu0 0.0
        %v2556 = vand.u32 %v1790, 4294901760
        %v2557 = vsub.f32 %v1790, %v2556
        %v2558 = vand.u32 %v2557, 4294901760
        %2559 = vmatmul.mubr.f32.gmra.mxu0 %v2558
        %v2560 = vpop.f32.mrf.mxu0
        %v2561 = vadd.f32 %v2368, %v2560
        %v2562 = vpop.f32.mrf.mxu0
        %2563 = vmatprep.mubr.f32.mxu0 0.0
        %v2564 = vand.u32 %v1793, 4294901760
        %v2565 = vsub.f32 %v1793, %v2564
        %v2566 = vand.u32 %v2565, 4294901760
        %2567 = vmatmul.mubr.f32.gmra.mxu0 %v2566
        %v2568 = vpop.f32.mrf.mxu0
        %v2569 = vadd.f32 %v2375, %v2568
        %v2570 = vpop.f32.mrf.mxu0
        %2571 = vmatprep.mubr.f32.mxu0 0.0
        %v2572 = vand.u32 %v1796, 4294901760
        %v2573 = vsub.f32 %v1796, %v2572
        %v2574 = vand.u32 %v2573, 4294901760
        %2575 = vmatmul.mubr.f32.gmra.mxu0 %v2574
        %v2576 = vpop.f32.mrf.mxu0
        %v2577 = vadd.f32 %v2382, %v2576
        %v2578 = vpop.f32.mrf.mxu0
        %2579 = vmatprep.mubr.f32.mxu0 0.0
        %v2580 = vand.u32 %v1799, 4294901760
        %v2581 = vsub.f32 %v1799, %v2580
        %v2582 = vand.u32 %v2581, 4294901760
        %2583 = vmatmul.mubr.f32.gmra.mxu0 %v2582
        %v2584 = vpop.f32.mrf.mxu0
        %v2585 = vadd.f32 %v2389, %v2584
        %v2586 = vpop.f32.mrf.mxu0
        %2587 = vmatprep.mubr.f32.mxu0 0.0
        %v2588 = vand.u32 %v1802, 4294901760
        %v2589 = vsub.f32 %v1802, %v2588
        %v2590 = vand.u32 %v2589, 4294901760
        %2591 = vmatmul.mubr.f32.gmra.mxu0 %v2590
        %v2592 = vpop.f32.mrf.mxu0
        %v2593 = vadd.f32 %v2396, %v2592
        %v2594 = vpop.f32.mrf.mxu0
        %2595 = vdwg.mxu0
        %2596 = vmatprep.subr.mxu0 0.0
        %2597 = vmatpush1.msra.mxu0 0.0
        %2598 = vmatprep.subr.mxu0 0.0
        %2599 = vmatpush1.msra.mxu0 0.0
        %2600 = vmatprep.subr.mxu0 0.0
        %2601 = vmatpush1.msra.mxu0 0.0
        %2602 = vmatprep.subr.mxu0 0.0
        %2603 = vmatpush1.msra.mxu0 0.0
        %2604 = vmatprep.subr.mxu0 0.0
        %2605 = vmatpush1.msra.mxu0 0.0
        %2606 = vmatprep.subr.mxu0 0.0
        %2607 = vmatpush1.msra.mxu0 0.0
        %2608 = vmatprep.subr.mxu0 0.0
        %2609 = vmatpush1.msra.mxu0 0.0
        %2610 = vmatprep.subr.mxu0 0.0
        %2611 = vmatpush1.msra.mxu0 0.0
        %2612 = vmatprep.subr.mxu0 0.0
        %2613 = vmatpush1.msra.mxu0 0.0
        %2614 = vmatprep.subr.mxu0 0.0
        %2615 = vmatpush1.msra.mxu0 0.0
        %2616 = vmatprep.subr.mxu0 0.0
        %2617 = vmatpush1.msra.mxu0 0.0
        %2618 = vmatprep.subr.mxu0 0.0
        %2619 = vmatpush1.msra.mxu0 0.0
        %2620 = vmatprep.subr.mxu0 0.0
        %v2621 = vand.u32 %v448, 4294901760
        %v2622 = vsub.f32 %v448, %v2621
        %v2623 = vand.u32 %v2622, 4294901760
        %2624 = vmatpush1.msra.mxu0 %v2623
        %2625 = vmatprep.subr.mxu0 0.0
        %v2626 = vand.u32 %v447, 4294901760
        %v2627 = vsub.f32 %v447, %v2626
        %v2628 = vand.u32 %v2627, 4294901760
        %2629 = vmatpush1.msra.mxu0 %v2628
        %2630 = vmatprep.subr.mxu0 0.0
        %v2631 = vand.u32 %v446, 4294901760
        %v2632 = vsub.f32 %v446, %v2631
        %v2633 = vand.u32 %v2632, 4294901760
        %2634 = vmatpush1.msra.mxu0 %v2633
        %2635 = vmatprep.subr.mxu0 0.0
        %v2636 = vand.u32 %v445, 4294901760
        %v2637 = vsub.f32 %v445, %v2636
        %v2638 = vand.u32 %v2637, 4294901760
        %2639 = vmatpush1.msra.mxu0 %v2638
        %2640 = vmatprep.subr.mxu0 0.0
        %2641 = vmatpush2.msra.mxu0 0.0
        %2642 = vmatprep.subr.mxu0 0.0
        %2643 = vmatpush2.msra.mxu0 0.0
        %2644 = vmatprep.subr.mxu0 0.0
        %2645 = vmatpush2.msra.mxu0 0.0
        %2646 = vmatprep.subr.mxu0 0.0
        %2647 = vmatpush2.msra.mxu0 0.0
        %2648 = vmatprep.subr.mxu0 0.0
        %2649 = vmatpush2.msra.mxu0 0.0
        %2650 = vmatprep.subr.mxu0 0.0
        %2651 = vmatpush2.msra.mxu0 0.0
        %2652 = vmatprep.subr.mxu0 0.0
        %2653 = vmatpush2.msra.mxu0 0.0
        %2654 = vmatprep.subr.mxu0 0.0
        %2655 = vmatpush2.msra.mxu0 0.0
        %2656 = vmatprep.subr.mxu0 0.0
        %2657 = vmatpush2.msra.mxu0 0.0
        %2658 = vmatprep.subr.mxu0 0.0
        %2659 = vmatpush2.msra.mxu0 0.0
        %2660 = vmatprep.subr.mxu0 0.0
        %2661 = vmatpush2.msra.mxu0 0.0
        %2662 = vmatprep.subr.mxu0 0.0
        %2663 = vmatpush2.msra.mxu0 0.0
        %2664 = vmatprep.subr.mxu0 0.0
        %2665 = vmatpush2.msra.mxu0 0.0
        %2666 = vmatprep.subr.mxu0 0.0
        %2667 = vmatpush2.msra.mxu0 0.0
        %2668 = vmatprep.subr.mxu0 0.0
        %2669 = vmatpush2.msra.mxu0 0.0
        %2670 = vmatprep.subr.mxu0 0.0
        %2671 = vmatpush2.msra.mxu0 0.0
        %2672 = vmatprep.mubr.f32.mxu0 0.0
        %v2673 = vand.u32 %v1757, 4294901760
        %2674 = vmatmul.mubr.f32.gmra.mxu0 %v2673
        %v2675 = vpop.f32.mrf.mxu0
        %v2676 = vadd.f32 %v2473, %v2675
        %v2677 = vpop.f32.mrf.mxu0
        %2678 = vmatprep.mubr.f32.mxu0 0.0
        %v2679 = vand.u32 %v1760, 4294901760
        %2680 = vmatmul.mubr.f32.gmra.mxu0 %v2679
        %v2681 = vpop.f32.mrf.mxu0
        %v2682 = vadd.f32 %v2481, %v2681
        %v2683 = vpop.f32.mrf.mxu0
        %2684 = vmatprep.mubr.f32.mxu0 0.0
        %v2685 = vand.u32 %v1763, 4294901760
        %2686 = vmatmul.mubr.f32.gmra.mxu0 %v2685
        %v2687 = vpop.f32.mrf.mxu0
        %v2688 = vadd.f32 %v2489, %v2687
        %v2689 = vpop.f32.mrf.mxu0
        %2690 = vmatprep.mubr.f32.mxu0 0.0
        %v2691 = vand.u32 %v1766, 4294901760
        %2692 = vmatmul.mubr.f32.gmra.mxu0 %v2691
        %v2693 = vpop.f32.mrf.mxu0
        %v2694 = vadd.f32 %v2497, %v2693
        %v2695 = vpop.f32.mrf.mxu0
        %2696 = vmatprep.mubr.f32.mxu0 0.0
        %v2697 = vand.u32 %v1769, 4294901760
        %2698 = vmatmul.mubr.f32.gmra.mxu0 %v2697
        %v2699 = vpop.f32.mrf.mxu0
        %v2700 = vadd.f32 %v2505, %v2699
        %v2701 = vpop.f32.mrf.mxu0
        %2702 = vmatprep.mubr.f32.mxu0 0.0
        %v2703 = vand.u32 %v1772, 4294901760
        %2704 = vmatmul.mubr.f32.gmra.mxu0 %v2703
        %v2705 = vpop.f32.mrf.mxu0
        %v2706 = vadd.f32 %v2513, %v2705
        %v2707 = vpop.f32.mrf.mxu0
        %2708 = vmatprep.mubr.f32.mxu0 0.0
        %v2709 = vand.u32 %v1775, 4294901760
        %2710 = vmatmul.mubr.f32.gmra.mxu0 %v2709
        %v2711 = vpop.f32.mrf.mxu0
        %v2712 = vadd.f32 %v2521, %v2711
        %v2713 = vpop.f32.mrf.mxu0
        %2714 = vmatprep.mubr.f32.mxu0 0.0
        %v2715 = vand.u32 %v1778, 4294901760
        %2716 = vmatmul.mubr.f32.gmra.mxu0 %v2715
        %v2717 = vpop.f32.mrf.mxu0
        %v2718 = vadd.f32 %v2529, %v2717
        %v2719 = vpop.f32.mrf.mxu0
        %2720 = vmatprep.mubr.f32.mxu0 0.0
        %v2721 = vand.u32 %v1781, 4294901760
        %2722 = vmatmul.mubr.f32.gmra.mxu0 %v2721
        %v2723 = vpop.f32.mrf.mxu0
        %v2724 = vadd.f32 %v2537, %v2723
        %v2725 = vpop.f32.mrf.mxu0
        %2726 = vmatprep.mubr.f32.mxu0 0.0
        %v2727 = vand.u32 %v1784, 4294901760
        %2728 = vmatmul.mubr.f32.gmra.mxu0 %v2727
        %v2729 = vpop.f32.mrf.mxu0
        %v2730 = vadd.f32 %v2545, %v2729
        %v2731 = vpop.f32.mrf.mxu0
        %2732 = vmatprep.mubr.f32.mxu0 0.0
        %v2733 = vand.u32 %v1787, 4294901760
        %2734 = vmatmul.mubr.f32.gmra.mxu0 %v2733
        %v2735 = vpop.f32.mrf.mxu0
        %v2736 = vadd.f32 %v2553, %v2735
        %v2737 = vpop.f32.mrf.mxu0
        %2738 = vmatprep.mubr.f32.mxu0 0.0
        %v2739 = vand.u32 %v1790, 4294901760
        %2740 = vmatmul.mubr.f32.gmra.mxu0 %v2739
        %v2741 = vpop.f32.mrf.mxu0
        %v2742 = vadd.f32 %v2561, %v2741
        %v2743 = vpop.f32.mrf.mxu0
        %2744 = vmatprep.mubr.f32.mxu0 0.0
        %v2745 = vand.u32 %v1793, 4294901760
        %2746 = vmatmul.mubr.f32.gmra.mxu0 %v2745
        %v2747 = vpop.f32.mrf.mxu0
        %v2748 = vadd.f32 %v2569, %v2747
        %v2749 = vpop.f32.mrf.mxu0
        %2750 = vmatprep.mubr.f32.mxu0 0.0
        %v2751 = vand.u32 %v1796, 4294901760
        %2752 = vmatmul.mubr.f32.gmra.mxu0 %v2751
        %v2753 = vpop.f32.mrf.mxu0
        %v2754 = vadd.f32 %v2577, %v2753
        %v2755 = vpop.f32.mrf.mxu0
        %2756 = vmatprep.mubr.f32.mxu0 0.0
        %v2757 = vand.u32 %v1799, 4294901760
        %2758 = vmatmul.mubr.f32.gmra.mxu0 %v2757
        %v2759 = vpop.f32.mrf.mxu0
        %v2760 = vadd.f32 %v2585, %v2759
        %v2761 = vpop.f32.mrf.mxu0
        %2762 = vmatprep.mubr.f32.mxu0 0.0
        %v2763 = vand.u32 %v1802, 4294901760
        %2764 = vmatmul.mubr.f32.gmra.mxu0 %v2763
        %v2765 = vpop.f32.mrf.mxu0
        %v2766 = vadd.f32 %v2593, %v2765
        %v2767 = vpop.f32.mrf.mxu0
        %2768 = vdwg.mxu0
        %2769 = vmatprep.subr.mxu0 0.0
        %2770 = vmatpush1.msra.mxu0 0.0
        %2771 = vmatprep.subr.mxu0 0.0
        %2772 = vmatpush1.msra.mxu0 0.0
        %2773 = vmatprep.subr.mxu0 0.0
        %2774 = vmatpush1.msra.mxu0 0.0
        %2775 = vmatprep.subr.mxu0 0.0
        %2776 = vmatpush1.msra.mxu0 0.0
        %2777 = vmatprep.subr.mxu0 0.0
        %2778 = vmatpush1.msra.mxu0 0.0
        %2779 = vmatprep.subr.mxu0 0.0
        %2780 = vmatpush1.msra.mxu0 0.0
        %2781 = vmatprep.subr.mxu0 0.0
        %2782 = vmatpush1.msra.mxu0 0.0
        %2783 = vmatprep.subr.mxu0 0.0
        %2784 = vmatpush1.msra.mxu0 0.0
        %2785 = vmatprep.subr.mxu0 0.0
        %2786 = vmatpush1.msra.mxu0 0.0
        %2787 = vmatprep.subr.mxu0 0.0
        %2788 = vmatpush1.msra.mxu0 0.0
        %2789 = vmatprep.subr.mxu0 0.0
        %2790 = vmatpush1.msra.mxu0 0.0
        %2791 = vmatprep.subr.mxu0 0.0
        %2792 = vmatpush1.msra.mxu0 0.0
        %2793 = vmatprep.subr.mxu0 0.0
        %v2794 = vand.u32 %v448, 4294901760
        %2795 = vmatpush1.msra.mxu0 %v2794
        %2796 = vmatprep.subr.mxu0 0.0
        %v2797 = vand.u32 %v447, 4294901760
        %2798 = vmatpush1.msra.mxu0 %v2797
        %2799 = vmatprep.subr.mxu0 0.0
        %v2800 = vand.u32 %v446, 4294901760
        %2801 = vmatpush1.msra.mxu0 %v2800
        %2802 = vmatprep.subr.mxu0 0.0
        %v2803 = vand.u32 %v445, 4294901760
        %2804 = vmatpush1.msra.mxu0 %v2803
        %2805 = vmatprep.subr.mxu0 0.0
        %2806 = vmatpush2.msra.mxu0 0.0
        %2807 = vmatprep.subr.mxu0 0.0
        %2808 = vmatpush2.msra.mxu0 0.0
        %2809 = vmatprep.subr.mxu0 0.0
        %2810 = vmatpush2.msra.mxu0 0.0
        %2811 = vmatprep.subr.mxu0 0.0
        %2812 = vmatpush2.msra.mxu0 0.0
        %2813 = vmatprep.subr.mxu0 0.0
        %2814 = vmatpush2.msra.mxu0 0.0
        %2815 = vmatprep.subr.mxu0 0.0
        %2816 = vmatpush2.msra.mxu0 0.0
        %2817 = vmatprep.subr.mxu0 0.0
        %2818 = vmatpush2.msra.mxu0 0.0
        %2819 = vmatprep.subr.mxu0 0.0
        %2820 = vmatpush2.msra.mxu0 0.0
        %2821 = vmatprep.subr.mxu0 0.0
        %2822 = vmatpush2.msra.mxu0 0.0
        %2823 = vmatprep.subr.mxu0 0.0
        %2824 = vmatpush2.msra.mxu0 0.0
        %2825 = vmatprep.subr.mxu0 0.0
        %2826 = vmatpush2.msra.mxu0 0.0
        %2827 = vmatprep.subr.mxu0 0.0
        %2828 = vmatpush2.msra.mxu0 0.0
        %2829 = vmatprep.subr.mxu0 0.0
        %2830 = vmatpush2.msra.mxu0 0.0
        %2831 = vmatprep.subr.mxu0 0.0
        %2832 = vmatpush2.msra.mxu0 0.0
        %2833 = vmatprep.subr.mxu0 0.0
        %2834 = vmatpush2.msra.mxu0 0.0
        %2835 = vmatprep.subr.mxu0 0.0
        %2836 = vmatpush2.msra.mxu0 0.0
        %2837 = vmatprep.mubr.f32.mxu0 0.0
        %v2838 = vand.u32 %v1757, 4294901760
        %2839 = vmatmul.mubr.f32.gmra.mxu0 %v2838
        %v2840 = vpop.f32.mrf.mxu0
        %v2841 = vadd.f32 %v2676, %v2840
        %v2842 = vpop.f32.mrf.mxu0
        %2843 = vmatprep.mubr.f32.mxu0 0.0
        %v2844 = vand.u32 %v1760, 4294901760
        %2845 = vmatmul.mubr.f32.gmra.mxu0 %v2844
        %v2846 = vpop.f32.mrf.mxu0
        %v2847 = vadd.f32 %v2682, %v2846
        %v2848 = vpop.f32.mrf.mxu0
        %2849 = vmatprep.mubr.f32.mxu0 0.0
        %v2850 = vand.u32 %v1763, 4294901760
        %2851 = vmatmul.mubr.f32.gmra.mxu0 %v2850
        %v2852 = vpop.f32.mrf.mxu0
        %v2853 = vadd.f32 %v2688, %v2852
        %v2854 = vpop.f32.mrf.mxu0
        %2855 = vmatprep.mubr.f32.mxu0 0.0
        %v2856 = vand.u32 %v1766, 4294901760
        %2857 = vmatmul.mubr.f32.gmra.mxu0 %v2856
        %v2858 = vpop.f32.mrf.mxu0
        %v2859 = vadd.f32 %v2694, %v2858
        %v2860 = vpop.f32.mrf.mxu0
        %2861 = vmatprep.mubr.f32.mxu0 0.0
        %v2862 = vand.u32 %v1769, 4294901760
        %2863 = vmatmul.mubr.f32.gmra.mxu0 %v2862
        %v2864 = vpop.f32.mrf.mxu0
        %v2865 = vadd.f32 %v2700, %v2864
        %v2866 = vpop.f32.mrf.mxu0
        %2867 = vmatprep.mubr.f32.mxu0 0.0
        %v2868 = vand.u32 %v1772, 4294901760
        %2869 = vmatmul.mubr.f32.gmra.mxu0 %v2868
        %v2870 = vpop.f32.mrf.mxu0
        %v2871 = vadd.f32 %v2706, %v2870
        %v2872 = vpop.f32.mrf.mxu0
        %2873 = vmatprep.mubr.f32.mxu0 0.0
        %v2874 = vand.u32 %v1775, 4294901760
        %2875 = vmatmul.mubr.f32.gmra.mxu0 %v2874
        %v2876 = vpop.f32.mrf.mxu0
        %v2877 = vadd.f32 %v2712, %v2876
        %v2878 = vpop.f32.mrf.mxu0
        %2879 = vmatprep.mubr.f32.mxu0 0.0
        %v2880 = vand.u32 %v1778, 4294901760
        %2881 = vmatmul.mubr.f32.gmra.mxu0 %v2880
        %v2882 = vpop.f32.mrf.mxu0
        %v2883 = vadd.f32 %v2718, %v2882
        %v2884 = vpop.f32.mrf.mxu0
        %2885 = vmatprep.mubr.f32.mxu0 0.0
        %v2886 = vand.u32 %v1781, 4294901760
        %2887 = vmatmul.mubr.f32.gmra.mxu0 %v2886
        %v2888 = vpop.f32.mrf.mxu0
        %v2889 = vadd.f32 %v2724, %v2888
        %v2890 = vpop.f32.mrf.mxu0
        %2891 = vmatprep.mubr.f32.mxu0 0.0
        %v2892 = vand.u32 %v1784, 4294901760
        %2893 = vmatmul.mubr.f32.gmra.mxu0 %v2892
        %v2894 = vpop.f32.mrf.mxu0
        %v2895 = vadd.f32 %v2730, %v2894
        %v2896 = vpop.f32.mrf.mxu0
        %2897 = vmatprep.mubr.f32.mxu0 0.0
        %v2898 = vand.u32 %v1787, 4294901760
        %2899 = vmatmul.mubr.f32.gmra.mxu0 %v2898
        %v2900 = vpop.f32.mrf.mxu0
        %v2901 = vadd.f32 %v2736, %v2900
        %v2902 = vpop.f32.mrf.mxu0
        %2903 = vmatprep.mubr.f32.mxu0 0.0
        %v2904 = vand.u32 %v1790, 4294901760
        %2905 = vmatmul.mubr.f32.gmra.mxu0 %v2904
        %v2906 = vpop.f32.mrf.mxu0
        %v2907 = vadd.f32 %v2742, %v2906
        %v2908 = vpop.f32.mrf.mxu0
        %2909 = vmatprep.mubr.f32.mxu0 0.0
        %v2910 = vand.u32 %v1793, 4294901760
        %2911 = vmatmul.mubr.f32.gmra.mxu0 %v2910
        %v2912 = vpop.f32.mrf.mxu0
        %v2913 = vadd.f32 %v2748, %v2912
        %v2914 = vpop.f32.mrf.mxu0
        %2915 = vmatprep.mubr.f32.mxu0 0.0
        %v2916 = vand.u32 %v1796, 4294901760
        %2917 = vmatmul.mubr.f32.gmra.mxu0 %v2916
        %v2918 = vpop.f32.mrf.mxu0
        %v2919 = vadd.f32 %v2754, %v2918
        %v2920 = vpop.f32.mrf.mxu0
        %2921 = vmatprep.mubr.f32.mxu0 0.0
        %v2922 = vand.u32 %v1799, 4294901760
        %2923 = vmatmul.mubr.f32.gmra.mxu0 %v2922
        %v2924 = vpop.f32.mrf.mxu0
        %v2925 = vadd.f32 %v2760, %v2924
        %v2926 = vpop.f32.mrf.mxu0
        %2927 = vmatprep.mubr.f32.mxu0 0.0
        %v2928 = vand.u32 %v1802, 4294901760
        %2929 = vmatmul.mubr.f32.gmra.mxu0 %v2928
        %v2930 = vpop.f32.mrf.mxu0
        %v2931 = vadd.f32 %v2766, %v2930
        %v2932 = vpop.f32.mrf.mxu0
        %2933 = vdwg.mxu0
        %v2934 = vadd.f32 %v1708, %v2841
        %v2935 = vadd.f32 %v1709, %v2847
        %v2936 = vadd.f32 %v1710, %v2853
        %v2937 = vadd.f32 %v1711, %v2859
        %v2938 = vadd.f32 %v1712, %v2865
        %v2939 = vadd.f32 %v1713, %v2871
        %v2940 = vadd.f32 %v1714, %v2877
        %v2941 = vadd.f32 %v1715, %v2883
        %v2942 = vadd.f32 %v1716, %v2889
        %v2943 = vadd.f32 %v1717, %v2895
        %v2944 = vadd.f32 %v1718, %v2901
        %v2945 = vadd.f32 %v1719, %v2907
        %v2946 = vadd.f32 %v1720, %v2913
        %v2947 = vadd.f32 %v1721, %v2919
        %v2948 = vadd.f32 %v1722, %v2925
        %v2949 = vadd.f32 %v1723, %v2931
        %2950 = vst [vmem:[#allocation3] sm:$0xff] %v2934
        %2951 = vst [vmem:[#allocation3 + $0x8] sm:$0xff] %v2935
        %2952 = vst [vmem:[#allocation3 + $0x10] sm:$0xff] %v2936
        %2953 = vst [vmem:[#allocation3 + $0x18] sm:$0xff] %v2937
        %2954 = vst [vmem:[#allocation3 + $0x20] sm:$0xff] %v2938
        %2955 = vst [vmem:[#allocation3 + $0x28] sm:$0xff] %v2939
        %2956 = vst [vmem:[#allocation3 + $0x30] sm:$0xff] %v2940
        %2957 = vst [vmem:[#allocation3 + $0x38] sm:$0xff] %v2941
        %2958 = vst [vmem:[#allocation3 + $0x40] sm:$0xff] %v2942
        %2959 = vst [vmem:[#allocation3 + $0x48] sm:$0xff] %v2943
        %2960 = vst [vmem:[#allocation3 + $0x50] sm:$0xff] %v2944
        %2961 = vst [vmem:[#allocation3 + $0x58] sm:$0xff] %v2945
        %2962 = vst [vmem:[#allocation3 + $0x60] sm:$0xff] %v2946
        %2963 = vst [vmem:[#allocation3 + $0x68] sm:$0xff] %v2947
        %2964 = vst [vmem:[#allocation3 + $0x70] sm:$0xff] %v2948
        %2965 = vst [vmem:[#allocation3 + $0x78] sm:$0xff] %v2949
        %p2966 = scmp.eq.s32.totalorder %s379, 0
        // Predicated region
        $region61: #{tpu_custom_call.1} parent=35 // pred_check
          %p2967 = pneg %p2966
        $region62: #{tpu_custom_call.1} parent=35 // pred_check_branch
          %2969 = sbr.rel (%p2967) target = $region64
        $region63: #{tpu_custom_call.1} parent=35 // pred_region
          %s2970 = scalar_lea.vmem [#allocation4], %s380
          %v2971 = vld [vmem:[%s2970] sm:$0x1]
          %v2972 = vadd.f32 %v437, %v438
          %v2973 = vadd.f32 %v2972, %v439
          %v2974 = vadd.f32 %v2973, %v440
          %v2975 = vrot.slane %v2974, 4
          %v2976 = vadd.f32 %v2974, %v2975
          %v2977 = vrot.slane %v2976, 2
          %v2978 = vadd.f32 %v2976, %v2977
          %v2979 = vrot.slane %v2978, 1
          %v2980 = vadd.f32 %v2978, %v2979
          %v2981 = vadd.f32 %v2971, %v2980
          %2982 = vst [vmem:[%s2970] sm:$0x1] %v2981
          %s2983 = scalar_lea.vmem [#allocation5], %s380
          %v2984 = vld [vmem:[%s2983] sm:$0x1]
          %v2985 = vadd.f32 %v445, %v446
          %v2986 = vadd.f32 %v2985, %v447
          %v2987 = vadd.f32 %v2986, %v448
          %v2988 = vrot.slane %v2987, 4
          %v2989 = vadd.f32 %v2987, %v2988
          %v2990 = vrot.slane %v2989, 2
          %v2991 = vadd.f32 %v2989, %v2990
          %v2992 = vrot.slane %v2991, 1
          %v2993 = vadd.f32 %v2991, %v2992
          %v2994 = vadd.f32 %v2984, %v2993
          %2995 = vst [vmem:[%s2983] sm:$0x1] %v2994
          %s2996 = scalar_lea.vmem [#allocation6], %s380
          %v2997 = vld [vmem:[%s2996] sm:$0x1]
          %v2998 = vmul.f32 %v437, %v437
          %v2999 = vmul.f32 %v438, %v438
          %v3000 = vmul.f32 %v439, %v439
          %v3001 = vmul.f32 %v440, %v440
          %v3002 = vadd.f32 %v2998, %v2999
          %v3003 = vadd.f32 %v3002, %v3000
          %v3004 = vadd.f32 %v3003, %v3001
          %v3005 = vrot.slane %v3004, 4
          %v3006 = vadd.f32 %v3004, %v3005
          %v3007 = vrot.slane %v3006, 2
          %v3008 = vadd.f32 %v3006, %v3007
          %v3009 = vrot.slane %v3008, 1
          %v3010 = vadd.f32 %v3008, %v3009
          %v3011 = vadd.f32 %v2997, %v3010
          %3012 = vst [vmem:[%s2996] sm:$0x1] %v3011
          %s3013 = scalar_lea.vmem [#allocation7], %s380
          %v3014 = vld [vmem:[%s3013] sm:$0x1]
          %v3015 = vmul.f32 %v445, %v445
          %v3016 = vmul.f32 %v446, %v446
          %v3017 = vmul.f32 %v447, %v447
          %v3018 = vmul.f32 %v448, %v448
          %v3019 = vadd.f32 %v3015, %v3016
          %v3020 = vadd.f32 %v3019, %v3017
          %v3021 = vadd.f32 %v3020, %v3018
          %v3022 = vrot.slane %v3021, 4
          %v3023 = vadd.f32 %v3021, %v3022
          %v3024 = vrot.slane %v3023, 2
          %v3025 = vadd.f32 %v3023, %v3024
          %v3026 = vrot.slane %v3025, 1
          %v3027 = vadd.f32 %v3025, %v3026
          %v3028 = vadd.f32 %v3014, %v3027
          %3029 = vst [vmem:[%s3013] sm:$0x1] %v3028
          %v3030 = vsub.f32 %v437, %v445
          %v3031 = vsub.f32 %v438, %v446
          %v3032 = vsub.f32 %v439, %v447
          %v3033 = vsub.f32 %v440, %v448
          %v3034 = vld [vmem:[#allocation8] sm:$0x1]
          %v3035 = vmul.f32 %v3030, %v3030
          %v3036 = vmul.f32 %v3031, %v3031
          %v3037 = vmul.f32 %v3032, %v3032
          %v3038 = vmul.f32 %v3033, %v3033
          %v3039 = vadd.f32 %v3035, %v3036
          %v3040 = vadd.f32 %v3039, %v3037
          %v3041 = vadd.f32 %v3040, %v3038
          %3042 = vadd.xlane.f32.xlu0 %v3041
          %v3043 = vpop.xlane.xlu0 %3042
          %v3044 = vrot.slane %v3043, 4
          %v3045 = vadd.f32 %v3043, %v3044
          %v3046 = vrot.slane %v3045, 2
          %v3047 = vadd.f32 %v3045, %v3046
          %v3048 = vrot.slane %v3047, 1
          %v3049 = vadd.f32 %v3047, %v3048
          %s3050 = vtos %v3049
          %v3051 = vstv %s3050
          %v3052 = vadd.f32 %v3034, %v3051
          %vm3053 = vcmask 0
          %3054 = vst.msk [vmem:[#allocation8] sm:$0x1] %vm3053, %v3052
        $region64: #{tpu_custom_call.1} parent=35 // pred_fallthru
          _
        %p3055 = scmp.eq.s32.totalorder %s40, 2
        // Predicated region
        $region65: #{tpu_custom_call.1} parent=35 // pred_check
          %p3056 = pneg %p3055
        $region66: #{tpu_custom_call.1} parent=35 // pred_check_branch
          %3058 = sbr.rel (%p3056) target = $region68
        $region67: #{tpu_custom_call.1} parent=35 // pred_region
          %s3059 = scalar_lea.vmem [#allocation4], %s379
          %v3060 = vld [vmem:[%s3059] sm:$0x1]
          %s3061 = scalar_lea.vmem [#allocation4], %s380
          %v3062 = vld [vmem:[%s3061] sm:$0x1]
          %s3063 = scalar_lea.vmem [#allocation5], %s379
          %v3064 = vld [vmem:[%s3063] sm:$0x1]
          %s3065 = scalar_lea.vmem [#allocation5], %s380
          %v3066 = vld [vmem:[%s3065] sm:$0x1]
          %3067 = vxpose.xlu0.b32.start [1/16] %v3060, 128
          %3068 = vxpose.xlu0.b32.cont [2/16] 0.0, 128
          %3069 = vxpose.xlu0.b32.cont [3/16] 0.0, 128
          %3070 = vxpose.xlu0.b32.cont [4/16] 0.0, 128
          %3071 = vxpose.xlu0.b32.cont [5/16] 0.0, 128
          %3072 = vxpose.xlu0.b32.cont [6/16] 0.0, 128
          %3073 = vxpose.xlu0.b32.cont [7/16] 0.0, 128
          %3074 = vxpose.xlu0.b32.cont [8/16] 0.0, 128
          %3075 = vxpose.xlu0.b32.cont [9/16] 0.0, 128
          %3076 = vxpose.xlu0.b32.cont [10/16] 0.0, 128
          %3077 = vxpose.xlu0.b32.cont [11/16] 0.0, 128
          %3078 = vxpose.xlu0.b32.cont [12/16] 0.0, 128
          %3079 = vxpose.xlu0.b32.cont [13/16] 0.0, 128
          %3080 = vxpose.xlu0.b32.cont [14/16] 0.0, 128
          %3081 = vxpose.xlu0.b32.cont [15/16] 0.0, 128
          %3082 = vxpose.xlu0.b32.end [16/16] 0.0, 128
          %v3083 = vpop.trf.xlu0
          %v3084 = vpop.trf.xlu0
          %v3085 = vpop.trf.xlu0
          %v3086 = vpop.trf.xlu0
          %v3087 = vpop.trf.xlu0
          %v3088 = vpop.trf.xlu0
          %v3089 = vpop.trf.xlu0
          %v3090 = vpop.trf.xlu0
          %v3091 = vpop.trf.xlu0
          %v3092 = vpop.trf.xlu0
          %v3093 = vpop.trf.xlu0
          %v3094 = vpop.trf.xlu0
          %v3095 = vpop.trf.xlu0
          %v3096 = vpop.trf.xlu0
          %v3097 = vpop.trf.xlu0
          %v3098 = vpop.trf.xlu0
          %vm3099 = vcmask 7168
          %v3101 = vsel %vm3099, %v3083, 0
          %v3104 = vsel %vm3099, %v3084, 0
          %v3107 = vsel %vm3099, %v3085, 0
          %v3110 = vsel %vm3099, %v3086, 0
          %v3113 = vsel %vm3099, %v3087, 0
          %v3116 = vsel %vm3099, %v3088, 0
          %v3119 = vsel %vm3099, %v3089, 0
          %v3122 = vsel %vm3099, %v3090, 0
          %v3125 = vsel %vm3099, %v3091, 0
          %v3128 = vsel %vm3099, %v3092, 0
          %v3131 = vsel %vm3099, %v3093, 0
          %v3134 = vsel %vm3099, %v3094, 0
          %v3137 = vsel %vm3099, %v3095, 0
          %v3140 = vsel %vm3099, %v3096, 0
          %v3143 = vsel %vm3099, %v3097, 0
          %v3146 = vsel %vm3099, %v3098, 0
          %vm3148 = vcmask 1040384
          %v3150 = vsel %vm3148, %v3062, 0
          %3152 = vmatprep.subr.mxu0 0.0
          %3153 = vmatpush1.msra.mxu0 0.0
          %3154 = vmatprep.subr.mxu0 0.0
          %3155 = vmatpush1.msra.mxu0 0.0
          %3156 = vmatprep.subr.mxu0 0.0
          %3157 = vmatpush1.msra.mxu0 0.0
          %3158 = vmatprep.subr.mxu0 0.0
          %3159 = vmatpush1.msra.mxu0 0.0
          %3160 = vmatprep.subr.mxu0 0.0
          %3161 = vmatpush1.msra.mxu0 0.0
          %3162 = vmatprep.subr.mxu0 0.0
          %3163 = vmatpush1.msra.mxu0 0.0
          %3164 = vmatprep.subr.mxu0 0.0
          %3165 = vmatpush1.msra.mxu0 0.0
          %3166 = vmatprep.subr.mxu0 0.0
          %3167 = vmatpush1.msra.mxu0 0.0
          %3168 = vmatprep.subr.mxu0 0.0
          %3169 = vmatpush1.msra.mxu0 0.0
          %3170 = vmatprep.subr.mxu0 0.0
          %3171 = vmatpush1.msra.mxu0 0.0
          %3172 = vmatprep.subr.mxu0 0.0
          %3173 = vmatpush1.msra.mxu0 0.0
          %3174 = vmatprep.subr.mxu0 0.0
          %3175 = vmatpush1.msra.mxu0 0.0
          %3176 = vmatprep.subr.mxu0 0.0
          %3177 = vmatpush1.msra.mxu0 0.0
          %3178 = vmatprep.subr.mxu0 0.0
          %3179 = vmatpush1.msra.mxu0 0.0
          %3180 = vmatprep.subr.mxu0 0.0
          %3181 = vmatpush1.msra.mxu0 0.0
          %3182 = vmatprep.subr.mxu0 0.0
          %v3183 = vand.u32 %v3150, 4294901760
          %3184 = vmatpush1.msra.mxu0 %v3183
          %3185 = vmatprep.subr.mxu0 0.0
          %3186 = vmatpush2.msra.mxu0 0.0
          %3187 = vmatprep.subr.mxu0 0.0
          %3188 = vmatpush2.msra.mxu0 0.0
          %3189 = vmatprep.subr.mxu0 0.0
          %3190 = vmatpush2.msra.mxu0 0.0
          %3191 = vmatprep.subr.mxu0 0.0
          %3192 = vmatpush2.msra.mxu0 0.0
          %3193 = vmatprep.subr.mxu0 0.0
          %3194 = vmatpush2.msra.mxu0 0.0
          %3195 = vmatprep.subr.mxu0 0.0
          %3196 = vmatpush2.msra.mxu0 0.0
          %3197 = vmatprep.subr.mxu0 0.0
          %3198 = vmatpush2.msra.mxu0 0.0
          %3199 = vmatprep.subr.mxu0 0.0
          %3200 = vmatpush2.msra.mxu0 0.0
          %3201 = vmatprep.subr.mxu0 0.0
          %3202 = vmatpush2.msra.mxu0 0.0
          %3203 = vmatprep.subr.mxu0 0.0
          %3204 = vmatpush2.msra.mxu0 0.0
          %3205 = vmatprep.subr.mxu0 0.0
          %3206 = vmatpush2.msra.mxu0 0.0
          %3207 = vmatprep.subr.mxu0 0.0
          %3208 = vmatpush2.msra.mxu0 0.0
          %3209 = vmatprep.subr.mxu0 0.0
          %3210 = vmatpush2.msra.mxu0 0.0
          %3211 = vmatprep.subr.mxu0 0.0
          %3212 = vmatpush2.msra.mxu0 0.0
          %3213 = vmatprep.subr.mxu0 0.0
          %3214 = vmatpush2.msra.mxu0 0.0
          %3215 = vmatprep.subr.mxu0 0.0
          %3216 = vmatpush2.msra.mxu0 0.0
          %3217 = vmatprep.mubr.f32.mxu0 0.0
          %v3218 = vand.u32 %v3101, 4294901760
          %v3219 = vsub.f32 %v3101, %v3218
          %v3220 = vand.u32 %v3219, 4294901760
          %v3221 = vsub.f32 %v3219, %v3220
          %v3222 = vand.u32 %v3221, 4294901760
          %3223 = vmatmul.mubr.f32.gmra.mxu0 %v3222
          %v3224 = vpop.f32.mrf.mxu0
          %v3225 = vadd.f32 0.0, %v3224
          %v3226 = vpop.f32.mrf.mxu0
          %3227 = vmatprep.mubr.f32.mxu0 0.0
          %v3228 = vand.u32 %v3104, 4294901760
          %v3229 = vsub.f32 %v3104, %v3228
          %v3230 = vand.u32 %v3229, 4294901760
          %v3231 = vsub.f32 %v3229, %v3230
          %v3232 = vand.u32 %v3231, 4294901760
          %3233 = vmatmul.mubr.f32.gmra.mxu0 %v3232
          %v3234 = vpop.f32.mrf.mxu0
          %v3235 = vadd.f32 0.0, %v3234
          %v3236 = vpop.f32.mrf.mxu0
          %3237 = vmatprep.mubr.f32.mxu0 0.0
          %v3238 = vand.u32 %v3107, 4294901760
          %v3239 = vsub.f32 %v3107, %v3238
          %v3240 = vand.u32 %v3239, 4294901760
          %v3241 = vsub.f32 %v3239, %v3240
          %v3242 = vand.u32 %v3241, 4294901760
          %3243 = vmatmul.mubr.f32.gmra.mxu0 %v3242
          %v3244 = vpop.f32.mrf.mxu0
          %v3245 = vadd.f32 0.0, %v3244
          %v3246 = vpop.f32.mrf.mxu0
          %3247 = vmatprep.mubr.f32.mxu0 0.0
          %v3248 = vand.u32 %v3110, 4294901760
          %v3249 = vsub.f32 %v3110, %v3248
          %v3250 = vand.u32 %v3249, 4294901760
          %v3251 = vsub.f32 %v3249, %v3250
          %v3252 = vand.u32 %v3251, 4294901760
          %3253 = vmatmul.mubr.f32.gmra.mxu0 %v3252
          %v3254 = vpop.f32.mrf.mxu0
          %v3255 = vadd.f32 0.0, %v3254
          %v3256 = vpop.f32.mrf.mxu0
          %3257 = vmatprep.mubr.f32.mxu0 0.0
          %v3258 = vand.u32 %v3113, 4294901760
          %v3259 = vsub.f32 %v3113, %v3258
          %v3260 = vand.u32 %v3259, 4294901760
          %v3261 = vsub.f32 %v3259, %v3260
          %v3262 = vand.u32 %v3261, 4294901760
          %3263 = vmatmul.mubr.f32.gmra.mxu0 %v3262
          %v3264 = vpop.f32.mrf.mxu0
          %v3265 = vadd.f32 0.0, %v3264
          %v3266 = vpop.f32.mrf.mxu0
          %3267 = vmatprep.mubr.f32.mxu0 0.0
          %v3268 = vand.u32 %v3116, 4294901760
          %v3269 = vsub.f32 %v3116, %v3268
          %v3270 = vand.u32 %v3269, 4294901760
          %v3271 = vsub.f32 %v3269, %v3270
          %v3272 = vand.u32 %v3271, 4294901760
          %3273 = vmatmul.mubr.f32.gmra.mxu0 %v3272
          %v3274 = vpop.f32.mrf.mxu0
          %v3275 = vadd.f32 0.0, %v3274
          %v3276 = vpop.f32.mrf.mxu0
          %3277 = vmatprep.mubr.f32.mxu0 0.0
          %v3278 = vand.u32 %v3119, 4294901760
          %v3279 = vsub.f32 %v3119, %v3278
          %v3280 = vand.u32 %v3279, 4294901760
          %v3281 = vsub.f32 %v3279, %v3280
          %v3282 = vand.u32 %v3281, 4294901760
          %3283 = vmatmul.mubr.f32.gmra.mxu0 %v3282
          %v3284 = vpop.f32.mrf.mxu0
          %v3285 = vadd.f32 0.0, %v3284
          %v3286 = vpop.f32.mrf.mxu0
          %3287 = vmatprep.mubr.f32.mxu0 0.0
          %v3288 = vand.u32 %v3122, 4294901760
          %v3289 = vsub.f32 %v3122, %v3288
          %v3290 = vand.u32 %v3289, 4294901760
          %v3291 = vsub.f32 %v3289, %v3290
          %v3292 = vand.u32 %v3291, 4294901760
          %3293 = vmatmul.mubr.f32.gmra.mxu0 %v3292
          %v3294 = vpop.f32.mrf.mxu0
          %v3295 = vadd.f32 0.0, %v3294
          %v3296 = vpop.f32.mrf.mxu0
          %3297 = vmatprep.mubr.f32.mxu0 0.0
          %v3298 = vand.u32 %v3125, 4294901760
          %v3299 = vsub.f32 %v3125, %v3298
          %v3300 = vand.u32 %v3299, 4294901760
          %v3301 = vsub.f32 %v3299, %v3300
          %v3302 = vand.u32 %v3301, 4294901760
          %3303 = vmatmul.mubr.f32.gmra.mxu0 %v3302
          %v3304 = vpop.f32.mrf.mxu0
          %v3305 = vadd.f32 0.0, %v3304
          %v3306 = vpop.f32.mrf.mxu0
          %3307 = vmatprep.mubr.f32.mxu0 0.0
          %v3308 = vand.u32 %v3128, 4294901760
          %v3309 = vsub.f32 %v3128, %v3308
          %v3310 = vand.u32 %v3309, 4294901760
          %v3311 = vsub.f32 %v3309, %v3310
          %v3312 = vand.u32 %v3311, 4294901760
          %3313 = vmatmul.mubr.f32.gmra.mxu0 %v3312
          %v3314 = vpop.f32.mrf.mxu0
          %v3315 = vadd.f32 0.0, %v3314
          %v3316 = vpop.f32.mrf.mxu0
          %3317 = vmatprep.mubr.f32.mxu0 0.0
          %v3318 = vand.u32 %v3131, 4294901760
          %v3319 = vsub.f32 %v3131, %v3318
          %v3320 = vand.u32 %v3319, 4294901760
          %v3321 = vsub.f32 %v3319, %v3320
          %v3322 = vand.u32 %v3321, 4294901760
          %3323 = vmatmul.mubr.f32.gmra.mxu0 %v3322
          %v3324 = vpop.f32.mrf.mxu0
          %v3325 = vadd.f32 0.0, %v3324
          %v3326 = vpop.f32.mrf.mxu0
          %3327 = vmatprep.mubr.f32.mxu0 0.0
          %v3328 = vand.u32 %v3134, 4294901760
          %v3329 = vsub.f32 %v3134, %v3328
          %v3330 = vand.u32 %v3329, 4294901760
          %v3331 = vsub.f32 %v3329, %v3330
          %v3332 = vand.u32 %v3331, 4294901760
          %3333 = vmatmul.mubr.f32.gmra.mxu0 %v3332
          %v3334 = vpop.f32.mrf.mxu0
          %v3335 = vadd.f32 0.0, %v3334
          %v3336 = vpop.f32.mrf.mxu0
          %3337 = vmatprep.mubr.f32.mxu0 0.0
          %v3338 = vand.u32 %v3137, 4294901760
          %v3339 = vsub.f32 %v3137, %v3338
          %v3340 = vand.u32 %v3339, 4294901760
          %v3341 = vsub.f32 %v3339, %v3340
          %v3342 = vand.u32 %v3341, 4294901760
          %3343 = vmatmul.mubr.f32.gmra.mxu0 %v3342
          %v3344 = vpop.f32.mrf.mxu0
          %v3345 = vadd.f32 0.0, %v3344
          %v3346 = vpop.f32.mrf.mxu0
          %3347 = vmatprep.mubr.f32.mxu0 0.0
          %v3348 = vand.u32 %v3140, 4294901760
          %v3349 = vsub.f32 %v3140, %v3348
          %v3350 = vand.u32 %v3349, 4294901760
          %v3351 = vsub.f32 %v3349, %v3350
          %v3352 = vand.u32 %v3351, 4294901760
          %3353 = vmatmul.mubr.f32.gmra.mxu0 %v3352
          %v3354 = vpop.f32.mrf.mxu0
          %v3355 = vadd.f32 0.0, %v3354
          %v3356 = vpop.f32.mrf.mxu0
          %3357 = vmatprep.mubr.f32.mxu0 0.0
          %v3358 = vand.u32 %v3143, 4294901760
          %v3359 = vsub.f32 %v3143, %v3358
          %v3360 = vand.u32 %v3359, 4294901760
          %v3361 = vsub.f32 %v3359, %v3360
          %v3362 = vand.u32 %v3361, 4294901760
          %3363 = vmatmul.mubr.f32.gmra.mxu0 %v3362
          %v3364 = vpop.f32.mrf.mxu0
          %v3365 = vadd.f32 0.0, %v3364
          %v3366 = vpop.f32.mrf.mxu0
          %3367 = vmatprep.mubr.f32.mxu0 0.0
          %v3368 = vand.u32 %v3146, 4294901760
          %v3369 = vsub.f32 %v3146, %v3368
          %v3370 = vand.u32 %v3369, 4294901760
          %v3371 = vsub.f32 %v3369, %v3370
          %v3372 = vand.u32 %v3371, 4294901760
          %3373 = vmatmul.mubr.f32.gmra.mxu0 %v3372
          %v3374 = vpop.f32.mrf.mxu0
          %v3375 = vadd.f32 0.0, %v3374
          %v3376 = vpop.f32.mrf.mxu0
          %3377 = vdwg.mxu0
          %3378 = vmatprep.subr.mxu0 0.0
          %3379 = vmatpush1.msra.mxu0 0.0
          %3380 = vmatprep.subr.mxu0 0.0
          %3381 = vmatpush1.msra.mxu0 0.0
          %3382 = vmatprep.subr.mxu0 0.0
          %3383 = vmatpush1.msra.mxu0 0.0
          %3384 = vmatprep.subr.mxu0 0.0
          %3385 = vmatpush1.msra.mxu0 0.0
          %3386 = vmatprep.subr.mxu0 0.0
          %3387 = vmatpush1.msra.mxu0 0.0
          %3388 = vmatprep.subr.mxu0 0.0
          %3389 = vmatpush1.msra.mxu0 0.0
          %3390 = vmatprep.subr.mxu0 0.0
          %3391 = vmatpush1.msra.mxu0 0.0
          %3392 = vmatprep.subr.mxu0 0.0
          %3393 = vmatpush1.msra.mxu0 0.0
          %3394 = vmatprep.subr.mxu0 0.0
          %3395 = vmatpush1.msra.mxu0 0.0
          %3396 = vmatprep.subr.mxu0 0.0
          %3397 = vmatpush1.msra.mxu0 0.0
          %3398 = vmatprep.subr.mxu0 0.0
          %3399 = vmatpush1.msra.mxu0 0.0
          %3400 = vmatprep.subr.mxu0 0.0
          %3401 = vmatpush1.msra.mxu0 0.0
          %3402 = vmatprep.subr.mxu0 0.0
          %3403 = vmatpush1.msra.mxu0 0.0
          %3404 = vmatprep.subr.mxu0 0.0
          %3405 = vmatpush1.msra.mxu0 0.0
          %3406 = vmatprep.subr.mxu0 0.0
          %3407 = vmatpush1.msra.mxu0 0.0
          %3408 = vmatprep.subr.mxu0 0.0
          %v3409 = vand.u32 %v3150, 4294901760
          %v3410 = vsub.f32 %v3150, %v3409
          %v3411 = vand.u32 %v3410, 4294901760
          %v3412 = vsub.f32 %v3410, %v3411
          %v3413 = vand.u32 %v3412, 4294901760
          %3414 = vmatpush1.msra.mxu0 %v3413
          %3415 = vmatprep.subr.mxu0 0.0
          %3416 = vmatpush2.msra.mxu0 0.0
          %3417 = vmatprep.subr.mxu0 0.0
          %3418 = vmatpush2.msra.mxu0 0.0
          %3419 = vmatprep.subr.mxu0 0.0
          %3420 = vmatpush2.msra.mxu0 0.0
          %3421 = vmatprep.subr.mxu0 0.0
          %3422 = vmatpush2.msra.mxu0 0.0
          %3423 = vmatprep.subr.mxu0 0.0
          %3424 = vmatpush2.msra.mxu0 0.0
          %3425 = vmatprep.subr.mxu0 0.0
          %3426 = vmatpush2.msra.mxu0 0.0
          %3427 = vmatprep.subr.mxu0 0.0
          %3428 = vmatpush2.msra.mxu0 0.0
          %3429 = vmatprep.subr.mxu0 0.0
          %3430 = vmatpush2.msra.mxu0 0.0
          %3431 = vmatprep.subr.mxu0 0.0
          %3432 = vmatpush2.msra.mxu0 0.0
          %3433 = vmatprep.subr.mxu0 0.0
          %3434 = vmatpush2.msra.mxu0 0.0
          %3435 = vmatprep.subr.mxu0 0.0
          %3436 = vmatpush2.msra.mxu0 0.0
          %3437 = vmatprep.subr.mxu0 0.0
          %3438 = vmatpush2.msra.mxu0 0.0
          %3439 = vmatprep.subr.mxu0 0.0
          %3440 = vmatpush2.msra.mxu0 0.0
          %3441 = vmatprep.subr.mxu0 0.0
          %3442 = vmatpush2.msra.mxu0 0.0
          %3443 = vmatprep.subr.mxu0 0.0
          %3444 = vmatpush2.msra.mxu0 0.0
          %3445 = vmatprep.subr.mxu0 0.0
          %3446 = vmatpush2.msra.mxu0 0.0
          %3447 = vmatprep.mubr.f32.mxu0 0.0
          %v3448 = vand.u32 %v3101, 4294901760
          %3449 = vmatmul.mubr.f32.gmra.mxu0 %v3448
          %v3450 = vpop.f32.mrf.mxu0
          %v3451 = vadd.f32 %v3225, %v3450
          %v3452 = vpop.f32.mrf.mxu0
          %3453 = vmatprep.mubr.f32.mxu0 0.0
          %v3454 = vand.u32 %v3104, 4294901760
          %3455 = vmatmul.mubr.f32.gmra.mxu0 %v3454
          %v3456 = vpop.f32.mrf.mxu0
          %v3457 = vadd.f32 %v3235, %v3456
          %v3458 = vpop.f32.mrf.mxu0
          %3459 = vmatprep.mubr.f32.mxu0 0.0
          %v3460 = vand.u32 %v3107, 4294901760
          %3461 = vmatmul.mubr.f32.gmra.mxu0 %v3460
          %v3462 = vpop.f32.mrf.mxu0
          %v3463 = vadd.f32 %v3245, %v3462
          %v3464 = vpop.f32.mrf.mxu0
          %3465 = vmatprep.mubr.f32.mxu0 0.0
          %v3466 = vand.u32 %v3110, 4294901760
          %3467 = vmatmul.mubr.f32.gmra.mxu0 %v3466
          %v3468 = vpop.f32.mrf.mxu0
          %v3469 = vadd.f32 %v3255, %v3468
          %v3470 = vpop.f32.mrf.mxu0
          %3471 = vmatprep.mubr.f32.mxu0 0.0
          %v3472 = vand.u32 %v3113, 4294901760
          %3473 = vmatmul.mubr.f32.gmra.mxu0 %v3472
          %v3474 = vpop.f32.mrf.mxu0
          %v3475 = vadd.f32 %v3265, %v3474
          %v3476 = vpop.f32.mrf.mxu0
          %3477 = vmatprep.mubr.f32.mxu0 0.0
          %v3478 = vand.u32 %v3116, 4294901760
          %3479 = vmatmul.mubr.f32.gmra.mxu0 %v3478
          %v3480 = vpop.f32.mrf.mxu0
          %v3481 = vadd.f32 %v3275, %v3480
          %v3482 = vpop.f32.mrf.mxu0
          %3483 = vmatprep.mubr.f32.mxu0 0.0
          %v3484 = vand.u32 %v3119, 4294901760
          %3485 = vmatmul.mubr.f32.gmra.mxu0 %v3484
          %v3486 = vpop.f32.mrf.mxu0
          %v3487 = vadd.f32 %v3285, %v3486
          %v3488 = vpop.f32.mrf.mxu0
          %3489 = vmatprep.mubr.f32.mxu0 0.0
          %v3490 = vand.u32 %v3122, 4294901760
          %3491 = vmatmul.mubr.f32.gmra.mxu0 %v3490
          %v3492 = vpop.f32.mrf.mxu0
          %v3493 = vadd.f32 %v3295, %v3492
          %v3494 = vpop.f32.mrf.mxu0
          %3495 = vmatprep.mubr.f32.mxu0 0.0
          %v3496 = vand.u32 %v3125, 4294901760
          %3497 = vmatmul.mubr.f32.gmra.mxu0 %v3496
          %v3498 = vpop.f32.mrf.mxu0
          %v3499 = vadd.f32 %v3305, %v3498
          %v3500 = vpop.f32.mrf.mxu0
          %3501 = vmatprep.mubr.f32.mxu0 0.0
          %v3502 = vand.u32 %v3128, 4294901760
          %3503 = vmatmul.mubr.f32.gmra.mxu0 %v3502
          %v3504 = vpop.f32.mrf.mxu0
          %v3505 = vadd.f32 %v3315, %v3504
          %v3506 = vpop.f32.mrf.mxu0
          %3507 = vmatprep.mubr.f32.mxu0 0.0
          %v3508 = vand.u32 %v3131, 4294901760
          %3509 = vmatmul.mubr.f32.gmra.mxu0 %v3508
          %v3510 = vpop.f32.mrf.mxu0
          %v3511 = vadd.f32 %v3325, %v3510
          %v3512 = vpop.f32.mrf.mxu0
          %3513 = vmatprep.mubr.f32.mxu0 0.0
          %v3514 = vand.u32 %v3134, 4294901760
          %3515 = vmatmul.mubr.f32.gmra.mxu0 %v3514
          %v3516 = vpop.f32.mrf.mxu0
          %v3517 = vadd.f32 %v3335, %v3516
          %v3518 = vpop.f32.mrf.mxu0
          %3519 = vmatprep.mubr.f32.mxu0 0.0
          %v3520 = vand.u32 %v3137, 4294901760
          %3521 = vmatmul.mubr.f32.gmra.mxu0 %v3520
          %v3522 = vpop.f32.mrf.mxu0
          %v3523 = vadd.f32 %v3345, %v3522
          %v3524 = vpop.f32.mrf.mxu0
          %3525 = vmatprep.mubr.f32.mxu0 0.0
          %v3526 = vand.u32 %v3140, 4294901760
          %3527 = vmatmul.mubr.f32.gmra.mxu0 %v3526
          %v3528 = vpop.f32.mrf.mxu0
          %v3529 = vadd.f32 %v3355, %v3528
          %v3530 = vpop.f32.mrf.mxu0
          %3531 = vmatprep.mubr.f32.mxu0 0.0
          %v3532 = vand.u32 %v3143, 4294901760
          %3533 = vmatmul.mubr.f32.gmra.mxu0 %v3532
          %v3534 = vpop.f32.mrf.mxu0
          %v3535 = vadd.f32 %v3365, %v3534
          %v3536 = vpop.f32.mrf.mxu0
          %3537 = vmatprep.mubr.f32.mxu0 0.0
          %v3538 = vand.u32 %v3146, 4294901760
          %3539 = vmatmul.mubr.f32.gmra.mxu0 %v3538
          %v3540 = vpop.f32.mrf.mxu0
          %v3541 = vadd.f32 %v3375, %v3540
          %v3542 = vpop.f32.mrf.mxu0
          %3543 = vdwg.mxu0
          %3544 = vmatprep.subr.mxu0 0.0
          %3545 = vmatpush1.msra.mxu0 0.0
          %3546 = vmatprep.subr.mxu0 0.0
          %3547 = vmatpush1.msra.mxu0 0.0
          %3548 = vmatprep.subr.mxu0 0.0
          %3549 = vmatpush1.msra.mxu0 0.0
          %3550 = vmatprep.subr.mxu0 0.0
          %3551 = vmatpush1.msra.mxu0 0.0
          %3552 = vmatprep.subr.mxu0 0.0
          %3553 = vmatpush1.msra.mxu0 0.0
          %3554 = vmatprep.subr.mxu0 0.0
          %3555 = vmatpush1.msra.mxu0 0.0
          %3556 = vmatprep.subr.mxu0 0.0
          %3557 = vmatpush1.msra.mxu0 0.0
          %3558 = vmatprep.subr.mxu0 0.0
          %3559 = vmatpush1.msra.mxu0 0.0
          %3560 = vmatprep.subr.mxu0 0.0
          %3561 = vmatpush1.msra.mxu0 0.0
          %3562 = vmatprep.subr.mxu0 0.0
          %3563 = vmatpush1.msra.mxu0 0.0
          %3564 = vmatprep.subr.mxu0 0.0
          %3565 = vmatpush1.msra.mxu0 0.0
          %3566 = vmatprep.subr.mxu0 0.0
          %3567 = vmatpush1.msra.mxu0 0.0
          %3568 = vmatprep.subr.mxu0 0.0
          %3569 = vmatpush1.msra.mxu0 0.0
          %3570 = vmatprep.subr.mxu0 0.0
          %3571 = vmatpush1.msra.mxu0 0.0
          %3572 = vmatprep.subr.mxu0 0.0
          %3573 = vmatpush1.msra.mxu0 0.0
          %3574 = vmatprep.subr.mxu0 0.0
          %v3575 = vand.u32 %v3150, 4294901760
          %v3576 = vsub.f32 %v3150, %v3575
          %3577 = vmatpush1.msra.mxu0 %v3576
          %3578 = vmatprep.subr.mxu0 0.0
          %3579 = vmatpush2.msra.mxu0 0.0
          %3580 = vmatprep.subr.mxu0 0.0
          %3581 = vmatpush2.msra.mxu0 0.0
          %3582 = vmatprep.subr.mxu0 0.0
          %3583 = vmatpush2.msra.mxu0 0.0
          %3584 = vmatprep.subr.mxu0 0.0
          %3585 = vmatpush2.msra.mxu0 0.0
          %3586 = vmatprep.subr.mxu0 0.0
          %3587 = vmatpush2.msra.mxu0 0.0
          %3588 = vmatprep.subr.mxu0 0.0
          %3589 = vmatpush2.msra.mxu0 0.0
          %3590 = vmatprep.subr.mxu0 0.0
          %3591 = vmatpush2.msra.mxu0 0.0
          %3592 = vmatprep.subr.mxu0 0.0
          %3593 = vmatpush2.msra.mxu0 0.0
          %3594 = vmatprep.subr.mxu0 0.0
          %3595 = vmatpush2.msra.mxu0 0.0
          %3596 = vmatprep.subr.mxu0 0.0
          %3597 = vmatpush2.msra.mxu0 0.0
          %3598 = vmatprep.subr.mxu0 0.0
          %3599 = vmatpush2.msra.mxu0 0.0
          %3600 = vmatprep.subr.mxu0 0.0
          %3601 = vmatpush2.msra.mxu0 0.0
          %3602 = vmatprep.subr.mxu0 0.0
          %3603 = vmatpush2.msra.mxu0 0.0
          %3604 = vmatprep.subr.mxu0 0.0
          %3605 = vmatpush2.msra.mxu0 0.0
          %3606 = vmatprep.subr.mxu0 0.0
          %3607 = vmatpush2.msra.mxu0 0.0
          %3608 = vmatprep.subr.mxu0 0.0
          %3609 = vmatpush2.msra.mxu0 0.0
          %3610 = vmatprep.mubr.f32.mxu0 0.0
          %v3611 = vand.u32 %v3101, 4294901760
          %v3612 = vsub.f32 %v3101, %v3611
          %3613 = vmatmul.mubr.f32.gmra.mxu0 %v3612
          %v3614 = vpop.f32.mrf.mxu0
          %v3615 = vadd.f32 %v3451, %v3614
          %v3616 = vpop.f32.mrf.mxu0
          %3617 = vmatprep.mubr.f32.mxu0 0.0
          %v3618 = vand.u32 %v3104, 4294901760
          %v3619 = vsub.f32 %v3104, %v3618
          %3620 = vmatmul.mubr.f32.gmra.mxu0 %v3619
          %v3621 = vpop.f32.mrf.mxu0
          %v3622 = vadd.f32 %v3457, %v3621
          %v3623 = vpop.f32.mrf.mxu0
          %3624 = vmatprep.mubr.f32.mxu0 0.0
          %v3625 = vand.u32 %v3107, 4294901760
          %v3626 = vsub.f32 %v3107, %v3625
          %3627 = vmatmul.mubr.f32.gmra.mxu0 %v3626
          %v3628 = vpop.f32.mrf.mxu0
          %v3629 = vadd.f32 %v3463, %v3628
          %v3630 = vpop.f32.mrf.mxu0
          %3631 = vmatprep.mubr.f32.mxu0 0.0
          %v3632 = vand.u32 %v3110, 4294901760
          %v3633 = vsub.f32 %v3110, %v3632
          %3634 = vmatmul.mubr.f32.gmra.mxu0 %v3633
          %v3635 = vpop.f32.mrf.mxu0
          %v3636 = vadd.f32 %v3469, %v3635
          %v3637 = vpop.f32.mrf.mxu0
          %3638 = vmatprep.mubr.f32.mxu0 0.0
          %v3639 = vand.u32 %v3113, 4294901760
          %v3640 = vsub.f32 %v3113, %v3639
          %3641 = vmatmul.mubr.f32.gmra.mxu0 %v3640
          %v3642 = vpop.f32.mrf.mxu0
          %v3643 = vadd.f32 %v3475, %v3642
          %v3644 = vpop.f32.mrf.mxu0
          %3645 = vmatprep.mubr.f32.mxu0 0.0
          %v3646 = vand.u32 %v3116, 4294901760
          %v3647 = vsub.f32 %v3116, %v3646
          %3648 = vmatmul.mubr.f32.gmra.mxu0 %v3647
          %v3649 = vpop.f32.mrf.mxu0
          %v3650 = vadd.f32 %v3481, %v3649
          %v3651 = vpop.f32.mrf.mxu0
          %3652 = vmatprep.mubr.f32.mxu0 0.0
          %v3653 = vand.u32 %v3119, 4294901760
          %v3654 = vsub.f32 %v3119, %v3653
          %3655 = vmatmul.mubr.f32.gmra.mxu0 %v3654
          %v3656 = vpop.f32.mrf.mxu0
          %v3657 = vadd.f32 %v3487, %v3656
          %v3658 = vpop.f32.mrf.mxu0
          %3659 = vmatprep.mubr.f32.mxu0 0.0
          %v3660 = vand.u32 %v3122, 4294901760
          %v3661 = vsub.f32 %v3122, %v3660
          %3662 = vmatmul.mubr.f32.gmra.mxu0 %v3661
          %v3663 = vpop.f32.mrf.mxu0
          %v3664 = vadd.f32 %v3493, %v3663
          %v3665 = vpop.f32.mrf.mxu0
          %3666 = vmatprep.mubr.f32.mxu0 0.0
          %v3667 = vand.u32 %v3125, 4294901760
          %v3668 = vsub.f32 %v3125, %v3667
          %3669 = vmatmul.mubr.f32.gmra.mxu0 %v3668
          %v3670 = vpop.f32.mrf.mxu0
          %v3671 = vadd.f32 %v3499, %v3670
          %v3672 = vpop.f32.mrf.mxu0
          %3673 = vmatprep.mubr.f32.mxu0 0.0
          %v3674 = vand.u32 %v3128, 4294901760
          %v3675 = vsub.f32 %v3128, %v3674
          %3676 = vmatmul.mubr.f32.gmra.mxu0 %v3675
          %v3677 = vpop.f32.mrf.mxu0
          %v3678 = vadd.f32 %v3505, %v3677
          %v3679 = vpop.f32.mrf.mxu0
          %3680 = vmatprep.mubr.f32.mxu0 0.0
          %v3681 = vand.u32 %v3131, 4294901760
          %v3682 = vsub.f32 %v3131, %v3681
          %3683 = vmatmul.mubr.f32.gmra.mxu0 %v3682
          %v3684 = vpop.f32.mrf.mxu0
          %v3685 = vadd.f32 %v3511, %v3684
          %v3686 = vpop.f32.mrf.mxu0
          %3687 = vmatprep.mubr.f32.mxu0 0.0
          %v3688 = vand.u32 %v3134, 4294901760
          %v3689 = vsub.f32 %v3134, %v3688
          %3690 = vmatmul.mubr.f32.gmra.mxu0 %v3689
          %v3691 = vpop.f32.mrf.mxu0
          %v3692 = vadd.f32 %v3517, %v3691
          %v3693 = vpop.f32.mrf.mxu0
          %3694 = vmatprep.mubr.f32.mxu0 0.0
          %v3695 = vand.u32 %v3137, 4294901760
          %v3696 = vsub.f32 %v3137, %v3695
          %3697 = vmatmul.mubr.f32.gmra.mxu0 %v3696
          %v3698 = vpop.f32.mrf.mxu0
          %v3699 = vadd.f32 %v3523, %v3698
          %v3700 = vpop.f32.mrf.mxu0
          %3701 = vmatprep.mubr.f32.mxu0 0.0
          %v3702 = vand.u32 %v3140, 4294901760
          %v3703 = vsub.f32 %v3140, %v3702
          %3704 = vmatmul.mubr.f32.gmra.mxu0 %v3703
          %v3705 = vpop.f32.mrf.mxu0
          %v3706 = vadd.f32 %v3529, %v3705
          %v3707 = vpop.f32.mrf.mxu0
          %3708 = vmatprep.mubr.f32.mxu0 0.0
          %v3709 = vand.u32 %v3143, 4294901760
          %v3710 = vsub.f32 %v3143, %v3709
          %3711 = vmatmul.mubr.f32.gmra.mxu0 %v3710
          %v3712 = vpop.f32.mrf.mxu0
          %v3713 = vadd.f32 %v3535, %v3712
          %v3714 = vpop.f32.mrf.mxu0
          %3715 = vmatprep.mubr.f32.mxu0 0.0
          %v3716 = vand.u32 %v3146, 4294901760
          %v3717 = vsub.f32 %v3146, %v3716
          %3718 = vmatmul.mubr.f32.gmra.mxu0 %v3717
          %v3719 = vpop.f32.mrf.mxu0
          %v3720 = vadd.f32 %v3541, %v3719
          %v3721 = vpop.f32.mrf.mxu0
          %3722 = vdwg.mxu0
          %3723 = vmatprep.subr.mxu0 0.0
          %3724 = vmatpush1.msra.mxu0 0.0
          %3725 = vmatprep.subr.mxu0 0.0
          %3726 = vmatpush1.msra.mxu0 0.0
          %3727 = vmatprep.subr.mxu0 0.0
          %3728 = vmatpush1.msra.mxu0 0.0
          %3729 = vmatprep.subr.mxu0 0.0
          %3730 = vmatpush1.msra.mxu0 0.0
          %3731 = vmatprep.subr.mxu0 0.0
          %3732 = vmatpush1.msra.mxu0 0.0
          %3733 = vmatprep.subr.mxu0 0.0
          %3734 = vmatpush1.msra.mxu0 0.0
          %3735 = vmatprep.subr.mxu0 0.0
          %3736 = vmatpush1.msra.mxu0 0.0
          %3737 = vmatprep.subr.mxu0 0.0
          %3738 = vmatpush1.msra.mxu0 0.0
          %3739 = vmatprep.subr.mxu0 0.0
          %3740 = vmatpush1.msra.mxu0 0.0
          %3741 = vmatprep.subr.mxu0 0.0
          %3742 = vmatpush1.msra.mxu0 0.0
          %3743 = vmatprep.subr.mxu0 0.0
          %3744 = vmatpush1.msra.mxu0 0.0
          %3745 = vmatprep.subr.mxu0 0.0
          %3746 = vmatpush1.msra.mxu0 0.0
          %3747 = vmatprep.subr.mxu0 0.0
          %3748 = vmatpush1.msra.mxu0 0.0
          %3749 = vmatprep.subr.mxu0 0.0
          %3750 = vmatpush1.msra.mxu0 0.0
          %3751 = vmatprep.subr.mxu0 0.0
          %3752 = vmatpush1.msra.mxu0 0.0
          %3753 = vmatprep.subr.mxu0 0.0
          %v3754 = vand.u32 %v3150, 4294901760
          %3755 = vmatpush1.msra.mxu0 %v3754
          %3756 = vmatprep.subr.mxu0 0.0
          %3757 = vmatpush2.msra.mxu0 0.0
          %3758 = vmatprep.subr.mxu0 0.0
          %3759 = vmatpush2.msra.mxu0 0.0
          %3760 = vmatprep.subr.mxu0 0.0
          %3761 = vmatpush2.msra.mxu0 0.0
          %3762 = vmatprep.subr.mxu0 0.0
          %3763 = vmatpush2.msra.mxu0 0.0
          %3764 = vmatprep.subr.mxu0 0.0
          %3765 = vmatpush2.msra.mxu0 0.0
          %3766 = vmatprep.subr.mxu0 0.0
          %3767 = vmatpush2.msra.mxu0 0.0
          %3768 = vmatprep.subr.mxu0 0.0
          %3769 = vmatpush2.msra.mxu0 0.0
          %3770 = vmatprep.subr.mxu0 0.0
          %3771 = vmatpush2.msra.mxu0 0.0
          %3772 = vmatprep.subr.mxu0 0.0
          %3773 = vmatpush2.msra.mxu0 0.0
          %3774 = vmatprep.subr.mxu0 0.0
          %3775 = vmatpush2.msra.mxu0 0.0
          %3776 = vmatprep.subr.mxu0 0.0
          %3777 = vmatpush2.msra.mxu0 0.0
          %3778 = vmatprep.subr.mxu0 0.0
          %3779 = vmatpush2.msra.mxu0 0.0
          %3780 = vmatprep.subr.mxu0 0.0
          %3781 = vmatpush2.msra.mxu0 0.0
          %3782 = vmatprep.subr.mxu0 0.0
          %3783 = vmatpush2.msra.mxu0 0.0
          %3784 = vmatprep.subr.mxu0 0.0
          %3785 = vmatpush2.msra.mxu0 0.0
          %3786 = vmatprep.subr.mxu0 0.0
          %3787 = vmatpush2.msra.mxu0 0.0
          %3788 = vmatprep.mubr.f32.mxu0 0.0
          %v3789 = vand.u32 %v3101, 4294901760
          %v3790 = vsub.f32 %v3101, %v3789
          %v3791 = vand.u32 %v3790, 4294901760
          %3792 = vmatmul.mubr.f32.gmra.mxu0 %v3791
          %v3793 = vpop.f32.mrf.mxu0
          %v3794 = vadd.f32 %v3615, %v3793
          %v3795 = vpop.f32.mrf.mxu0
          %3796 = vmatprep.mubr.f32.mxu0 0.0
          %v3797 = vand.u32 %v3104, 4294901760
          %v3798 = vsub.f32 %v3104, %v3797
          %v3799 = vand.u32 %v3798, 4294901760
          %3800 = vmatmul.mubr.f32.gmra.mxu0 %v3799
          %v3801 = vpop.f32.mrf.mxu0
          %v3802 = vadd.f32 %v3622, %v3801
          %v3803 = vpop.f32.mrf.mxu0
          %3804 = vmatprep.mubr.f32.mxu0 0.0
          %v3805 = vand.u32 %v3107, 4294901760
          %v3806 = vsub.f32 %v3107, %v3805
          %v3807 = vand.u32 %v3806, 4294901760
          %3808 = vmatmul.mubr.f32.gmra.mxu0 %v3807
          %v3809 = vpop.f32.mrf.mxu0
          %v3810 = vadd.f32 %v3629, %v3809
          %v3811 = vpop.f32.mrf.mxu0
          %3812 = vmatprep.mubr.f32.mxu0 0.0
          %v3813 = vand.u32 %v3110, 4294901760
          %v3814 = vsub.f32 %v3110, %v3813
          %v3815 = vand.u32 %v3814, 4294901760
          %3816 = vmatmul.mubr.f32.gmra.mxu0 %v3815
          %v3817 = vpop.f32.mrf.mxu0
          %v3818 = vadd.f32 %v3636, %v3817
          %v3819 = vpop.f32.mrf.mxu0
          %3820 = vmatprep.mubr.f32.mxu0 0.0
          %v3821 = vand.u32 %v3113, 4294901760
          %v3822 = vsub.f32 %v3113, %v3821
          %v3823 = vand.u32 %v3822, 4294901760
          %3824 = vmatmul.mubr.f32.gmra.mxu0 %v3823
          %v3825 = vpop.f32.mrf.mxu0
          %v3826 = vadd.f32 %v3643, %v3825
          %v3827 = vpop.f32.mrf.mxu0
          %3828 = vmatprep.mubr.f32.mxu0 0.0
          %v3829 = vand.u32 %v3116, 4294901760
          %v3830 = vsub.f32 %v3116, %v3829
          %v3831 = vand.u32 %v3830, 4294901760
          %3832 = vmatmul.mubr.f32.gmra.mxu0 %v3831
          %v3833 = vpop.f32.mrf.mxu0
          %v3834 = vadd.f32 %v3650, %v3833
          %v3835 = vpop.f32.mrf.mxu0
          %3836 = vmatprep.mubr.f32.mxu0 0.0
          %v3837 = vand.u32 %v3119, 4294901760
          %v3838 = vsub.f32 %v3119, %v3837
          %v3839 = vand.u32 %v3838, 4294901760
          %3840 = vmatmul.mubr.f32.gmra.mxu0 %v3839
          %v3841 = vpop.f32.mrf.mxu0
          %v3842 = vadd.f32 %v3657, %v3841
          %v3843 = vpop.f32.mrf.mxu0
          %3844 = vmatprep.mubr.f32.mxu0 0.0
          %v3845 = vand.u32 %v3122, 4294901760
          %v3846 = vsub.f32 %v3122, %v3845
          %v3847 = vand.u32 %v3846, 4294901760
          %3848 = vmatmul.mubr.f32.gmra.mxu0 %v3847
          %v3849 = vpop.f32.mrf.mxu0
          %v3850 = vadd.f32 %v3664, %v3849
          %v3851 = vpop.f32.mrf.mxu0
          %3852 = vmatprep.mubr.f32.mxu0 0.0
          %v3853 = vand.u32 %v3125, 4294901760
          %v3854 = vsub.f32 %v3125, %v3853
          %v3855 = vand.u32 %v3854, 4294901760
          %3856 = vmatmul.mubr.f32.gmra.mxu0 %v3855
          %v3857 = vpop.f32.mrf.mxu0
          %v3858 = vadd.f32 %v3671, %v3857
          %v3859 = vpop.f32.mrf.mxu0
          %3860 = vmatprep.mubr.f32.mxu0 0.0
          %v3861 = vand.u32 %v3128, 4294901760
          %v3862 = vsub.f32 %v3128, %v3861
          %v3863 = vand.u32 %v3862, 4294901760
          %3864 = vmatmul.mubr.f32.gmra.mxu0 %v3863
          %v3865 = vpop.f32.mrf.mxu0
          %v3866 = vadd.f32 %v3678, %v3865
          %v3867 = vpop.f32.mrf.mxu0
          %3868 = vmatprep.mubr.f32.mxu0 0.0
          %v3869 = vand.u32 %v3131, 4294901760
          %v3870 = vsub.f32 %v3131, %v3869
          %v3871 = vand.u32 %v3870, 4294901760
          %3872 = vmatmul.mubr.f32.gmra.mxu0 %v3871
          %v3873 = vpop.f32.mrf.mxu0
          %v3874 = vadd.f32 %v3685, %v3873
          %v3875 = vpop.f32.mrf.mxu0
          %3876 = vmatprep.mubr.f32.mxu0 0.0
          %v3877 = vand.u32 %v3134, 4294901760
          %v3878 = vsub.f32 %v3134, %v3877
          %v3879 = vand.u32 %v3878, 4294901760
          %3880 = vmatmul.mubr.f32.gmra.mxu0 %v3879
          %v3881 = vpop.f32.mrf.mxu0
          %v3882 = vadd.f32 %v3692, %v3881
          %v3883 = vpop.f32.mrf.mxu0
          %3884 = vmatprep.mubr.f32.mxu0 0.0
          %v3885 = vand.u32 %v3137, 4294901760
          %v3886 = vsub.f32 %v3137, %v3885
          %v3887 = vand.u32 %v3886, 4294901760
          %3888 = vmatmul.mubr.f32.gmra.mxu0 %v3887
          %v3889 = vpop.f32.mrf.mxu0
          %v3890 = vadd.f32 %v3699, %v3889
          %v3891 = vpop.f32.mrf.mxu0
          %3892 = vmatprep.mubr.f32.mxu0 0.0
          %v3893 = vand.u32 %v3140, 4294901760
          %v3894 = vsub.f32 %v3140, %v3893
          %v3895 = vand.u32 %v3894, 4294901760
          %3896 = vmatmul.mubr.f32.gmra.mxu0 %v3895
          %v3897 = vpop.f32.mrf.mxu0
          %v3898 = vadd.f32 %v3706, %v3897
          %v3899 = vpop.f32.mrf.mxu0
          %3900 = vmatprep.mubr.f32.mxu0 0.0
          %v3901 = vand.u32 %v3143, 4294901760
          %v3902 = vsub.f32 %v3143, %v3901
          %v3903 = vand.u32 %v3902, 4294901760
          %3904 = vmatmul.mubr.f32.gmra.mxu0 %v3903
          %v3905 = vpop.f32.mrf.mxu0
          %v3906 = vadd.f32 %v3713, %v3905
          %v3907 = vpop.f32.mrf.mxu0
          %3908 = vmatprep.mubr.f32.mxu0 0.0
          %v3909 = vand.u32 %v3146, 4294901760
          %v3910 = vsub.f32 %v3146, %v3909
          %v3911 = vand.u32 %v3910, 4294901760
          %3912 = vmatmul.mubr.f32.gmra.mxu0 %v3911
          %v3913 = vpop.f32.mrf.mxu0
          %v3914 = vadd.f32 %v3720, %v3913
          %v3915 = vpop.f32.mrf.mxu0
          %3916 = vdwg.mxu0
          %3917 = vmatprep.subr.mxu0 0.0
          %3918 = vmatpush1.msra.mxu0 0.0
          %3919 = vmatprep.subr.mxu0 0.0
          %3920 = vmatpush1.msra.mxu0 0.0
          %3921 = vmatprep.subr.mxu0 0.0
          %3922 = vmatpush1.msra.mxu0 0.0
          %3923 = vmatprep.subr.mxu0 0.0
          %3924 = vmatpush1.msra.mxu0 0.0
          %3925 = vmatprep.subr.mxu0 0.0
          %3926 = vmatpush1.msra.mxu0 0.0
          %3927 = vmatprep.subr.mxu0 0.0
          %3928 = vmatpush1.msra.mxu0 0.0
          %3929 = vmatprep.subr.mxu0 0.0
          %3930 = vmatpush1.msra.mxu0 0.0
          %3931 = vmatprep.subr.mxu0 0.0
          %3932 = vmatpush1.msra.mxu0 0.0
          %3933 = vmatprep.subr.mxu0 0.0
          %3934 = vmatpush1.msra.mxu0 0.0
          %3935 = vmatprep.subr.mxu0 0.0
          %3936 = vmatpush1.msra.mxu0 0.0
          %3937 = vmatprep.subr.mxu0 0.0
          %3938 = vmatpush1.msra.mxu0 0.0
          %3939 = vmatprep.subr.mxu0 0.0
          %3940 = vmatpush1.msra.mxu0 0.0
          %3941 = vmatprep.subr.mxu0 0.0
          %3942 = vmatpush1.msra.mxu0 0.0
          %3943 = vmatprep.subr.mxu0 0.0
          %3944 = vmatpush1.msra.mxu0 0.0
          %3945 = vmatprep.subr.mxu0 0.0
          %3946 = vmatpush1.msra.mxu0 0.0
          %3947 = vmatprep.subr.mxu0 0.0
          %v3948 = vand.u32 %v3150, 4294901760
          %v3949 = vsub.f32 %v3150, %v3948
          %v3950 = vand.u32 %v3949, 4294901760
          %3951 = vmatpush1.msra.mxu0 %v3950
          %3952 = vmatprep.subr.mxu0 0.0
          %3953 = vmatpush2.msra.mxu0 0.0
          %3954 = vmatprep.subr.mxu0 0.0
          %3955 = vmatpush2.msra.mxu0 0.0
          %3956 = vmatprep.subr.mxu0 0.0
          %3957 = vmatpush2.msra.mxu0 0.0
          %3958 = vmatprep.subr.mxu0 0.0
          %3959 = vmatpush2.msra.mxu0 0.0
          %3960 = vmatprep.subr.mxu0 0.0
          %3961 = vmatpush2.msra.mxu0 0.0
          %3962 = vmatprep.subr.mxu0 0.0
          %3963 = vmatpush2.msra.mxu0 0.0
          %3964 = vmatprep.subr.mxu0 0.0
          %3965 = vmatpush2.msra.mxu0 0.0
          %3966 = vmatprep.subr.mxu0 0.0
          %3967 = vmatpush2.msra.mxu0 0.0
          %3968 = vmatprep.subr.mxu0 0.0
          %3969 = vmatpush2.msra.mxu0 0.0
          %3970 = vmatprep.subr.mxu0 0.0
          %3971 = vmatpush2.msra.mxu0 0.0
          %3972 = vmatprep.subr.mxu0 0.0
          %3973 = vmatpush2.msra.mxu0 0.0
          %3974 = vmatprep.subr.mxu0 0.0
          %3975 = vmatpush2.msra.mxu0 0.0
          %3976 = vmatprep.subr.mxu0 0.0
          %3977 = vmatpush2.msra.mxu0 0.0
          %3978 = vmatprep.subr.mxu0 0.0
          %3979 = vmatpush2.msra.mxu0 0.0
          %3980 = vmatprep.subr.mxu0 0.0
          %3981 = vmatpush2.msra.mxu0 0.0
          %3982 = vmatprep.subr.mxu0 0.0
          %3983 = vmatpush2.msra.mxu0 0.0
          %3984 = vmatprep.mubr.f32.mxu0 0.0
          %v3985 = vand.u32 %v3101, 4294901760
          %3986 = vmatmul.mubr.f32.gmra.mxu0 %v3985
          %v3987 = vpop.f32.mrf.mxu0
          %v3988 = vadd.f32 %v3794, %v3987
          %v3989 = vpop.f32.mrf.mxu0
          %3990 = vmatprep.mubr.f32.mxu0 0.0
          %v3991 = vand.u32 %v3104, 4294901760
          %3992 = vmatmul.mubr.f32.gmra.mxu0 %v3991
          %v3993 = vpop.f32.mrf.mxu0
          %v3994 = vadd.f32 %v3802, %v3993
          %v3995 = vpop.f32.mrf.mxu0
          %3996 = vmatprep.mubr.f32.mxu0 0.0
          %v3997 = vand.u32 %v3107, 4294901760
          %3998 = vmatmul.mubr.f32.gmra.mxu0 %v3997
          %v3999 = vpop.f32.mrf.mxu0
          %v4000 = vadd.f32 %v3810, %v3999
          %v4001 = vpop.f32.mrf.mxu0
          %4002 = vmatprep.mubr.f32.mxu0 0.0
          %v4003 = vand.u32 %v3110, 4294901760
          %4004 = vmatmul.mubr.f32.gmra.mxu0 %v4003
          %v4005 = vpop.f32.mrf.mxu0
          %v4006 = vadd.f32 %v3818, %v4005
          %v4007 = vpop.f32.mrf.mxu0
          %4008 = vmatprep.mubr.f32.mxu0 0.0
          %v4009 = vand.u32 %v3113, 4294901760
          %4010 = vmatmul.mubr.f32.gmra.mxu0 %v4009
          %v4011 = vpop.f32.mrf.mxu0
          %v4012 = vadd.f32 %v3826, %v4011
          %v4013 = vpop.f32.mrf.mxu0
          %4014 = vmatprep.mubr.f32.mxu0 0.0
          %v4015 = vand.u32 %v3116, 4294901760
          %4016 = vmatmul.mubr.f32.gmra.mxu0 %v4015
          %v4017 = vpop.f32.mrf.mxu0
          %v4018 = vadd.f32 %v3834, %v4017
          %v4019 = vpop.f32.mrf.mxu0
          %4020 = vmatprep.mubr.f32.mxu0 0.0
          %v4021 = vand.u32 %v3119, 4294901760
          %4022 = vmatmul.mubr.f32.gmra.mxu0 %v4021
          %v4023 = vpop.f32.mrf.mxu0
          %v4024 = vadd.f32 %v3842, %v4023
          %v4025 = vpop.f32.mrf.mxu0
          %4026 = vmatprep.mubr.f32.mxu0 0.0
          %v4027 = vand.u32 %v3122, 4294901760
          %4028 = vmatmul.mubr.f32.gmra.mxu0 %v4027
          %v4029 = vpop.f32.mrf.mxu0
          %v4030 = vadd.f32 %v3850, %v4029
          %v4031 = vpop.f32.mrf.mxu0
          %4032 = vmatprep.mubr.f32.mxu0 0.0
          %v4033 = vand.u32 %v3125, 4294901760
          %4034 = vmatmul.mubr.f32.gmra.mxu0 %v4033
          %v4035 = vpop.f32.mrf.mxu0
          %v4036 = vadd.f32 %v3858, %v4035
          %v4037 = vpop.f32.mrf.mxu0
          %4038 = vmatprep.mubr.f32.mxu0 0.0
          %v4039 = vand.u32 %v3128, 4294901760
          %4040 = vmatmul.mubr.f32.gmra.mxu0 %v4039
          %v4041 = vpop.f32.mrf.mxu0
          %v4042 = vadd.f32 %v3866, %v4041
          %v4043 = vpop.f32.mrf.mxu0
          %4044 = vmatprep.mubr.f32.mxu0 0.0
          %v4045 = vand.u32 %v3131, 4294901760
          %4046 = vmatmul.mubr.f32.gmra.mxu0 %v4045
          %v4047 = vpop.f32.mrf.mxu0
          %v4048 = vadd.f32 %v3874, %v4047
          %v4049 = vpop.f32.mrf.mxu0
          %4050 = vmatprep.mubr.f32.mxu0 0.0
          %v4051 = vand.u32 %v3134, 4294901760
          %4052 = vmatmul.mubr.f32.gmra.mxu0 %v4051
          %v4053 = vpop.f32.mrf.mxu0
          %v4054 = vadd.f32 %v3882, %v4053
          %v4055 = vpop.f32.mrf.mxu0
          %4056 = vmatprep.mubr.f32.mxu0 0.0
          %v4057 = vand.u32 %v3137, 4294901760
          %4058 = vmatmul.mubr.f32.gmra.mxu0 %v4057
          %v4059 = vpop.f32.mrf.mxu0
          %v4060 = vadd.f32 %v3890, %v4059
          %v4061 = vpop.f32.mrf.mxu0
          %4062 = vmatprep.mubr.f32.mxu0 0.0
          %v4063 = vand.u32 %v3140, 4294901760
          %4064 = vmatmul.mubr.f32.gmra.mxu0 %v4063
          %v4065 = vpop.f32.mrf.mxu0
          %v4066 = vadd.f32 %v3898, %v4065
          %v4067 = vpop.f32.mrf.mxu0
          %4068 = vmatprep.mubr.f32.mxu0 0.0
          %v4069 = vand.u32 %v3143, 4294901760
          %4070 = vmatmul.mubr.f32.gmra.mxu0 %v4069
          %v4071 = vpop.f32.mrf.mxu0
          %v4072 = vadd.f32 %v3906, %v4071
          %v4073 = vpop.f32.mrf.mxu0
          %4074 = vmatprep.mubr.f32.mxu0 0.0
          %v4075 = vand.u32 %v3146, 4294901760
          %4076 = vmatmul.mubr.f32.gmra.mxu0 %v4075
          %v4077 = vpop.f32.mrf.mxu0
          %v4078 = vadd.f32 %v3914, %v4077
          %v4079 = vpop.f32.mrf.mxu0
          %4080 = vdwg.mxu0
          %4081 = vmatprep.subr.mxu0 0.0
          %4082 = vmatpush1.msra.mxu0 0.0
          %4083 = vmatprep.subr.mxu0 0.0
          %4084 = vmatpush1.msra.mxu0 0.0
          %4085 = vmatprep.subr.mxu0 0.0
          %4086 = vmatpush1.msra.mxu0 0.0
          %4087 = vmatprep.subr.mxu0 0.0
          %4088 = vmatpush1.msra.mxu0 0.0
          %4089 = vmatprep.subr.mxu0 0.0
          %4090 = vmatpush1.msra.mxu0 0.0
          %4091 = vmatprep.subr.mxu0 0.0
          %4092 = vmatpush1.msra.mxu0 0.0
          %4093 = vmatprep.subr.mxu0 0.0
          %4094 = vmatpush1.msra.mxu0 0.0
          %4095 = vmatprep.subr.mxu0 0.0
          %4096 = vmatpush1.msra.mxu0 0.0
          %4097 = vmatprep.subr.mxu0 0.0
          %4098 = vmatpush1.msra.mxu0 0.0
          %4099 = vmatprep.subr.mxu0 0.0
          %4100 = vmatpush1.msra.mxu0 0.0
          %4101 = vmatprep.subr.mxu0 0.0
          %4102 = vmatpush1.msra.mxu0 0.0
          %4103 = vmatprep.subr.mxu0 0.0
          %4104 = vmatpush1.msra.mxu0 0.0
          %4105 = vmatprep.subr.mxu0 0.0
          %4106 = vmatpush1.msra.mxu0 0.0
          %4107 = vmatprep.subr.mxu0 0.0
          %4108 = vmatpush1.msra.mxu0 0.0
          %4109 = vmatprep.subr.mxu0 0.0
          %4110 = vmatpush1.msra.mxu0 0.0
          %4111 = vmatprep.subr.mxu0 0.0
          %v4112 = vand.u32 %v3150, 4294901760
          %4113 = vmatpush1.msra.mxu0 %v4112
          %4114 = vmatprep.subr.mxu0 0.0
          %4115 = vmatpush2.msra.mxu0 0.0
          %4116 = vmatprep.subr.mxu0 0.0
          %4117 = vmatpush2.msra.mxu0 0.0
          %4118 = vmatprep.subr.mxu0 0.0
          %4119 = vmatpush2.msra.mxu0 0.0
          %4120 = vmatprep.subr.mxu0 0.0
          %4121 = vmatpush2.msra.mxu0 0.0
          %4122 = vmatprep.subr.mxu0 0.0
          %4123 = vmatpush2.msra.mxu0 0.0
          %4124 = vmatprep.subr.mxu0 0.0
          %4125 = vmatpush2.msra.mxu0 0.0
          %4126 = vmatprep.subr.mxu0 0.0
          %4127 = vmatpush2.msra.mxu0 0.0
          %4128 = vmatprep.subr.mxu0 0.0
          %4129 = vmatpush2.msra.mxu0 0.0
          %4130 = vmatprep.subr.mxu0 0.0
          %4131 = vmatpush2.msra.mxu0 0.0
          %4132 = vmatprep.subr.mxu0 0.0
          %4133 = vmatpush2.msra.mxu0 0.0
          %4134 = vmatprep.subr.mxu0 0.0
          %4135 = vmatpush2.msra.mxu0 0.0
          %4136 = vmatprep.subr.mxu0 0.0
          %4137 = vmatpush2.msra.mxu0 0.0
          %4138 = vmatprep.subr.mxu0 0.0
          %4139 = vmatpush2.msra.mxu0 0.0
          %4140 = vmatprep.subr.mxu0 0.0
          %4141 = vmatpush2.msra.mxu0 0.0
          %4142 = vmatprep.subr.mxu0 0.0
          %4143 = vmatpush2.msra.mxu0 0.0
          %4144 = vmatprep.subr.mxu0 0.0
          %4145 = vmatpush2.msra.mxu0 0.0
          %4146 = vmatprep.mubr.f32.mxu0 0.0
          %v4147 = vand.u32 %v3101, 4294901760
          %4148 = vmatmul.mubr.f32.gmra.mxu0 %v4147
          %v4149 = vpop.f32.mrf.mxu0
          %v4150 = vadd.f32 %v3988, %v4149
          %v4151 = vpop.f32.mrf.mxu0
          %4152 = vmatprep.mubr.f32.mxu0 0.0
          %v4153 = vand.u32 %v3104, 4294901760
          %4154 = vmatmul.mubr.f32.gmra.mxu0 %v4153
          %v4155 = vpop.f32.mrf.mxu0
          %v4156 = vadd.f32 %v3994, %v4155
          %v4157 = vpop.f32.mrf.mxu0
          %4158 = vmatprep.mubr.f32.mxu0 0.0
          %v4159 = vand.u32 %v3107, 4294901760
          %4160 = vmatmul.mubr.f32.gmra.mxu0 %v4159
          %v4161 = vpop.f32.mrf.mxu0
          %v4162 = vadd.f32 %v4000, %v4161
          %v4163 = vpop.f32.mrf.mxu0
          %4164 = vmatprep.mubr.f32.mxu0 0.0
          %v4165 = vand.u32 %v3110, 4294901760
          %4166 = vmatmul.mubr.f32.gmra.mxu0 %v4165
          %v4167 = vpop.f32.mrf.mxu0
          %v4168 = vadd.f32 %v4006, %v4167
          %v4169 = vpop.f32.mrf.mxu0
          %4170 = vmatprep.mubr.f32.mxu0 0.0
          %v4171 = vand.u32 %v3113, 4294901760
          %4172 = vmatmul.mubr.f32.gmra.mxu0 %v4171
          %v4173 = vpop.f32.mrf.mxu0
          %v4174 = vadd.f32 %v4012, %v4173
          %v4175 = vpop.f32.mrf.mxu0
          %4176 = vmatprep.mubr.f32.mxu0 0.0
          %v4177 = vand.u32 %v3116, 4294901760
          %4178 = vmatmul.mubr.f32.gmra.mxu0 %v4177
          %v4179 = vpop.f32.mrf.mxu0
          %v4180 = vadd.f32 %v4018, %v4179
          %v4181 = vpop.f32.mrf.mxu0
          %4182 = vmatprep.mubr.f32.mxu0 0.0
          %v4183 = vand.u32 %v3119, 4294901760
          %4184 = vmatmul.mubr.f32.gmra.mxu0 %v4183
          %v4185 = vpop.f32.mrf.mxu0
          %v4186 = vadd.f32 %v4024, %v4185
          %v4187 = vpop.f32.mrf.mxu0
          %4188 = vmatprep.mubr.f32.mxu0 0.0
          %v4189 = vand.u32 %v3122, 4294901760
          %4190 = vmatmul.mubr.f32.gmra.mxu0 %v4189
          %v4191 = vpop.f32.mrf.mxu0
          %v4192 = vadd.f32 %v4030, %v4191
          %v4193 = vpop.f32.mrf.mxu0
          %4194 = vmatprep.mubr.f32.mxu0 0.0
          %v4195 = vand.u32 %v3125, 4294901760
          %4196 = vmatmul.mubr.f32.gmra.mxu0 %v4195
          %v4197 = vpop.f32.mrf.mxu0
          %v4198 = vadd.f32 %v4036, %v4197
          %v4199 = vpop.f32.mrf.mxu0
          %4200 = vmatprep.mubr.f32.mxu0 0.0
          %v4201 = vand.u32 %v3128, 4294901760
          %4202 = vmatmul.mubr.f32.gmra.mxu0 %v4201
          %v4203 = vpop.f32.mrf.mxu0
          %v4204 = vadd.f32 %v4042, %v4203
          %v4205 = vpop.f32.mrf.mxu0
          %4206 = vmatprep.mubr.f32.mxu0 0.0
          %v4207 = vand.u32 %v3131, 4294901760
          %4208 = vmatmul.mubr.f32.gmra.mxu0 %v4207
          %v4209 = vpop.f32.mrf.mxu0
          %v4210 = vadd.f32 %v4048, %v4209
          %v4211 = vpop.f32.mrf.mxu0
          %4212 = vmatprep.mubr.f32.mxu0 0.0
          %v4213 = vand.u32 %v3134, 4294901760
          %4214 = vmatmul.mubr.f32.gmra.mxu0 %v4213
          %v4215 = vpop.f32.mrf.mxu0
          %v4216 = vadd.f32 %v4054, %v4215
          %v4217 = vpop.f32.mrf.mxu0
          %4218 = vmatprep.mubr.f32.mxu0 0.0
          %v4219 = vand.u32 %v3137, 4294901760
          %4220 = vmatmul.mubr.f32.gmra.mxu0 %v4219
          %v4221 = vpop.f32.mrf.mxu0
          %v4222 = vadd.f32 %v4060, %v4221
          %v4223 = vpop.f32.mrf.mxu0
          %4224 = vmatprep.mubr.f32.mxu0 0.0
          %v4225 = vand.u32 %v3140, 4294901760
          %4226 = vmatmul.mubr.f32.gmra.mxu0 %v4225
          %v4227 = vpop.f32.mrf.mxu0
          %v4228 = vadd.f32 %v4066, %v4227
          %v4229 = vpop.f32.mrf.mxu0
          %4230 = vmatprep.mubr.f32.mxu0 0.0
          %v4231 = vand.u32 %v3143, 4294901760
          %4232 = vmatmul.mubr.f32.gmra.mxu0 %v4231
          %v4233 = vpop.f32.mrf.mxu0
          %v4234 = vadd.f32 %v4072, %v4233
          %v4235 = vpop.f32.mrf.mxu0
          %4236 = vmatprep.mubr.f32.mxu0 0.0
          %v4237 = vand.u32 %v3146, 4294901760
          %4238 = vmatmul.mubr.f32.gmra.mxu0 %v4237
          %v4239 = vpop.f32.mrf.mxu0
          %v4240 = vadd.f32 %v4078, %v4239
          %v4241 = vpop.f32.mrf.mxu0
          %4242 = vdwg.mxu0
          %4243 = vxpose.xlu0.b32.start [1/16] %v3064, 128
          %4244 = vxpose.xlu0.b32.cont [2/16] 0.0, 128
          %4245 = vxpose.xlu0.b32.cont [3/16] 0.0, 128
          %4246 = vxpose.xlu0.b32.cont [4/16] 0.0, 128
          %4247 = vxpose.xlu0.b32.cont [5/16] 0.0, 128
          %4248 = vxpose.xlu0.b32.cont [6/16] 0.0, 128
          %4249 = vxpose.xlu0.b32.cont [7/16] 0.0, 128
          %4250 = vxpose.xlu0.b32.cont [8/16] 0.0, 128
          %4251 = vxpose.xlu0.b32.cont [9/16] 0.0, 128
          %4252 = vxpose.xlu0.b32.cont [10/16] 0.0, 128
          %4253 = vxpose.xlu0.b32.cont [11/16] 0.0, 128
          %4254 = vxpose.xlu0.b32.cont [12/16] 0.0, 128
          %4255 = vxpose.xlu0.b32.cont [13/16] 0.0, 128
          %4256 = vxpose.xlu0.b32.cont [14/16] 0.0, 128
          %4257 = vxpose.xlu0.b32.cont [15/16] 0.0, 128
          %4258 = vxpose.xlu0.b32.end [16/16] 0.0, 128
          %v4259 = vpop.trf.xlu0
          %v4260 = vpop.trf.xlu0
          %v4261 = vpop.trf.xlu0
          %v4262 = vpop.trf.xlu0
          %v4263 = vpop.trf.xlu0
          %v4264 = vpop.trf.xlu0
          %v4265 = vpop.trf.xlu0
          %v4266 = vpop.trf.xlu0
          %v4267 = vpop.trf.xlu0
          %v4268 = vpop.trf.xlu0
          %v4269 = vpop.trf.xlu0
          %v4270 = vpop.trf.xlu0
          %v4271 = vpop.trf.xlu0
          %v4272 = vpop.trf.xlu0
          %v4273 = vpop.trf.xlu0
          %v4274 = vpop.trf.xlu0
          %v4276 = vsel %vm3099, %v4259, 0
          %v4279 = vsel %vm3099, %v4260, 0
          %v4282 = vsel %vm3099, %v4261, 0
          %v4285 = vsel %vm3099, %v4262, 0
          %v4288 = vsel %vm3099, %v4263, 0
          %v4291 = vsel %vm3099, %v4264, 0
          %v4294 = vsel %vm3099, %v4265, 0
          %v4297 = vsel %vm3099, %v4266, 0
          %v4300 = vsel %vm3099, %v4267, 0
          %v4303 = vsel %vm3099, %v4268, 0
          %v4306 = vsel %vm3099, %v4269, 0
          %v4309 = vsel %vm3099, %v4270, 0
          %v4312 = vsel %vm3099, %v4271, 0
          %v4315 = vsel %vm3099, %v4272, 0
          %v4318 = vsel %vm3099, %v4273, 0
          %v4321 = vsel %vm3099, %v4274, 0
          %v4324 = vsel %vm3148, %v3066, 0
          %4326 = vmatprep.subr.mxu0 0.0
          %4327 = vmatpush1.msra.mxu0 0.0
          %4328 = vmatprep.subr.mxu0 0.0
          %4329 = vmatpush1.msra.mxu0 0.0
          %4330 = vmatprep.subr.mxu0 0.0
          %4331 = vmatpush1.msra.mxu0 0.0
          %4332 = vmatprep.subr.mxu0 0.0
          %4333 = vmatpush1.msra.mxu0 0.0
          %4334 = vmatprep.subr.mxu0 0.0
          %4335 = vmatpush1.msra.mxu0 0.0
          %4336 = vmatprep.subr.mxu0 0.0
          %4337 = vmatpush1.msra.mxu0 0.0
          %4338 = vmatprep.subr.mxu0 0.0
          %4339 = vmatpush1.msra.mxu0 0.0
          %4340 = vmatprep.subr.mxu0 0.0
          %4341 = vmatpush1.msra.mxu0 0.0
          %4342 = vmatprep.subr.mxu0 0.0
          %4343 = vmatpush1.msra.mxu0 0.0
          %4344 = vmatprep.subr.mxu0 0.0
          %4345 = vmatpush1.msra.mxu0 0.0
          %4346 = vmatprep.subr.mxu0 0.0
          %4347 = vmatpush1.msra.mxu0 0.0
          %4348 = vmatprep.subr.mxu0 0.0
          %4349 = vmatpush1.msra.mxu0 0.0
          %4350 = vmatprep.subr.mxu0 0.0
          %4351 = vmatpush1.msra.mxu0 0.0
          %4352 = vmatprep.subr.mxu0 0.0
          %4353 = vmatpush1.msra.mxu0 0.0
          %4354 = vmatprep.subr.mxu0 0.0
          %4355 = vmatpush1.msra.mxu0 0.0
          %4356 = vmatprep.subr.mxu0 0.0
          %v4357 = vand.u32 %v4324, 4294901760
          %4358 = vmatpush1.msra.mxu0 %v4357
          %4359 = vmatprep.subr.mxu0 0.0
          %4360 = vmatpush2.msra.mxu0 0.0
          %4361 = vmatprep.subr.mxu0 0.0
          %4362 = vmatpush2.msra.mxu0 0.0
          %4363 = vmatprep.subr.mxu0 0.0
          %4364 = vmatpush2.msra.mxu0 0.0
          %4365 = vmatprep.subr.mxu0 0.0
          %4366 = vmatpush2.msra.mxu0 0.0
          %4367 = vmatprep.subr.mxu0 0.0
          %4368 = vmatpush2.msra.mxu0 0.0
          %4369 = vmatprep.subr.mxu0 0.0
          %4370 = vmatpush2.msra.mxu0 0.0
          %4371 = vmatprep.subr.mxu0 0.0
          %4372 = vmatpush2.msra.mxu0 0.0
          %4373 = vmatprep.subr.mxu0 0.0
          %4374 = vmatpush2.msra.mxu0 0.0
          %4375 = vmatprep.subr.mxu0 0.0
          %4376 = vmatpush2.msra.mxu0 0.0
          %4377 = vmatprep.subr.mxu0 0.0
          %4378 = vmatpush2.msra.mxu0 0.0
          %4379 = vmatprep.subr.mxu0 0.0
          %4380 = vmatpush2.msra.mxu0 0.0
          %4381 = vmatprep.subr.mxu0 0.0
          %4382 = vmatpush2.msra.mxu0 0.0
          %4383 = vmatprep.subr.mxu0 0.0
          %4384 = vmatpush2.msra.mxu0 0.0
          %4385 = vmatprep.subr.mxu0 0.0
          %4386 = vmatpush2.msra.mxu0 0.0
          %4387 = vmatprep.subr.mxu0 0.0
          %4388 = vmatpush2.msra.mxu0 0.0
          %4389 = vmatprep.subr.mxu0 0.0
          %4390 = vmatpush2.msra.mxu0 0.0
          %4391 = vmatprep.mubr.f32.mxu0 0.0
          %v4392 = vand.u32 %v4276, 4294901760
          %v4393 = vsub.f32 %v4276, %v4392
          %v4394 = vand.u32 %v4393, 4294901760
          %v4395 = vsub.f32 %v4393, %v4394
          %v4396 = vand.u32 %v4395, 4294901760
          %4397 = vmatmul.mubr.f32.gmra.mxu0 %v4396
          %v4398 = vpop.f32.mrf.mxu0
          %v4399 = vadd.f32 0.0, %v4398
          %v4400 = vpop.f32.mrf.mxu0
          %4401 = vmatprep.mubr.f32.mxu0 0.0
          %v4402 = vand.u32 %v4279, 4294901760
          %v4403 = vsub.f32 %v4279, %v4402
          %v4404 = vand.u32 %v4403, 4294901760
          %v4405 = vsub.f32 %v4403, %v4404
          %v4406 = vand.u32 %v4405, 4294901760
          %4407 = vmatmul.mubr.f32.gmra.mxu0 %v4406
          %v4408 = vpop.f32.mrf.mxu0
          %v4409 = vadd.f32 0.0, %v4408
          %v4410 = vpop.f32.mrf.mxu0
          %4411 = vmatprep.mubr.f32.mxu0 0.0
          %v4412 = vand.u32 %v4282, 4294901760
          %v4413 = vsub.f32 %v4282, %v4412
          %v4414 = vand.u32 %v4413, 4294901760
          %v4415 = vsub.f32 %v4413, %v4414
          %v4416 = vand.u32 %v4415, 4294901760
          %4417 = vmatmul.mubr.f32.gmra.mxu0 %v4416
          %v4418 = vpop.f32.mrf.mxu0
          %v4419 = vadd.f32 0.0, %v4418
          %v4420 = vpop.f32.mrf.mxu0
          %4421 = vmatprep.mubr.f32.mxu0 0.0
          %v4422 = vand.u32 %v4285, 4294901760
          %v4423 = vsub.f32 %v4285, %v4422
          %v4424 = vand.u32 %v4423, 4294901760
          %v4425 = vsub.f32 %v4423, %v4424
          %v4426 = vand.u32 %v4425, 4294901760
          %4427 = vmatmul.mubr.f32.gmra.mxu0 %v4426
          %v4428 = vpop.f32.mrf.mxu0
          %v4429 = vadd.f32 0.0, %v4428
          %v4430 = vpop.f32.mrf.mxu0
          %4431 = vmatprep.mubr.f32.mxu0 0.0
          %v4432 = vand.u32 %v4288, 4294901760
          %v4433 = vsub.f32 %v4288, %v4432
          %v4434 = vand.u32 %v4433, 4294901760
          %v4435 = vsub.f32 %v4433, %v4434
          %v4436 = vand.u32 %v4435, 4294901760
          %4437 = vmatmul.mubr.f32.gmra.mxu0 %v4436
          %v4438 = vpop.f32.mrf.mxu0
          %v4439 = vadd.f32 0.0, %v4438
          %v4440 = vpop.f32.mrf.mxu0
          %4441 = vmatprep.mubr.f32.mxu0 0.0
          %v4442 = vand.u32 %v4291, 4294901760
          %v4443 = vsub.f32 %v4291, %v4442
          %v4444 = vand.u32 %v4443, 4294901760
          %v4445 = vsub.f32 %v4443, %v4444
          %v4446 = vand.u32 %v4445, 4294901760
          %4447 = vmatmul.mubr.f32.gmra.mxu0 %v4446
          %v4448 = vpop.f32.mrf.mxu0
          %v4449 = vadd.f32 0.0, %v4448
          %v4450 = vpop.f32.mrf.mxu0
          %4451 = vmatprep.mubr.f32.mxu0 0.0
          %v4452 = vand.u32 %v4294, 4294901760
          %v4453 = vsub.f32 %v4294, %v4452
          %v4454 = vand.u32 %v4453, 4294901760
          %v4455 = vsub.f32 %v4453, %v4454
          %v4456 = vand.u32 %v4455, 4294901760
          %4457 = vmatmul.mubr.f32.gmra.mxu0 %v4456
          %v4458 = vpop.f32.mrf.mxu0
          %v4459 = vadd.f32 0.0, %v4458
          %v4460 = vpop.f32.mrf.mxu0
          %4461 = vmatprep.mubr.f32.mxu0 0.0
          %v4462 = vand.u32 %v4297, 4294901760
          %v4463 = vsub.f32 %v4297, %v4462
          %v4464 = vand.u32 %v4463, 4294901760
          %v4465 = vsub.f32 %v4463, %v4464
          %v4466 = vand.u32 %v4465, 4294901760
          %4467 = vmatmul.mubr.f32.gmra.mxu0 %v4466
          %v4468 = vpop.f32.mrf.mxu0
          %v4469 = vadd.f32 0.0, %v4468
          %v4470 = vpop.f32.mrf.mxu0
          %4471 = vmatprep.mubr.f32.mxu0 0.0
          %v4472 = vand.u32 %v4300, 4294901760
          %v4473 = vsub.f32 %v4300, %v4472
          %v4474 = vand.u32 %v4473, 4294901760
          %v4475 = vsub.f32 %v4473, %v4474
          %v4476 = vand.u32 %v4475, 4294901760
          %4477 = vmatmul.mubr.f32.gmra.mxu0 %v4476
          %v4478 = vpop.f32.mrf.mxu0
          %v4479 = vadd.f32 0.0, %v4478
          %v4480 = vpop.f32.mrf.mxu0
          %4481 = vmatprep.mubr.f32.mxu0 0.0
          %v4482 = vand.u32 %v4303, 4294901760
          %v4483 = vsub.f32 %v4303, %v4482
          %v4484 = vand.u32 %v4483, 4294901760
          %v4485 = vsub.f32 %v4483, %v4484
          %v4486 = vand.u32 %v4485, 4294901760
          %4487 = vmatmul.mubr.f32.gmra.mxu0 %v4486
          %v4488 = vpop.f32.mrf.mxu0
          %v4489 = vadd.f32 0.0, %v4488
          %v4490 = vpop.f32.mrf.mxu0
          %4491 = vmatprep.mubr.f32.mxu0 0.0
          %v4492 = vand.u32 %v4306, 4294901760
          %v4493 = vsub.f32 %v4306, %v4492
          %v4494 = vand.u32 %v4493, 4294901760
          %v4495 = vsub.f32 %v4493, %v4494
          %v4496 = vand.u32 %v4495, 4294901760
          %4497 = vmatmul.mubr.f32.gmra.mxu0 %v4496
          %v4498 = vpop.f32.mrf.mxu0
          %v4499 = vadd.f32 0.0, %v4498
          %v4500 = vpop.f32.mrf.mxu0
          %4501 = vmatprep.mubr.f32.mxu0 0.0
          %v4502 = vand.u32 %v4309, 4294901760
          %v4503 = vsub.f32 %v4309, %v4502
          %v4504 = vand.u32 %v4503, 4294901760
          %v4505 = vsub.f32 %v4503, %v4504
          %v4506 = vand.u32 %v4505, 4294901760
          %4507 = vmatmul.mubr.f32.gmra.mxu0 %v4506
          %v4508 = vpop.f32.mrf.mxu0
          %v4509 = vadd.f32 0.0, %v4508
          %v4510 = vpop.f32.mrf.mxu0
          %4511 = vmatprep.mubr.f32.mxu0 0.0
          %v4512 = vand.u32 %v4312, 4294901760
          %v4513 = vsub.f32 %v4312, %v4512
          %v4514 = vand.u32 %v4513, 4294901760
          %v4515 = vsub.f32 %v4513, %v4514
          %v4516 = vand.u32 %v4515, 4294901760
          %4517 = vmatmul.mubr.f32.gmra.mxu0 %v4516
          %v4518 = vpop.f32.mrf.mxu0
          %v4519 = vadd.f32 0.0, %v4518
          %v4520 = vpop.f32.mrf.mxu0
          %4521 = vmatprep.mubr.f32.mxu0 0.0
          %v4522 = vand.u32 %v4315, 4294901760
          %v4523 = vsub.f32 %v4315, %v4522
          %v4524 = vand.u32 %v4523, 4294901760
          %v4525 = vsub.f32 %v4523, %v4524
          %v4526 = vand.u32 %v4525, 4294901760
          %4527 = vmatmul.mubr.f32.gmra.mxu0 %v4526
          %v4528 = vpop.f32.mrf.mxu0
          %v4529 = vadd.f32 0.0, %v4528
          %v4530 = vpop.f32.mrf.mxu0
          %4531 = vmatprep.mubr.f32.mxu0 0.0
          %v4532 = vand.u32 %v4318, 4294901760
          %v4533 = vsub.f32 %v4318, %v4532
          %v4534 = vand.u32 %v4533, 4294901760
          %v4535 = vsub.f32 %v4533, %v4534
          %v4536 = vand.u32 %v4535, 4294901760
          %4537 = vmatmul.mubr.f32.gmra.mxu0 %v4536
          %v4538 = vpop.f32.mrf.mxu0
          %v4539 = vadd.f32 0.0, %v4538
          %v4540 = vpop.f32.mrf.mxu0
          %4541 = vmatprep.mubr.f32.mxu0 0.0
          %v4542 = vand.u32 %v4321, 4294901760
          %v4543 = vsub.f32 %v4321, %v4542
          %v4544 = vand.u32 %v4543, 4294901760
          %v4545 = vsub.f32 %v4543, %v4544
          %v4546 = vand.u32 %v4545, 4294901760
          %4547 = vmatmul.mubr.f32.gmra.mxu0 %v4546
          %v4548 = vpop.f32.mrf.mxu0
          %v4549 = vadd.f32 0.0, %v4548
          %v4550 = vpop.f32.mrf.mxu0
          %4551 = vdwg.mxu0
          %4552 = vmatprep.subr.mxu0 0.0
          %4553 = vmatpush1.msra.mxu0 0.0
          %4554 = vmatprep.subr.mxu0 0.0
          %4555 = vmatpush1.msra.mxu0 0.0
          %4556 = vmatprep.subr.mxu0 0.0
          %4557 = vmatpush1.msra.mxu0 0.0
          %4558 = vmatprep.subr.mxu0 0.0
          %4559 = vmatpush1.msra.mxu0 0.0
          %4560 = vmatprep.subr.mxu0 0.0
          %4561 = vmatpush1.msra.mxu0 0.0
          %4562 = vmatprep.subr.mxu0 0.0
          %4563 = vmatpush1.msra.mxu0 0.0
          %4564 = vmatprep.subr.mxu0 0.0
          %4565 = vmatpush1.msra.mxu0 0.0
          %4566 = vmatprep.subr.mxu0 0.0
          %4567 = vmatpush1.msra.mxu0 0.0
          %4568 = vmatprep.subr.mxu0 0.0
          %4569 = vmatpush1.msra.mxu0 0.0
          %4570 = vmatprep.subr.mxu0 0.0
          %4571 = vmatpush1.msra.mxu0 0.0
          %4572 = vmatprep.subr.mxu0 0.0
          %4573 = vmatpush1.msra.mxu0 0.0
          %4574 = vmatprep.subr.mxu0 0.0
          %4575 = vmatpush1.msra.mxu0 0.0
          %4576 = vmatprep.subr.mxu0 0.0
          %4577 = vmatpush1.msra.mxu0 0.0
          %4578 = vmatprep.subr.mxu0 0.0
          %4579 = vmatpush1.msra.mxu0 0.0
          %4580 = vmatprep.subr.mxu0 0.0
          %4581 = vmatpush1.msra.mxu0 0.0
          %4582 = vmatprep.subr.mxu0 0.0
          %v4583 = vand.u32 %v4324, 4294901760
          %v4584 = vsub.f32 %v4324, %v4583
          %v4585 = vand.u32 %v4584, 4294901760
          %v4586 = vsub.f32 %v4584, %v4585
          %v4587 = vand.u32 %v4586, 4294901760
          %4588 = vmatpush1.msra.mxu0 %v4587
          %4589 = vmatprep.subr.mxu0 0.0
          %4590 = vmatpush2.msra.mxu0 0.0
          %4591 = vmatprep.subr.mxu0 0.0
          %4592 = vmatpush2.msra.mxu0 0.0
          %4593 = vmatprep.subr.mxu0 0.0
          %4594 = vmatpush2.msra.mxu0 0.0
          %4595 = vmatprep.subr.mxu0 0.0
          %4596 = vmatpush2.msra.mxu0 0.0
          %4597 = vmatprep.subr.mxu0 0.0
          %4598 = vmatpush2.msra.mxu0 0.0
          %4599 = vmatprep.subr.mxu0 0.0
          %4600 = vmatpush2.msra.mxu0 0.0
          %4601 = vmatprep.subr.mxu0 0.0
          %4602 = vmatpush2.msra.mxu0 0.0
          %4603 = vmatprep.subr.mxu0 0.0
          %4604 = vmatpush2.msra.mxu0 0.0
          %4605 = vmatprep.subr.mxu0 0.0
          %4606 = vmatpush2.msra.mxu0 0.0
          %4607 = vmatprep.subr.mxu0 0.0
          %4608 = vmatpush2.msra.mxu0 0.0
          %4609 = vmatprep.subr.mxu0 0.0
          %4610 = vmatpush2.msra.mxu0 0.0
          %4611 = vmatprep.subr.mxu0 0.0
          %4612 = vmatpush2.msra.mxu0 0.0
          %4613 = vmatprep.subr.mxu0 0.0
          %4614 = vmatpush2.msra.mxu0 0.0
          %4615 = vmatprep.subr.mxu0 0.0
          %4616 = vmatpush2.msra.mxu0 0.0
          %4617 = vmatprep.subr.mxu0 0.0
          %4618 = vmatpush2.msra.mxu0 0.0
          %4619 = vmatprep.subr.mxu0 0.0
          %4620 = vmatpush2.msra.mxu0 0.0
          %4621 = vmatprep.mubr.f32.mxu0 0.0
          %v4622 = vand.u32 %v4276, 4294901760
          %4623 = vmatmul.mubr.f32.gmra.mxu0 %v4622
          %v4624 = vpop.f32.mrf.mxu0
          %v4625 = vadd.f32 %v4399, %v4624
          %v4626 = vpop.f32.mrf.mxu0
          %4627 = vmatprep.mubr.f32.mxu0 0.0
          %v4628 = vand.u32 %v4279, 4294901760
          %4629 = vmatmul.mubr.f32.gmra.mxu0 %v4628
          %v4630 = vpop.f32.mrf.mxu0
          %v4631 = vadd.f32 %v4409, %v4630
          %v4632 = vpop.f32.mrf.mxu0
          %4633 = vmatprep.mubr.f32.mxu0 0.0
          %v4634 = vand.u32 %v4282, 4294901760
          %4635 = vmatmul.mubr.f32.gmra.mxu0 %v4634
          %v4636 = vpop.f32.mrf.mxu0
          %v4637 = vadd.f32 %v4419, %v4636
          %v4638 = vpop.f32.mrf.mxu0
          %4639 = vmatprep.mubr.f32.mxu0 0.0
          %v4640 = vand.u32 %v4285, 4294901760
          %4641 = vmatmul.mubr.f32.gmra.mxu0 %v4640
          %v4642 = vpop.f32.mrf.mxu0
          %v4643 = vadd.f32 %v4429, %v4642
          %v4644 = vpop.f32.mrf.mxu0
          %4645 = vmatprep.mubr.f32.mxu0 0.0
          %v4646 = vand.u32 %v4288, 4294901760
          %4647 = vmatmul.mubr.f32.gmra.mxu0 %v4646
          %v4648 = vpop.f32.mrf.mxu0
          %v4649 = vadd.f32 %v4439, %v4648
          %v4650 = vpop.f32.mrf.mxu0
          %4651 = vmatprep.mubr.f32.mxu0 0.0
          %v4652 = vand.u32 %v4291, 4294901760
          %4653 = vmatmul.mubr.f32.gmra.mxu0 %v4652
          %v4654 = vpop.f32.mrf.mxu0
          %v4655 = vadd.f32 %v4449, %v4654
          %v4656 = vpop.f32.mrf.mxu0
          %4657 = vmatprep.mubr.f32.mxu0 0.0
          %v4658 = vand.u32 %v4294, 4294901760
          %4659 = vmatmul.mubr.f32.gmra.mxu0 %v4658
          %v4660 = vpop.f32.mrf.mxu0
          %v4661 = vadd.f32 %v4459, %v4660
          %v4662 = vpop.f32.mrf.mxu0
          %4663 = vmatprep.mubr.f32.mxu0 0.0
          %v4664 = vand.u32 %v4297, 4294901760
          %4665 = vmatmul.mubr.f32.gmra.mxu0 %v4664
          %v4666 = vpop.f32.mrf.mxu0
          %v4667 = vadd.f32 %v4469, %v4666
          %v4668 = vpop.f32.mrf.mxu0
          %4669 = vmatprep.mubr.f32.mxu0 0.0
          %v4670 = vand.u32 %v4300, 4294901760
          %4671 = vmatmul.mubr.f32.gmra.mxu0 %v4670
          %v4672 = vpop.f32.mrf.mxu0
          %v4673 = vadd.f32 %v4479, %v4672
          %v4674 = vpop.f32.mrf.mxu0
          %4675 = vmatprep.mubr.f32.mxu0 0.0
          %v4676 = vand.u32 %v4303, 4294901760
          %4677 = vmatmul.mubr.f32.gmra.mxu0 %v4676
          %v4678 = vpop.f32.mrf.mxu0
          %v4679 = vadd.f32 %v4489, %v4678
          %v4680 = vpop.f32.mrf.mxu0
          %4681 = vmatprep.mubr.f32.mxu0 0.0
          %v4682 = vand.u32 %v4306, 4294901760
          %4683 = vmatmul.mubr.f32.gmra.mxu0 %v4682
          %v4684 = vpop.f32.mrf.mxu0
          %v4685 = vadd.f32 %v4499, %v4684
          %v4686 = vpop.f32.mrf.mxu0
          %4687 = vmatprep.mubr.f32.mxu0 0.0
          %v4688 = vand.u32 %v4309, 4294901760
          %4689 = vmatmul.mubr.f32.gmra.mxu0 %v4688
          %v4690 = vpop.f32.mrf.mxu0
          %v4691 = vadd.f32 %v4509, %v4690
          %v4692 = vpop.f32.mrf.mxu0
          %4693 = vmatprep.mubr.f32.mxu0 0.0
          %v4694 = vand.u32 %v4312, 4294901760
          %4695 = vmatmul.mubr.f32.gmra.mxu0 %v4694
          %v4696 = vpop.f32.mrf.mxu0
          %v4697 = vadd.f32 %v4519, %v4696
          %v4698 = vpop.f32.mrf.mxu0
          %4699 = vmatprep.mubr.f32.mxu0 0.0
          %v4700 = vand.u32 %v4315, 4294901760
          %4701 = vmatmul.mubr.f32.gmra.mxu0 %v4700
          %v4702 = vpop.f32.mrf.mxu0
          %v4703 = vadd.f32 %v4529, %v4702
          %v4704 = vpop.f32.mrf.mxu0
          %4705 = vmatprep.mubr.f32.mxu0 0.0
          %v4706 = vand.u32 %v4318, 4294901760
          %4707 = vmatmul.mubr.f32.gmra.mxu0 %v4706
          %v4708 = vpop.f32.mrf.mxu0
          %v4709 = vadd.f32 %v4539, %v4708
          %v4710 = vpop.f32.mrf.mxu0
          %4711 = vmatprep.mubr.f32.mxu0 0.0
          %v4712 = vand.u32 %v4321, 4294901760
          %4713 = vmatmul.mubr.f32.gmra.mxu0 %v4712
          %v4714 = vpop.f32.mrf.mxu0
          %v4715 = vadd.f32 %v4549, %v4714
          %v4716 = vpop.f32.mrf.mxu0
          %4717 = vdwg.mxu0
          %4718 = vmatprep.subr.mxu0 0.0
          %4719 = vmatpush1.msra.mxu0 0.0
          %4720 = vmatprep.subr.mxu0 0.0
          %4721 = vmatpush1.msra.mxu0 0.0
          %4722 = vmatprep.subr.mxu0 0.0
          %4723 = vmatpush1.msra.mxu0 0.0
          %4724 = vmatprep.subr.mxu0 0.0
          %4725 = vmatpush1.msra.mxu0 0.0
          %4726 = vmatprep.subr.mxu0 0.0
          %4727 = vmatpush1.msra.mxu0 0.0
          %4728 = vmatprep.subr.mxu0 0.0
          %4729 = vmatpush1.msra.mxu0 0.0
          %4730 = vmatprep.subr.mxu0 0.0
          %4731 = vmatpush1.msra.mxu0 0.0
          %4732 = vmatprep.subr.mxu0 0.0
          %4733 = vmatpush1.msra.mxu0 0.0
          %4734 = vmatprep.subr.mxu0 0.0
          %4735 = vmatpush1.msra.mxu0 0.0
          %4736 = vmatprep.subr.mxu0 0.0
          %4737 = vmatpush1.msra.mxu0 0.0
          %4738 = vmatprep.subr.mxu0 0.0
          %4739 = vmatpush1.msra.mxu0 0.0
          %4740 = vmatprep.subr.mxu0 0.0
          %4741 = vmatpush1.msra.mxu0 0.0
          %4742 = vmatprep.subr.mxu0 0.0
          %4743 = vmatpush1.msra.mxu0 0.0
          %4744 = vmatprep.subr.mxu0 0.0
          %4745 = vmatpush1.msra.mxu0 0.0
          %4746 = vmatprep.subr.mxu0 0.0
          %4747 = vmatpush1.msra.mxu0 0.0
          %4748 = vmatprep.subr.mxu0 0.0
          %v4749 = vand.u32 %v4324, 4294901760
          %v4750 = vsub.f32 %v4324, %v4749
          %4751 = vmatpush1.msra.mxu0 %v4750
          %4752 = vmatprep.subr.mxu0 0.0
          %4753 = vmatpush2.msra.mxu0 0.0
          %4754 = vmatprep.subr.mxu0 0.0
          %4755 = vmatpush2.msra.mxu0 0.0
          %4756 = vmatprep.subr.mxu0 0.0
          %4757 = vmatpush2.msra.mxu0 0.0
          %4758 = vmatprep.subr.mxu0 0.0
          %4759 = vmatpush2.msra.mxu0 0.0
          %4760 = vmatprep.subr.mxu0 0.0
          %4761 = vmatpush2.msra.mxu0 0.0
          %4762 = vmatprep.subr.mxu0 0.0
          %4763 = vmatpush2.msra.mxu0 0.0
          %4764 = vmatprep.subr.mxu0 0.0
          %4765 = vmatpush2.msra.mxu0 0.0
          %4766 = vmatprep.subr.mxu0 0.0
          %4767 = vmatpush2.msra.mxu0 0.0
          %4768 = vmatprep.subr.mxu0 0.0
          %4769 = vmatpush2.msra.mxu0 0.0
          %4770 = vmatprep.subr.mxu0 0.0
          %4771 = vmatpush2.msra.mxu0 0.0
          %4772 = vmatprep.subr.mxu0 0.0
          %4773 = vmatpush2.msra.mxu0 0.0
          %4774 = vmatprep.subr.mxu0 0.0
          %4775 = vmatpush2.msra.mxu0 0.0
          %4776 = vmatprep.subr.mxu0 0.0
          %4777 = vmatpush2.msra.mxu0 0.0
          %4778 = vmatprep.subr.mxu0 0.0
          %4779 = vmatpush2.msra.mxu0 0.0
          %4780 = vmatprep.subr.mxu0 0.0
          %4781 = vmatpush2.msra.mxu0 0.0
          %4782 = vmatprep.subr.mxu0 0.0
          %4783 = vmatpush2.msra.mxu0 0.0
          %4784 = vmatprep.mubr.f32.mxu0 0.0
          %v4785 = vand.u32 %v4276, 4294901760
          %v4786 = vsub.f32 %v4276, %v4785
          %4787 = vmatmul.mubr.f32.gmra.mxu0 %v4786
          %v4788 = vpop.f32.mrf.mxu0
          %v4789 = vadd.f32 %v4625, %v4788
          %v4790 = vpop.f32.mrf.mxu0
          %4791 = vmatprep.mubr.f32.mxu0 0.0
          %v4792 = vand.u32 %v4279, 4294901760
          %v4793 = vsub.f32 %v4279, %v4792
          %4794 = vmatmul.mubr.f32.gmra.mxu0 %v4793
          %v4795 = vpop.f32.mrf.mxu0
          %v4796 = vadd.f32 %v4631, %v4795
          %v4797 = vpop.f32.mrf.mxu0
          %4798 = vmatprep.mubr.f32.mxu0 0.0
          %v4799 = vand.u32 %v4282, 4294901760
          %v4800 = vsub.f32 %v4282, %v4799
          %4801 = vmatmul.mubr.f32.gmra.mxu0 %v4800
          %v4802 = vpop.f32.mrf.mxu0
          %v4803 = vadd.f32 %v4637, %v4802
          %v4804 = vpop.f32.mrf.mxu0
          %4805 = vmatprep.mubr.f32.mxu0 0.0
          %v4806 = vand.u32 %v4285, 4294901760
          %v4807 = vsub.f32 %v4285, %v4806
          %4808 = vmatmul.mubr.f32.gmra.mxu0 %v4807
          %v4809 = vpop.f32.mrf.mxu0
          %v4810 = vadd.f32 %v4643, %v4809
          %v4811 = vpop.f32.mrf.mxu0
          %4812 = vmatprep.mubr.f32.mxu0 0.0
          %v4813 = vand.u32 %v4288, 4294901760
          %v4814 = vsub.f32 %v4288, %v4813
          %4815 = vmatmul.mubr.f32.gmra.mxu0 %v4814
          %v4816 = vpop.f32.mrf.mxu0
          %v4817 = vadd.f32 %v4649, %v4816
          %v4818 = vpop.f32.mrf.mxu0
          %4819 = vmatprep.mubr.f32.mxu0 0.0
          %v4820 = vand.u32 %v4291, 4294901760
          %v4821 = vsub.f32 %v4291, %v4820
          %4822 = vmatmul.mubr.f32.gmra.mxu0 %v4821
          %v4823 = vpop.f32.mrf.mxu0
          %v4824 = vadd.f32 %v4655, %v4823
          %v4825 = vpop.f32.mrf.mxu0
          %4826 = vmatprep.mubr.f32.mxu0 0.0
          %v4827 = vand.u32 %v4294, 4294901760
          %v4828 = vsub.f32 %v4294, %v4827
          %4829 = vmatmul.mubr.f32.gmra.mxu0 %v4828
          %v4830 = vpop.f32.mrf.mxu0
          %v4831 = vadd.f32 %v4661, %v4830
          %v4832 = vpop.f32.mrf.mxu0
          %4833 = vmatprep.mubr.f32.mxu0 0.0
          %v4834 = vand.u32 %v4297, 4294901760
          %v4835 = vsub.f32 %v4297, %v4834
          %4836 = vmatmul.mubr.f32.gmra.mxu0 %v4835
          %v4837 = vpop.f32.mrf.mxu0
          %v4838 = vadd.f32 %v4667, %v4837
          %v4839 = vpop.f32.mrf.mxu0
          %4840 = vmatprep.mubr.f32.mxu0 0.0
          %v4841 = vand.u32 %v4300, 4294901760
          %v4842 = vsub.f32 %v4300, %v4841
          %4843 = vmatmul.mubr.f32.gmra.mxu0 %v4842
          %v4844 = vpop.f32.mrf.mxu0
          %v4845 = vadd.f32 %v4673, %v4844
          %v4846 = vpop.f32.mrf.mxu0
          %4847 = vmatprep.mubr.f32.mxu0 0.0
          %v4848 = vand.u32 %v4303, 4294901760
          %v4849 = vsub.f32 %v4303, %v4848
          %4850 = vmatmul.mubr.f32.gmra.mxu0 %v4849
          %v4851 = vpop.f32.mrf.mxu0
          %v4852 = vadd.f32 %v4679, %v4851
          %v4853 = vpop.f32.mrf.mxu0
          %4854 = vmatprep.mubr.f32.mxu0 0.0
          %v4855 = vand.u32 %v4306, 4294901760
          %v4856 = vsub.f32 %v4306, %v4855
          %4857 = vmatmul.mubr.f32.gmra.mxu0 %v4856
          %v4858 = vpop.f32.mrf.mxu0
          %v4859 = vadd.f32 %v4685, %v4858
          %v4860 = vpop.f32.mrf.mxu0
          %4861 = vmatprep.mubr.f32.mxu0 0.0
          %v4862 = vand.u32 %v4309, 4294901760
          %v4863 = vsub.f32 %v4309, %v4862
          %4864 = vmatmul.mubr.f32.gmra.mxu0 %v4863
          %v4865 = vpop.f32.mrf.mxu0
          %v4866 = vadd.f32 %v4691, %v4865
          %v4867 = vpop.f32.mrf.mxu0
          %4868 = vmatprep.mubr.f32.mxu0 0.0
          %v4869 = vand.u32 %v4312, 4294901760
          %v4870 = vsub.f32 %v4312, %v4869
          %4871 = vmatmul.mubr.f32.gmra.mxu0 %v4870
          %v4872 = vpop.f32.mrf.mxu0
          %v4873 = vadd.f32 %v4697, %v4872
          %v4874 = vpop.f32.mrf.mxu0
          %4875 = vmatprep.mubr.f32.mxu0 0.0
          %v4876 = vand.u32 %v4315, 4294901760
          %v4877 = vsub.f32 %v4315, %v4876
          %4878 = vmatmul.mubr.f32.gmra.mxu0 %v4877
          %v4879 = vpop.f32.mrf.mxu0
          %v4880 = vadd.f32 %v4703, %v4879
          %v4881 = vpop.f32.mrf.mxu0
          %4882 = vmatprep.mubr.f32.mxu0 0.0
          %v4883 = vand.u32 %v4318, 4294901760
          %v4884 = vsub.f32 %v4318, %v4883
          %4885 = vmatmul.mubr.f32.gmra.mxu0 %v4884
          %v4886 = vpop.f32.mrf.mxu0
          %v4887 = vadd.f32 %v4709, %v4886
          %v4888 = vpop.f32.mrf.mxu0
          %4889 = vmatprep.mubr.f32.mxu0 0.0
          %v4890 = vand.u32 %v4321, 4294901760
          %v4891 = vsub.f32 %v4321, %v4890
          %4892 = vmatmul.mubr.f32.gmra.mxu0 %v4891
          %v4893 = vpop.f32.mrf.mxu0
          %v4894 = vadd.f32 %v4715, %v4893
          %v4895 = vpop.f32.mrf.mxu0
          %4896 = vdwg.mxu0
          %4897 = vmatprep.subr.mxu0 0.0
          %4898 = vmatpush1.msra.mxu0 0.0
          %4899 = vmatprep.subr.mxu0 0.0
          %4900 = vmatpush1.msra.mxu0 0.0
          %4901 = vmatprep.subr.mxu0 0.0
          %4902 = vmatpush1.msra.mxu0 0.0
          %4903 = vmatprep.subr.mxu0 0.0
          %4904 = vmatpush1.msra.mxu0 0.0
          %4905 = vmatprep.subr.mxu0 0.0
          %4906 = vmatpush1.msra.mxu0 0.0
          %4907 = vmatprep.subr.mxu0 0.0
          %4908 = vmatpush1.msra.mxu0 0.0
          %4909 = vmatprep.subr.mxu0 0.0
          %4910 = vmatpush1.msra.mxu0 0.0
          %4911 = vmatprep.subr.mxu0 0.0
          %4912 = vmatpush1.msra.mxu0 0.0
          %4913 = vmatprep.subr.mxu0 0.0
          %4914 = vmatpush1.msra.mxu0 0.0
          %4915 = vmatprep.subr.mxu0 0.0
          %4916 = vmatpush1.msra.mxu0 0.0
          %4917 = vmatprep.subr.mxu0 0.0
          %4918 = vmatpush1.msra.mxu0 0.0
          %4919 = vmatprep.subr.mxu0 0.0
          %4920 = vmatpush1.msra.mxu0 0.0
          %4921 = vmatprep.subr.mxu0 0.0
          %4922 = vmatpush1.msra.mxu0 0.0
          %4923 = vmatprep.subr.mxu0 0.0
          %4924 = vmatpush1.msra.mxu0 0.0
          %4925 = vmatprep.subr.mxu0 0.0
          %4926 = vmatpush1.msra.mxu0 0.0
          %4927 = vmatprep.subr.mxu0 0.0
          %v4928 = vand.u32 %v4324, 4294901760
          %4929 = vmatpush1.msra.mxu0 %v4928
          %4930 = vmatprep.subr.mxu0 0.0
          %4931 = vmatpush2.msra.mxu0 0.0
          %4932 = vmatprep.subr.mxu0 0.0
          %4933 = vmatpush2.msra.mxu0 0.0
          %4934 = vmatprep.subr.mxu0 0.0
          %4935 = vmatpush2.msra.mxu0 0.0
          %4936 = vmatprep.subr.mxu0 0.0
          %4937 = vmatpush2.msra.mxu0 0.0
          %4938 = vmatprep.subr.mxu0 0.0
          %4939 = vmatpush2.msra.mxu0 0.0
          %4940 = vmatprep.subr.mxu0 0.0
          %4941 = vmatpush2.msra.mxu0 0.0
          %4942 = vmatprep.subr.mxu0 0.0
          %4943 = vmatpush2.msra.mxu0 0.0
          %4944 = vmatprep.subr.mxu0 0.0
          %4945 = vmatpush2.msra.mxu0 0.0
          %4946 = vmatprep.subr.mxu0 0.0
          %4947 = vmatpush2.msra.mxu0 0.0
          %4948 = vmatprep.subr.mxu0 0.0
          %4949 = vmatpush2.msra.mxu0 0.0
          %4950 = vmatprep.subr.mxu0 0.0
          %4951 = vmatpush2.msra.mxu0 0.0
          %4952 = vmatprep.subr.mxu0 0.0
          %4953 = vmatpush2.msra.mxu0 0.0
          %4954 = vmatprep.subr.mxu0 0.0
          %4955 = vmatpush2.msra.mxu0 0.0
          %4956 = vmatprep.subr.mxu0 0.0
          %4957 = vmatpush2.msra.mxu0 0.0
          %4958 = vmatprep.subr.mxu0 0.0
          %4959 = vmatpush2.msra.mxu0 0.0
          %4960 = vmatprep.subr.mxu0 0.0
          %4961 = vmatpush2.msra.mxu0 0.0
          %4962 = vmatprep.mubr.f32.mxu0 0.0
          %v4963 = vand.u32 %v4276, 4294901760
          %v4964 = vsub.f32 %v4276, %v4963
          %v4965 = vand.u32 %v4964, 4294901760
          %4966 = vmatmul.mubr.f32.gmra.mxu0 %v4965
          %v4967 = vpop.f32.mrf.mxu0
          %v4968 = vadd.f32 %v4789, %v4967
          %v4969 = vpop.f32.mrf.mxu0
          %4970 = vmatprep.mubr.f32.mxu0 0.0
          %v4971 = vand.u32 %v4279, 4294901760
          %v4972 = vsub.f32 %v4279, %v4971
          %v4973 = vand.u32 %v4972, 4294901760
          %4974 = vmatmul.mubr.f32.gmra.mxu0 %v4973
          %v4975 = vpop.f32.mrf.mxu0
          %v4976 = vadd.f32 %v4796, %v4975
          %v4977 = vpop.f32.mrf.mxu0
          %4978 = vmatprep.mubr.f32.mxu0 0.0
          %v4979 = vand.u32 %v4282, 4294901760
          %v4980 = vsub.f32 %v4282, %v4979
          %v4981 = vand.u32 %v4980, 4294901760
          %4982 = vmatmul.mubr.f32.gmra.mxu0 %v4981
          %v4983 = vpop.f32.mrf.mxu0
          %v4984 = vadd.f32 %v4803, %v4983
          %v4985 = vpop.f32.mrf.mxu0
          %4986 = vmatprep.mubr.f32.mxu0 0.0
          %v4987 = vand.u32 %v4285, 4294901760
          %v4988 = vsub.f32 %v4285, %v4987
          %v4989 = vand.u32 %v4988, 4294901760
          %4990 = vmatmul.mubr.f32.gmra.mxu0 %v4989
          %v4991 = vpop.f32.mrf.mxu0
          %v4992 = vadd.f32 %v4810, %v4991
          %v4993 = vpop.f32.mrf.mxu0
          %4994 = vmatprep.mubr.f32.mxu0 0.0
          %v4995 = vand.u32 %v4288, 4294901760
          %v4996 = vsub.f32 %v4288, %v4995
          %v4997 = vand.u32 %v4996, 4294901760
          %4998 = vmatmul.mubr.f32.gmra.mxu0 %v4997
          %v4999 = vpop.f32.mrf.mxu0
          %v5000 = vadd.f32 %v4817, %v4999
          %v5001 = vpop.f32.mrf.mxu0
          %5002 = vmatprep.mubr.f32.mxu0 0.0
          %v5003 = vand.u32 %v4291, 4294901760
          %v5004 = vsub.f32 %v4291, %v5003
          %v5005 = vand.u32 %v5004, 4294901760
          %5006 = vmatmul.mubr.f32.gmra.mxu0 %v5005
          %v5007 = vpop.f32.mrf.mxu0
          %v5008 = vadd.f32 %v4824, %v5007
          %v5009 = vpop.f32.mrf.mxu0
          %5010 = vmatprep.mubr.f32.mxu0 0.0
          %v5011 = vand.u32 %v4294, 4294901760
          %v5012 = vsub.f32 %v4294, %v5011
          %v5013 = vand.u32 %v5012, 4294901760
          %5014 = vmatmul.mubr.f32.gmra.mxu0 %v5013
          %v5015 = vpop.f32.mrf.mxu0
          %v5016 = vadd.f32 %v4831, %v5015
          %v5017 = vpop.f32.mrf.mxu0
          %5018 = vmatprep.mubr.f32.mxu0 0.0
          %v5019 = vand.u32 %v4297, 4294901760
          %v5020 = vsub.f32 %v4297, %v5019
          %v5021 = vand.u32 %v5020, 4294901760
          %5022 = vmatmul.mubr.f32.gmra.mxu0 %v5021
          %v5023 = vpop.f32.mrf.mxu0
          %v5024 = vadd.f32 %v4838, %v5023
          %v5025 = vpop.f32.mrf.mxu0
          %5026 = vmatprep.mubr.f32.mxu0 0.0
          %v5027 = vand.u32 %v4300, 4294901760
          %v5028 = vsub.f32 %v4300, %v5027
          %v5029 = vand.u32 %v5028, 4294901760
          %5030 = vmatmul.mubr.f32.gmra.mxu0 %v5029
          %v5031 = vpop.f32.mrf.mxu0
          %v5032 = vadd.f32 %v4845, %v5031
          %v5033 = vpop.f32.mrf.mxu0
          %5034 = vmatprep.mubr.f32.mxu0 0.0
          %v5035 = vand.u32 %v4303, 4294901760
          %v5036 = vsub.f32 %v4303, %v5035
          %v5037 = vand.u32 %v5036, 4294901760
          %5038 = vmatmul.mubr.f32.gmra.mxu0 %v5037
          %v5039 = vpop.f32.mrf.mxu0
          %v5040 = vadd.f32 %v4852, %v5039
          %v5041 = vpop.f32.mrf.mxu0
          %5042 = vmatprep.mubr.f32.mxu0 0.0
          %v5043 = vand.u32 %v4306, 4294901760
          %v5044 = vsub.f32 %v4306, %v5043
          %v5045 = vand.u32 %v5044, 4294901760
          %5046 = vmatmul.mubr.f32.gmra.mxu0 %v5045
          %v5047 = vpop.f32.mrf.mxu0
          %v5048 = vadd.f32 %v4859, %v5047
          %v5049 = vpop.f32.mrf.mxu0
          %5050 = vmatprep.mubr.f32.mxu0 0.0
          %v5051 = vand.u32 %v4309, 4294901760
          %v5052 = vsub.f32 %v4309, %v5051
          %v5053 = vand.u32 %v5052, 4294901760
          %5054 = vmatmul.mubr.f32.gmra.mxu0 %v5053
          %v5055 = vpop.f32.mrf.mxu0
          %v5056 = vadd.f32 %v4866, %v5055
          %v5057 = vpop.f32.mrf.mxu0
          %5058 = vmatprep.mubr.f32.mxu0 0.0
          %v5059 = vand.u32 %v4312, 4294901760
          %v5060 = vsub.f32 %v4312, %v5059
          %v5061 = vand.u32 %v5060, 4294901760
          %5062 = vmatmul.mubr.f32.gmra.mxu0 %v5061
          %v5063 = vpop.f32.mrf.mxu0
          %v5064 = vadd.f32 %v4873, %v5063
          %v5065 = vpop.f32.mrf.mxu0
          %5066 = vmatprep.mubr.f32.mxu0 0.0
          %v5067 = vand.u32 %v4315, 4294901760
          %v5068 = vsub.f32 %v4315, %v5067
          %v5069 = vand.u32 %v5068, 4294901760
          %5070 = vmatmul.mubr.f32.gmra.mxu0 %v5069
          %v5071 = vpop.f32.mrf.mxu0
          %v5072 = vadd.f32 %v4880, %v5071
          %v5073 = vpop.f32.mrf.mxu0
          %5074 = vmatprep.mubr.f32.mxu0 0.0
          %v5075 = vand.u32 %v4318, 4294901760
          %v5076 = vsub.f32 %v4318, %v5075
          %v5077 = vand.u32 %v5076, 4294901760
          %5078 = vmatmul.mubr.f32.gmra.mxu0 %v5077
          %v5079 = vpop.f32.mrf.mxu0
          %v5080 = vadd.f32 %v4887, %v5079
          %v5081 = vpop.f32.mrf.mxu0
          %5082 = vmatprep.mubr.f32.mxu0 0.0
          %v5083 = vand.u32 %v4321, 4294901760
          %v5084 = vsub.f32 %v4321, %v5083
          %v5085 = vand.u32 %v5084, 4294901760
          %5086 = vmatmul.mubr.f32.gmra.mxu0 %v5085
          %v5087 = vpop.f32.mrf.mxu0
          %v5088 = vadd.f32 %v4894, %v5087
          %v5089 = vpop.f32.mrf.mxu0
          %5090 = vdwg.mxu0
          %5091 = vmatprep.subr.mxu0 0.0
          %5092 = vmatpush1.msra.mxu0 0.0
          %5093 = vmatprep.subr.mxu0 0.0
          %5094 = vmatpush1.msra.mxu0 0.0
          %5095 = vmatprep.subr.mxu0 0.0
          %5096 = vmatpush1.msra.mxu0 0.0
          %5097 = vmatprep.subr.mxu0 0.0
          %5098 = vmatpush1.msra.mxu0 0.0
          %5099 = vmatprep.subr.mxu0 0.0
          %5100 = vmatpush1.msra.mxu0 0.0
          %5101 = vmatprep.subr.mxu0 0.0
          %5102 = vmatpush1.msra.mxu0 0.0
          %5103 = vmatprep.subr.mxu0 0.0
          %5104 = vmatpush1.msra.mxu0 0.0
          %5105 = vmatprep.subr.mxu0 0.0
          %5106 = vmatpush1.msra.mxu0 0.0
          %5107 = vmatprep.subr.mxu0 0.0
          %5108 = vmatpush1.msra.mxu0 0.0
          %5109 = vmatprep.subr.mxu0 0.0
          %5110 = vmatpush1.msra.mxu0 0.0
          %5111 = vmatprep.subr.mxu0 0.0
          %5112 = vmatpush1.msra.mxu0 0.0
          %5113 = vmatprep.subr.mxu0 0.0
          %5114 = vmatpush1.msra.mxu0 0.0
          %5115 = vmatprep.subr.mxu0 0.0
          %5116 = vmatpush1.msra.mxu0 0.0
          %5117 = vmatprep.subr.mxu0 0.0
          %5118 = vmatpush1.msra.mxu0 0.0
          %5119 = vmatprep.subr.mxu0 0.0
          %5120 = vmatpush1.msra.mxu0 0.0
          %5121 = vmatprep.subr.mxu0 0.0
          %v5122 = vand.u32 %v4324, 4294901760
          %v5123 = vsub.f32 %v4324, %v5122
          %v5124 = vand.u32 %v5123, 4294901760
          %5125 = vmatpush1.msra.mxu0 %v5124
          %5126 = vmatprep.subr.mxu0 0.0
          %5127 = vmatpush2.msra.mxu0 0.0
          %5128 = vmatprep.subr.mxu0 0.0
          %5129 = vmatpush2.msra.mxu0 0.0
          %5130 = vmatprep.subr.mxu0 0.0
          %5131 = vmatpush2.msra.mxu0 0.0
          %5132 = vmatprep.subr.mxu0 0.0
          %5133 = vmatpush2.msra.mxu0 0.0
          %5134 = vmatprep.subr.mxu0 0.0
          %5135 = vmatpush2.msra.mxu0 0.0
          %5136 = vmatprep.subr.mxu0 0.0
          %5137 = vmatpush2.msra.mxu0 0.0
          %5138 = vmatprep.subr.mxu0 0.0
          %5139 = vmatpush2.msra.mxu0 0.0
          %5140 = vmatprep.subr.mxu0 0.0
          %5141 = vmatpush2.msra.mxu0 0.0
          %5142 = vmatprep.subr.mxu0 0.0
          %5143 = vmatpush2.msra.mxu0 0.0
          %5144 = vmatprep.subr.mxu0 0.0
          %5145 = vmatpush2.msra.mxu0 0.0
          %5146 = vmatprep.subr.mxu0 0.0
          %5147 = vmatpush2.msra.mxu0 0.0
          %5148 = vmatprep.subr.mxu0 0.0
          %5149 = vmatpush2.msra.mxu0 0.0
          %5150 = vmatprep.subr.mxu0 0.0
          %5151 = vmatpush2.msra.mxu0 0.0
          %5152 = vmatprep.subr.mxu0 0.0
          %5153 = vmatpush2.msra.mxu0 0.0
          %5154 = vmatprep.subr.mxu0 0.0
          %5155 = vmatpush2.msra.mxu0 0.0
          %5156 = vmatprep.subr.mxu0 0.0
          %5157 = vmatpush2.msra.mxu0 0.0
          %5158 = vmatprep.mubr.f32.mxu0 0.0
          %v5159 = vand.u32 %v4276, 4294901760
          %5160 = vmatmul.mubr.f32.gmra.mxu0 %v5159
          %v5161 = vpop.f32.mrf.mxu0
          %v5162 = vadd.f32 %v4968, %v5161
          %v5163 = vpop.f32.mrf.mxu0
          %5164 = vmatprep.mubr.f32.mxu0 0.0
          %v5165 = vand.u32 %v4279, 4294901760
          %5166 = vmatmul.mubr.f32.gmra.mxu0 %v5165
          %v5167 = vpop.f32.mrf.mxu0
          %v5168 = vadd.f32 %v4976, %v5167
          %v5169 = vpop.f32.mrf.mxu0
          %5170 = vmatprep.mubr.f32.mxu0 0.0
          %v5171 = vand.u32 %v4282, 4294901760
          %5172 = vmatmul.mubr.f32.gmra.mxu0 %v5171
          %v5173 = vpop.f32.mrf.mxu0
          %v5174 = vadd.f32 %v4984, %v5173
          %v5175 = vpop.f32.mrf.mxu0
          %5176 = vmatprep.mubr.f32.mxu0 0.0
          %v5177 = vand.u32 %v4285, 4294901760
          %5178 = vmatmul.mubr.f32.gmra.mxu0 %v5177
          %v5179 = vpop.f32.mrf.mxu0
          %v5180 = vadd.f32 %v4992, %v5179
          %v5181 = vpop.f32.mrf.mxu0
          %5182 = vmatprep.mubr.f32.mxu0 0.0
          %v5183 = vand.u32 %v4288, 4294901760
          %5184 = vmatmul.mubr.f32.gmra.mxu0 %v5183
          %v5185 = vpop.f32.mrf.mxu0
          %v5186 = vadd.f32 %v5000, %v5185
          %v5187 = vpop.f32.mrf.mxu0
          %5188 = vmatprep.mubr.f32.mxu0 0.0
          %v5189 = vand.u32 %v4291, 4294901760
          %5190 = vmatmul.mubr.f32.gmra.mxu0 %v5189
          %v5191 = vpop.f32.mrf.mxu0
          %v5192 = vadd.f32 %v5008, %v5191
          %v5193 = vpop.f32.mrf.mxu0
          %5194 = vmatprep.mubr.f32.mxu0 0.0
          %v5195 = vand.u32 %v4294, 4294901760
          %5196 = vmatmul.mubr.f32.gmra.mxu0 %v5195
          %v5197 = vpop.f32.mrf.mxu0
          %v5198 = vadd.f32 %v5016, %v5197
          %v5199 = vpop.f32.mrf.mxu0
          %5200 = vmatprep.mubr.f32.mxu0 0.0
          %v5201 = vand.u32 %v4297, 4294901760
          %5202 = vmatmul.mubr.f32.gmra.mxu0 %v5201
          %v5203 = vpop.f32.mrf.mxu0
          %v5204 = vadd.f32 %v5024, %v5203
          %v5205 = vpop.f32.mrf.mxu0
          %5206 = vmatprep.mubr.f32.mxu0 0.0
          %v5207 = vand.u32 %v4300, 4294901760
          %5208 = vmatmul.mubr.f32.gmra.mxu0 %v5207
          %v5209 = vpop.f32.mrf.mxu0
          %v5210 = vadd.f32 %v5032, %v5209
          %v5211 = vpop.f32.mrf.mxu0
          %5212 = vmatprep.mubr.f32.mxu0 0.0
          %v5213 = vand.u32 %v4303, 4294901760
          %5214 = vmatmul.mubr.f32.gmra.mxu0 %v5213
          %v5215 = vpop.f32.mrf.mxu0
          %v5216 = vadd.f32 %v5040, %v5215
          %v5217 = vpop.f32.mrf.mxu0
          %5218 = vmatprep.mubr.f32.mxu0 0.0
          %v5219 = vand.u32 %v4306, 4294901760
          %5220 = vmatmul.mubr.f32.gmra.mxu0 %v5219
          %v5221 = vpop.f32.mrf.mxu0
          %v5222 = vadd.f32 %v5048, %v5221
          %v5223 = vpop.f32.mrf.mxu0
          %5224 = vmatprep.mubr.f32.mxu0 0.0
          %v5225 = vand.u32 %v4309, 4294901760
          %5226 = vmatmul.mubr.f32.gmra.mxu0 %v5225
          %v5227 = vpop.f32.mrf.mxu0
          %v5228 = vadd.f32 %v5056, %v5227
          %v5229 = vpop.f32.mrf.mxu0
          %5230 = vmatprep.mubr.f32.mxu0 0.0
          %v5231 = vand.u32 %v4312, 4294901760
          %5232 = vmatmul.mubr.f32.gmra.mxu0 %v5231
          %v5233 = vpop.f32.mrf.mxu0
          %v5234 = vadd.f32 %v5064, %v5233
          %v5235 = vpop.f32.mrf.mxu0
          %5236 = vmatprep.mubr.f32.mxu0 0.0
          %v5237 = vand.u32 %v4315, 4294901760
          %5238 = vmatmul.mubr.f32.gmra.mxu0 %v5237
          %v5239 = vpop.f32.mrf.mxu0
          %v5240 = vadd.f32 %v5072, %v5239
          %v5241 = vpop.f32.mrf.mxu0
          %5242 = vmatprep.mubr.f32.mxu0 0.0
          %v5243 = vand.u32 %v4318, 4294901760
          %5244 = vmatmul.mubr.f32.gmra.mxu0 %v5243
          %v5245 = vpop.f32.mrf.mxu0
          %v5246 = vadd.f32 %v5080, %v5245
          %v5247 = vpop.f32.mrf.mxu0
          %5248 = vmatprep.mubr.f32.mxu0 0.0
          %v5249 = vand.u32 %v4321, 4294901760
          %5250 = vmatmul.mubr.f32.gmra.mxu0 %v5249
          %v5251 = vpop.f32.mrf.mxu0
          %v5252 = vadd.f32 %v5088, %v5251
          %v5253 = vpop.f32.mrf.mxu0
          %5254 = vdwg.mxu0
          %5255 = vmatprep.subr.mxu0 0.0
          %5256 = vmatpush1.msra.mxu0 0.0
          %5257 = vmatprep.subr.mxu0 0.0
          %5258 = vmatpush1.msra.mxu0 0.0
          %5259 = vmatprep.subr.mxu0 0.0
          %5260 = vmatpush1.msra.mxu0 0.0
          %5261 = vmatprep.subr.mxu0 0.0
          %5262 = vmatpush1.msra.mxu0 0.0
          %5263 = vmatprep.subr.mxu0 0.0
          %5264 = vmatpush1.msra.mxu0 0.0
          %5265 = vmatprep.subr.mxu0 0.0
          %5266 = vmatpush1.msra.mxu0 0.0
          %5267 = vmatprep.subr.mxu0 0.0
          %5268 = vmatpush1.msra.mxu0 0.0
          %5269 = vmatprep.subr.mxu0 0.0
          %5270 = vmatpush1.msra.mxu0 0.0
          %5271 = vmatprep.subr.mxu0 0.0
          %5272 = vmatpush1.msra.mxu0 0.0
          %5273 = vmatprep.subr.mxu0 0.0
          %5274 = vmatpush1.msra.mxu0 0.0
          %5275 = vmatprep.subr.mxu0 0.0
          %5276 = vmatpush1.msra.mxu0 0.0
          %5277 = vmatprep.subr.mxu0 0.0
          %5278 = vmatpush1.msra.mxu0 0.0
          %5279 = vmatprep.subr.mxu0 0.0
          %5280 = vmatpush1.msra.mxu0 0.0
          %5281 = vmatprep.subr.mxu0 0.0
          %5282 = vmatpush1.msra.mxu0 0.0
          %5283 = vmatprep.subr.mxu0 0.0
          %5284 = vmatpush1.msra.mxu0 0.0
          %5285 = vmatprep.subr.mxu0 0.0
          %v5286 = vand.u32 %v4324, 4294901760
          %5287 = vmatpush1.msra.mxu0 %v5286
          %5288 = vmatprep.subr.mxu0 0.0
          %5289 = vmatpush2.msra.mxu0 0.0
          %5290 = vmatprep.subr.mxu0 0.0
          %5291 = vmatpush2.msra.mxu0 0.0
          %5292 = vmatprep.subr.mxu0 0.0
          %5293 = vmatpush2.msra.mxu0 0.0
          %5294 = vmatprep.subr.mxu0 0.0
          %5295 = vmatpush2.msra.mxu0 0.0
          %5296 = vmatprep.subr.mxu0 0.0
          %5297 = vmatpush2.msra.mxu0 0.0
          %5298 = vmatprep.subr.mxu0 0.0
          %5299 = vmatpush2.msra.mxu0 0.0
          %5300 = vmatprep.subr.mxu0 0.0
          %5301 = vmatpush2.msra.mxu0 0.0
          %5302 = vmatprep.subr.mxu0 0.0
          %5303 = vmatpush2.msra.mxu0 0.0
          %5304 = vmatprep.subr.mxu0 0.0
          %5305 = vmatpush2.msra.mxu0 0.0
          %5306 = vmatprep.subr.mxu0 0.0
          %5307 = vmatpush2.msra.mxu0 0.0
          %5308 = vmatprep.subr.mxu0 0.0
          %5309 = vmatpush2.msra.mxu0 0.0
          %5310 = vmatprep.subr.mxu0 0.0
          %5311 = vmatpush2.msra.mxu0 0.0
          %5312 = vmatprep.subr.mxu0 0.0
          %5313 = vmatpush2.msra.mxu0 0.0
          %5314 = vmatprep.subr.mxu0 0.0
          %5315 = vmatpush2.msra.mxu0 0.0
          %5316 = vmatprep.subr.mxu0 0.0
          %5317 = vmatpush2.msra.mxu0 0.0
          %5318 = vmatprep.subr.mxu0 0.0
          %5319 = vmatpush2.msra.mxu0 0.0
          %5320 = vmatprep.mubr.f32.mxu0 0.0
          %v5321 = vand.u32 %v4276, 4294901760
          %5322 = vmatmul.mubr.f32.gmra.mxu0 %v5321
          %v5323 = vpop.f32.mrf.mxu0
          %v5324 = vadd.f32 %v5162, %v5323
          %v5325 = vpop.f32.mrf.mxu0
          %5326 = vmatprep.mubr.f32.mxu0 0.0
          %v5327 = vand.u32 %v4279, 4294901760
          %5328 = vmatmul.mubr.f32.gmra.mxu0 %v5327
          %v5329 = vpop.f32.mrf.mxu0
          %v5330 = vadd.f32 %v5168, %v5329
          %v5331 = vpop.f32.mrf.mxu0
          %5332 = vmatprep.mubr.f32.mxu0 0.0
          %v5333 = vand.u32 %v4282, 4294901760
          %5334 = vmatmul.mubr.f32.gmra.mxu0 %v5333
          %v5335 = vpop.f32.mrf.mxu0
          %v5336 = vadd.f32 %v5174, %v5335
          %v5337 = vpop.f32.mrf.mxu0
          %5338 = vmatprep.mubr.f32.mxu0 0.0
          %v5339 = vand.u32 %v4285, 4294901760
          %5340 = vmatmul.mubr.f32.gmra.mxu0 %v5339
          %v5341 = vpop.f32.mrf.mxu0
          %v5342 = vadd.f32 %v5180, %v5341
          %v5343 = vpop.f32.mrf.mxu0
          %5344 = vmatprep.mubr.f32.mxu0 0.0
          %v5345 = vand.u32 %v4288, 4294901760
          %5346 = vmatmul.mubr.f32.gmra.mxu0 %v5345
          %v5347 = vpop.f32.mrf.mxu0
          %v5348 = vadd.f32 %v5186, %v5347
          %v5349 = vpop.f32.mrf.mxu0
          %5350 = vmatprep.mubr.f32.mxu0 0.0
          %v5351 = vand.u32 %v4291, 4294901760
          %5352 = vmatmul.mubr.f32.gmra.mxu0 %v5351
          %v5353 = vpop.f32.mrf.mxu0
          %v5354 = vadd.f32 %v5192, %v5353
          %v5355 = vpop.f32.mrf.mxu0
          %5356 = vmatprep.mubr.f32.mxu0 0.0
          %v5357 = vand.u32 %v4294, 4294901760
          %5358 = vmatmul.mubr.f32.gmra.mxu0 %v5357
          %v5359 = vpop.f32.mrf.mxu0
          %v5360 = vadd.f32 %v5198, %v5359
          %v5361 = vpop.f32.mrf.mxu0
          %5362 = vmatprep.mubr.f32.mxu0 0.0
          %v5363 = vand.u32 %v4297, 4294901760
          %5364 = vmatmul.mubr.f32.gmra.mxu0 %v5363
          %v5365 = vpop.f32.mrf.mxu0
          %v5366 = vadd.f32 %v5204, %v5365
          %v5367 = vpop.f32.mrf.mxu0
          %5368 = vmatprep.mubr.f32.mxu0 0.0
          %v5369 = vand.u32 %v4300, 4294901760
          %5370 = vmatmul.mubr.f32.gmra.mxu0 %v5369
          %v5371 = vpop.f32.mrf.mxu0
          %v5372 = vadd.f32 %v5210, %v5371
          %v5373 = vpop.f32.mrf.mxu0
          %5374 = vmatprep.mubr.f32.mxu0 0.0
          %v5375 = vand.u32 %v4303, 4294901760
          %5376 = vmatmul.mubr.f32.gmra.mxu0 %v5375
          %v5377 = vpop.f32.mrf.mxu0
          %v5378 = vadd.f32 %v5216, %v5377
          %v5379 = vpop.f32.mrf.mxu0
          %5380 = vmatprep.mubr.f32.mxu0 0.0
          %v5381 = vand.u32 %v4306, 4294901760
          %5382 = vmatmul.mubr.f32.gmra.mxu0 %v5381
          %v5383 = vpop.f32.mrf.mxu0
          %v5384 = vadd.f32 %v5222, %v5383
          %v5385 = vpop.f32.mrf.mxu0
          %5386 = vmatprep.mubr.f32.mxu0 0.0
          %v5387 = vand.u32 %v4309, 4294901760
          %5388 = vmatmul.mubr.f32.gmra.mxu0 %v5387
          %v5389 = vpop.f32.mrf.mxu0
          %v5390 = vadd.f32 %v5228, %v5389
          %v5391 = vpop.f32.mrf.mxu0
          %5392 = vmatprep.mubr.f32.mxu0 0.0
          %v5393 = vand.u32 %v4312, 4294901760
          %5394 = vmatmul.mubr.f32.gmra.mxu0 %v5393
          %v5395 = vpop.f32.mrf.mxu0
          %v5396 = vadd.f32 %v5234, %v5395
          %v5397 = vpop.f32.mrf.mxu0
          %5398 = vmatprep.mubr.f32.mxu0 0.0
          %v5399 = vand.u32 %v4315, 4294901760
          %5400 = vmatmul.mubr.f32.gmra.mxu0 %v5399
          %v5401 = vpop.f32.mrf.mxu0
          %v5402 = vadd.f32 %v5240, %v5401
          %v5403 = vpop.f32.mrf.mxu0
          %5404 = vmatprep.mubr.f32.mxu0 0.0
          %v5405 = vand.u32 %v4318, 4294901760
          %5406 = vmatmul.mubr.f32.gmra.mxu0 %v5405
          %v5407 = vpop.f32.mrf.mxu0
          %v5408 = vadd.f32 %v5246, %v5407
          %v5409 = vpop.f32.mrf.mxu0
          %5410 = vmatprep.mubr.f32.mxu0 0.0
          %v5411 = vand.u32 %v4321, 4294901760
          %5412 = vmatmul.mubr.f32.gmra.mxu0 %v5411
          %v5413 = vpop.f32.mrf.mxu0
          %v5414 = vadd.f32 %v5252, %v5413
          %v5415 = vpop.f32.mrf.mxu0
          %5416 = vdwg.mxu0
          %v5417 = vld [vmem:[#allocation2] sm:$0xff]
          %v5418 = vld [vmem:[#allocation2 + $0x8] sm:$0xff]
          %v5419 = vld [vmem:[#allocation2 + $0x10] sm:$0xff]
          %v5420 = vld [vmem:[#allocation2 + $0x18] sm:$0xff]
          %v5421 = vld [vmem:[#allocation2 + $0x20] sm:$0xff]
          %v5422 = vld [vmem:[#allocation2 + $0x28] sm:$0xff]
          %v5423 = vld [vmem:[#allocation2 + $0x30] sm:$0xff]
          %v5424 = vld [vmem:[#allocation2 + $0x38] sm:$0xff]
          %v5425 = vld [vmem:[#allocation2 + $0x40] sm:$0xff]
          %v5426 = vld [vmem:[#allocation2 + $0x48] sm:$0xff]
          %v5427 = vld [vmem:[#allocation2 + $0x50] sm:$0xff]
          %v5428 = vld [vmem:[#allocation2 + $0x58] sm:$0xff]
          %v5429 = vld [vmem:[#allocation2 + $0x60] sm:$0xff]
          %v5430 = vld [vmem:[#allocation2 + $0x68] sm:$0xff]
          %v5431 = vld [vmem:[#allocation2 + $0x70] sm:$0xff]
          %v5432 = vld [vmem:[#allocation2 + $0x78] sm:$0xff]
          %v5433 = vmul.f32 %v4150, 0.010416667
          %v5434 = vmul.f32 %v4156, 0.010416667
          %v5435 = vmul.f32 %v4162, 0.010416667
          %v5436 = vmul.f32 %v4168, 0.010416667
          %v5437 = vmul.f32 %v4174, 0.010416667
          %v5438 = vmul.f32 %v4180, 0.010416667
          %v5439 = vmul.f32 %v4186, 0.010416667
          %v5440 = vmul.f32 %v4192, 0.010416667
          %v5441 = vmul.f32 %v4198, 0.010416667
          %v5442 = vmul.f32 %v4204, 0.010416667
          %v5443 = vmul.f32 %v4210, 0.010416667
          %v5444 = vmul.f32 %v4216, 0.010416667
          %v5445 = vmul.f32 %v4222, 0.010416667
          %v5446 = vmul.f32 %v4228, 0.010416667
          %v5447 = vmul.f32 %v4234, 0.010416667
          %v5448 = vmul.f32 %v4240, 0.010416667
          %v5449 = vsub.f32 %v5417, %v5433
          %v5450 = vsub.f32 %v5418, %v5434
          %v5451 = vsub.f32 %v5419, %v5435
          %v5452 = vsub.f32 %v5420, %v5436
          %v5453 = vsub.f32 %v5421, %v5437
          %v5454 = vsub.f32 %v5422, %v5438
          %v5455 = vsub.f32 %v5423, %v5439
          %v5456 = vsub.f32 %v5424, %v5440
          %v5457 = vsub.f32 %v5425, %v5441
          %v5458 = vsub.f32 %v5426, %v5442
          %v5459 = vsub.f32 %v5427, %v5443
          %v5460 = vsub.f32 %v5428, %v5444
          %v5461 = vsub.f32 %v5429, %v5445
          %v5462 = vsub.f32 %v5430, %v5446
          %v5463 = vsub.f32 %v5431, %v5447
          %v5464 = vsub.f32 %v5432, %v5448
          %v5465 = vmul.f32 %v5449, 0.010526316
          %v5466 = vmul.f32 %v5450, 0.010526316
          %v5467 = vmul.f32 %v5451, 0.010526316
          %v5468 = vmul.f32 %v5452, 0.010526316
          %v5469 = vmul.f32 %v5453, 0.010526316
          %v5470 = vmul.f32 %v5454, 0.010526316
          %v5471 = vmul.f32 %v5455, 0.010526316
          %v5472 = vmul.f32 %v5456, 0.010526316
          %v5473 = vmul.f32 %v5457, 0.010526316
          %v5474 = vmul.f32 %v5458, 0.010526316
          %v5475 = vmul.f32 %v5459, 0.010526316
          %v5476 = vmul.f32 %v5460, 0.010526316
          %v5477 = vmul.f32 %v5461, 0.010526316
          %v5478 = vmul.f32 %v5462, 0.010526316
          %v5479 = vmul.f32 %v5463, 0.010526316
          %v5480 = vmul.f32 %v5464, 0.010526316
          %v5481 = vld [vmem:[#allocation3] sm:$0xff]
          %v5482 = vld [vmem:[#allocation3 + $0x8] sm:$0xff]
          %v5483 = vld [vmem:[#allocation3 + $0x10] sm:$0xff]
          %v5484 = vld [vmem:[#allocation3 + $0x18] sm:$0xff]
          %v5485 = vld [vmem:[#allocation3 + $0x20] sm:$0xff]
          %v5486 = vld [vmem:[#allocation3 + $0x28] sm:$0xff]
          %v5487 = vld [vmem:[#allocation3 + $0x30] sm:$0xff]
          %v5488 = vld [vmem:[#allocation3 + $0x38] sm:$0xff]
          %v5489 = vld [vmem:[#allocation3 + $0x40] sm:$0xff]
          %v5490 = vld [vmem:[#allocation3 + $0x48] sm:$0xff]
          %v5491 = vld [vmem:[#allocation3 + $0x50] sm:$0xff]
          %v5492 = vld [vmem:[#allocation3 + $0x58] sm:$0xff]
          %v5493 = vld [vmem:[#allocation3 + $0x60] sm:$0xff]
          %v5494 = vld [vmem:[#allocation3 + $0x68] sm:$0xff]
          %v5495 = vld [vmem:[#allocation3 + $0x70] sm:$0xff]
          %v5496 = vld [vmem:[#allocation3 + $0x78] sm:$0xff]
          %v5497 = vmul.f32 %v5324, 0.010416667
          %v5498 = vmul.f32 %v5330, 0.010416667
          %v5499 = vmul.f32 %v5336, 0.010416667
          %v5500 = vmul.f32 %v5342, 0.010416667
          %v5501 = vmul.f32 %v5348, 0.010416667
          %v5502 = vmul.f32 %v5354, 0.010416667
          %v5503 = vmul.f32 %v5360, 0.010416667
          %v5504 = vmul.f32 %v5366, 0.010416667
          %v5505 = vmul.f32 %v5372, 0.010416667
          %v5506 = vmul.f32 %v5378, 0.010416667
          %v5507 = vmul.f32 %v5384, 0.010416667
          %v5508 = vmul.f32 %v5390, 0.010416667
          %v5509 = vmul.f32 %v5396, 0.010416667
          %v5510 = vmul.f32 %v5402, 0.010416667
          %v5511 = vmul.f32 %v5408, 0.010416667
          %v5512 = vmul.f32 %v5414, 0.010416667
          %v5513 = vsub.f32 %v5481, %v5497
          %v5514 = vsub.f32 %v5482, %v5498
          %v5515 = vsub.f32 %v5483, %v5499
          %v5516 = vsub.f32 %v5484, %v5500
          %v5517 = vsub.f32 %v5485, %v5501
          %v5518 = vsub.f32 %v5486, %v5502
          %v5519 = vsub.f32 %v5487, %v5503
          %v5520 = vsub.f32 %v5488, %v5504
          %v5521 = vsub.f32 %v5489, %v5505
          %v5522 = vsub.f32 %v5490, %v5506
          %v5523 = vsub.f32 %v5491, %v5507
          %v5524 = vsub.f32 %v5492, %v5508
          %v5525 = vsub.f32 %v5493, %v5509
          %v5526 = vsub.f32 %v5494, %v5510
          %v5527 = vsub.f32 %v5495, %v5511
          %v5528 = vsub.f32 %v5496, %v5512
          %v5529 = vmul.f32 %v5513, 0.010526316
          %v5530 = vmul.f32 %v5514, 0.010526316
          %v5531 = vmul.f32 %v5515, 0.010526316
          %v5532 = vmul.f32 %v5516, 0.010526316
          %v5533 = vmul.f32 %v5517, 0.010526316
          %v5534 = vmul.f32 %v5518, 0.010526316
          %v5535 = vmul.f32 %v5519, 0.010526316
          %v5536 = vmul.f32 %v5520, 0.010526316
          %v5537 = vmul.f32 %v5521, 0.010526316
          %v5538 = vmul.f32 %v5522, 0.010526316
          %v5539 = vmul.f32 %v5523, 0.010526316
          %v5540 = vmul.f32 %v5524, 0.010526316
          %v5541 = vmul.f32 %v5525, 0.010526316
          %v5542 = vmul.f32 %v5526, 0.010526316
          %v5543 = vmul.f32 %v5527, 0.010526316
          %v5544 = vmul.f32 %v5528, 0.010526316
          %p5545 = scmp.eq.s32.totalorder %s379, %s380
          %s5546 = scalar_select %p5545, 1.0, 2.0
          %v5547 = vld [vmem:[#allocation9] sm:$0x1]
          %v5548 = vmul.f32 %v5465, %v5465
          %v5549 = vmul.f32 %v5466, %v5466
          %v5550 = vmul.f32 %v5467, %v5467
          %v5551 = vmul.f32 %v5468, %v5468
          %v5552 = vmul.f32 %v5469, %v5469
          %v5553 = vmul.f32 %v5470, %v5470
          %v5554 = vmul.f32 %v5471, %v5471
          %v5555 = vmul.f32 %v5472, %v5472
          %v5556 = vmul.f32 %v5473, %v5473
          %v5557 = vmul.f32 %v5474, %v5474
          %v5558 = vmul.f32 %v5475, %v5475
          %v5559 = vmul.f32 %v5476, %v5476
          %v5560 = vmul.f32 %v5477, %v5477
          %v5561 = vmul.f32 %v5478, %v5478
          %v5562 = vmul.f32 %v5479, %v5479
          %v5563 = vmul.f32 %v5480, %v5480
          %v5564 = vadd.f32 %v5548, %v5549
          %v5565 = vadd.f32 %v5564, %v5550
          %v5566 = vadd.f32 %v5565, %v5551
          %v5567 = vadd.f32 %v5566, %v5552
          %v5568 = vadd.f32 %v5567, %v5553
          %v5569 = vadd.f32 %v5568, %v5554
          %v5570 = vadd.f32 %v5569, %v5555
          %v5571 = vadd.f32 %v5570, %v5556
          %v5572 = vadd.f32 %v5571, %v5557
          %v5573 = vadd.f32 %v5572, %v5558
          %v5574 = vadd.f32 %v5573, %v5559
          %v5575 = vadd.f32 %v5574, %v5560
          %v5576 = vadd.f32 %v5575, %v5561
          %v5577 = vadd.f32 %v5576, %v5562
          %v5578 = vadd.f32 %v5577, %v5563
          %5579 = vadd.xlane.f32.xlu0 %v5578
          %v5580 = vpop.xlane.xlu0 %5579
          %v5581 = vrot.slane %v5580, 4
          %v5582 = vadd.f32 %v5580, %v5581
          %v5583 = vrot.slane %v5582, 2
          %v5584 = vadd.f32 %v5582, %v5583
          %v5585 = vrot.slane %v5584, 1
          %v5586 = vadd.f32 %v5584, %v5585
          %s5587 = vtos %v5586
          %v5588 = vstv %s5587
          %v5589 = vmul.f32 %v5529, %v5529
          %v5590 = vmul.f32 %v5530, %v5530
          %v5591 = vmul.f32 %v5531, %v5531
          %v5592 = vmul.f32 %v5532, %v5532
          %v5593 = vmul.f32 %v5533, %v5533
          %v5594 = vmul.f32 %v5534, %v5534
          %v5595 = vmul.f32 %v5535, %v5535
          %v5596 = vmul.f32 %v5536, %v5536
          %v5597 = vmul.f32 %v5537, %v5537
          %v5598 = vmul.f32 %v5538, %v5538
          %v5599 = vmul.f32 %v5539, %v5539
          %v5600 = vmul.f32 %v5540, %v5540
          %v5601 = vmul.f32 %v5541, %v5541
          %v5602 = vmul.f32 %v5542, %v5542
          %v5603 = vmul.f32 %v5543, %v5543
          %v5604 = vmul.f32 %v5544, %v5544
          %v5605 = vadd.f32 %v5589, %v5590
          %v5606 = vadd.f32 %v5605, %v5591
          %v5607 = vadd.f32 %v5606, %v5592
          %v5608 = vadd.f32 %v5607, %v5593
          %v5609 = vadd.f32 %v5608, %v5594
          %v5610 = vadd.f32 %v5609, %v5595
          %v5611 = vadd.f32 %v5610, %v5596
          %v5612 = vadd.f32 %v5611, %v5597
          %v5613 = vadd.f32 %v5612, %v5598
          %v5614 = vadd.f32 %v5613, %v5599
          %v5615 = vadd.f32 %v5614, %v5600
          %v5616 = vadd.f32 %v5615, %v5601
          %v5617 = vadd.f32 %v5616, %v5602
          %v5618 = vadd.f32 %v5617, %v5603
          %v5619 = vadd.f32 %v5618, %v5604
          %5620 = vadd.xlane.f32.xlu0 %v5619
          %v5621 = vpop.xlane.xlu0 %5620
          %v5622 = vrot.slane %v5621, 4
          %v5623 = vadd.f32 %v5621, %v5622
          %v5624 = vrot.slane %v5623, 2
          %v5625 = vadd.f32 %v5623, %v5624
          %v5626 = vrot.slane %v5625, 1
          %v5627 = vadd.f32 %v5625, %v5626
          %s5628 = vtos %v5627
          %v5629 = vstv %s5628
          %v5630 = vadd.f32 %v5588, %v5629
          %v5631 = vstv %s5546
          %v5632 = vmul.f32 %v5631, %v5630
          %v5633 = vadd.f32 %v5547, %v5632
          %vm5634 = vcmask 0
          %5635 = vst.msk [vmem:[#allocation9] sm:$0x1] %vm5634, %v5633
        $region68: #{tpu_custom_call.1} parent=35 // pred_fallthru
          _
        %p5636 = scmp.eq.s32.totalorder %s39, 2
        %p5637 = pnand %p5636, %p3055
        %p5638 = pneg %p5637
        // Predicated region
        $region69: #{tpu_custom_call.1} parent=35 // pred_check
          _
        $region70: #{tpu_custom_call.1} parent=35 // pred_check_branch
          %5640 = sbr.rel (%p5637) target = $region72
        $region71: #{tpu_custom_call.1} parent=35 // pred_region
          %v5641 = vld [vmem:[#allocation6] sm:$0x1]
          %v5642 = vld [vmem:[#allocation6 + $0x1] sm:$0x1]
          %v5643 = vld [vmem:[#allocation4] sm:$0x1]
          %v5644 = vld [vmem:[#allocation4 + $0x1] sm:$0x1]
          %v5645 = vmul.f32 %v5643, %v5643
          %v5646 = vmul.f32 %v5644, %v5644
          %v5647 = vmul.f32 %v5645, 0.010416667
          %v5648 = vmul.f32 %v5646, 0.010416667
          %v5649 = vsub.f32 %v5641, %v5647
          %v5650 = vsub.f32 %v5642, %v5648
          %v5651 = vmul.f32 %v5649, 0.010526316
          %v5652 = vmul.f32 %v5650, 0.010526316
          %v5653 = vld [vmem:[#allocation7] sm:$0x1]
          %v5654 = vld [vmem:[#allocation7 + $0x1] sm:$0x1]
          %v5655 = vld [vmem:[#allocation5] sm:$0x1]
          %v5656 = vld [vmem:[#allocation5 + $0x1] sm:$0x1]
          %v5657 = vmul.f32 %v5655, %v5655
          %v5658 = vmul.f32 %v5656, %v5656
          %v5659 = vmul.f32 %v5657, 0.010416667
          %v5660 = vmul.f32 %v5658, 0.010416667
          %v5661 = vsub.f32 %v5653, %v5659
          %v5662 = vsub.f32 %v5654, %v5660
          %v5663 = vmul.f32 %v5661, 0.010526316
          %v5664 = vmul.f32 %v5662, 0.010526316
          %v5665 = vadd.f32 %v5651, 0.0001
          %v5666 = vadd.f32 %v5652, 0.0001
          %v5667 = vrsqrt.pop %v5665
          %v5668 = vmul.f32 %v5665, %v5667
          %vm5669 = vcmp.eq.f32.partialorder %v5665, inf
          %v5670 = vsel %vm5669, %v5665, %v5668
          %vm5671 = vcmp.eq.f32.partialorder %v5665, 0.0
          %v5672 = vand.u32 %v5665, 2147483648
          %v5673 = vsel %vm5671, %v5672, %v5670
          %v5674 = vrsqrt.pop %v5666
          %v5675 = vmul.f32 %v5666, %v5674
          %vm5676 = vcmp.eq.f32.partialorder %v5666, inf
          %v5677 = vsel %vm5676, %v5666, %v5675
          %vm5678 = vcmp.eq.f32.partialorder %v5666, 0.0
          %v5679 = vand.u32 %v5666, 2147483648
          %v5680 = vsel %vm5678, %v5679, %v5677
          %v5681 = vadd.f32 %v5663, 0.0001
          %v5682 = vadd.f32 %v5664, 0.0001
          %v5683 = vrsqrt.pop %v5681
          %v5684 = vmul.f32 %v5681, %v5683
          %vm5685 = vcmp.eq.f32.partialorder %v5681, inf
          %v5686 = vsel %vm5685, %v5681, %v5684
          %vm5687 = vcmp.eq.f32.partialorder %v5681, 0.0
          %v5688 = vand.u32 %v5681, 2147483648
          %v5689 = vsel %vm5687, %v5688, %v5686
          %v5690 = vrsqrt.pop %v5682
          %v5691 = vmul.f32 %v5682, %v5690
          %vm5692 = vcmp.eq.f32.partialorder %v5682, inf
          %v5693 = vsel %vm5692, %v5682, %v5691
          %vm5694 = vcmp.eq.f32.partialorder %v5682, 0.0
          %v5695 = vand.u32 %v5682, 2147483648
          %v5696 = vsel %vm5694, %v5695, %v5693
          %v5697 = vsub.f32 1.0, %v5673
          %v5698 = vsub.f32 1.0, %v5680
          %v5699 = vmax.f32 %v5697, 0.0
          %v5700 = vmax.f32 %v5698, 0.0
          %vm5701 = vcmask 1040384
          %v5702 = vsel %vm5701, %v5699, 0.0
          %v5703 = vsel %vm5701, %v5700, 0.0
          %v5704 = vadd.f32 %v5702, %v5703
          %5705 = vadd.xlane.f32.xlu0 %v5704
          %v5706 = vpop.xlane.xlu0 %5705
          %v5707 = vrot.slane %v5706, 4
          %v5708 = vadd.f32 %v5706, %v5707
          %v5709 = vrot.slane %v5708, 2
          %v5710 = vadd.f32 %v5708, %v5709
          %v5711 = vrot.slane %v5710, 1
          %v5712 = vadd.f32 %v5710, %v5711
          %s5713 = vtos %v5712
          %v5714 = vsub.f32 1.0, %v5689
          %v5715 = vsub.f32 1.0, %v5696
          %v5716 = vmax.f32 %v5714, 0.0
          %v5717 = vmax.f32 %v5715, 0.0
          %v5718 = vsel %vm5701, %v5716, 0.0
          %v5719 = vsel %vm5701, %v5717, 0.0
          %v5720 = vadd.f32 %v5718, %v5719
          %5721 = vadd.xlane.f32.xlu0 %v5720
          %v5722 = vpop.xlane.xlu0 %5721
          %v5723 = vrot.slane %v5722, 4
          %v5724 = vadd.f32 %v5722, %v5723
          %v5725 = vrot.slane %v5724, 2
          %v5726 = vadd.f32 %v5724, %v5725
          %v5727 = vrot.slane %v5726, 1
          %v5728 = vadd.f32 %v5726, %v5727
          %s5729 = vtos %v5728
          %s5730 = sadd.f32 %s5713, %s5729
          %v5731 = vrcp.pop 512.0
          %s5732 = vtos %v5731
          %s5733 = smul.f32 %s5730, %s5732
          %v5734 = vmul.f32 %v5651, %v5651
          %v5735 = vmul.f32 %v5652, %v5652
          %v5736 = vsel %vm5701, %v5734, 0.0
          %v5737 = vsel %vm5701, %v5735, 0.0
          %v5738 = vadd.f32 %v5736, %v5737
          %5739 = vadd.xlane.f32.xlu0 %v5738
          %v5740 = vpop.xlane.xlu0 %5739
          %v5741 = vrot.slane %v5740, 4
          %v5742 = vadd.f32 %v5740, %v5741
          %v5743 = vrot.slane %v5742, 2
          %v5744 = vadd.f32 %v5742, %v5743
          %v5745 = vrot.slane %v5744, 1
          %v5746 = vadd.f32 %v5744, %v5745
          %s5747 = vtos %v5746
          %v5748 = vmul.f32 %v5663, %v5663
          %v5749 = vmul.f32 %v5664, %v5664
          %v5750 = vsel %vm5701, %v5748, 0.0
          %v5751 = vsel %vm5701, %v5749, 0.0
          %v5752 = vadd.f32 %v5750, %v5751
          %5753 = vadd.xlane.f32.xlu0 %v5752
          %v5754 = vpop.xlane.xlu0 %5753
          %v5755 = vrot.slane %v5754, 4
          %v5756 = vadd.f32 %v5754, %v5755
          %v5757 = vrot.slane %v5756, 2
          %v5758 = vadd.f32 %v5756, %v5757
          %v5759 = vrot.slane %v5758, 1
          %v5760 = vadd.f32 %v5758, %v5759
          %s5761 = vtos %v5760
          %s5762 = sadd.f32 %s5747, %s5761
          %v5763 = vld [vmem:[#allocation9] sm:$0x1]
          %s5764 = vtos %v5763
          %s5765 = ssub.f32 %s5764, %s5762
          %v5766 = vrcp.pop 256.0
          %s5767 = vtos %v5766
          %s5768 = smul.f32 %s5765, %s5767
          %v5769 = vld [vmem:[#allocation8] sm:$0x1]
          %s5770 = vtos %v5769
          %v5771 = vrcp.pop 24576.0
          %s5772 = vtos %v5771
          %s5773 = smul.f32 %s5770, %s5772
          %s5774 = smul.f32 %s5773, 25.0
          %s5775 = smul.f32 %s5733, 25.0
          %s5776 = sadd.f32 %s5774, %s5775
          %s5777 = sadd.f32 %s5776, %s5768
          %s5778 = scalar_lea.smem [#allocation21], 0
          %5779 = sst [smem:[%s5778]] %s5777
        $region72: #{tpu_custom_call.1} parent=35 // pred_fallthru
          _
        // Predicated region
        $region73: #{tpu_custom_call.1} parent=35 // pred_check
          %p5780 = pneg %p180
        $region74: #{tpu_custom_call.1} parent=35 // pred_check_branch
          %5782 = sbr.rel (%p5780) target = $region76
        $region75: #{tpu_custom_call.1} parent=35 // pred_region
          %s5784 = ssub.s32 16, 16
          %5785 = vsyncadd [#allocation15], %s5784
          %5788 = dma.smem_to_hbm [#allocation21], 16, %s6, [#allocation15]
        $region76: #{tpu_custom_call.1} parent=35 // pred_fallthru
          _
        // Predicated region
        $region77: #{tpu_custom_call.1} parent=35 // pred_check
          %p5789 = pneg %p180
        $region78: #{tpu_custom_call.1} parent=35 // pred_check_branch
          %5791 = sbr.rel (%p5789) target = $region80
        $region79: #{tpu_custom_call.1} parent=35 // pred_region
          %5792 = dma.done [#allocation15], 16
        $region80: #{tpu_custom_call.1} parent=35 // pred_fallthru
          _
        %5793 = sfence
      $region36: #{tpu_custom_call.1} parent=5 // pred_fallthru
        _
      %p5794 = scmp.le.s32.totalorder 2, %s30
      // Predicated region
      $region81: #{tpu_custom_call.1} parent=5 // pred_check
        %p5795 = pneg %p5794
      $region82: #{tpu_custom_call.1} parent=5 // pred_check_branch
        %5797 = sbr.rel (%p5795) target = $region84
      $region83: #{tpu_custom_call.1} parent=5 // pred_region
        %s5798 = ssub.s32 %s30, 2
      $region84: #{tpu_custom_call.1} parent=5 // pred_fallthru
        _
    $region6: #{tpu_custom_call.1} parent=1 // loop_footer
      %s34 = sadd.s32 1, %s30
    $region7: #{tpu_custom_call.1} parent=1 // loop_footer_branch
      %29 = sbr.rel target = $region3
    $region8: #{tpu_custom_call.1} parent=1 // loop_exit
      _
    %5799 = vsyncpa [#allocation14], 1
    %s5800 = scalar_lea.sflag [#allocation14], 1
    %5801 = vsyncpa %s5800, 1
    %5802 = vsyncpa [#allocation17], 1
    %s5803 = scalar_lea.sflag [#allocation17], 1
    %5804 = vsyncpa %s5803, 1
    %5805 = vsyncpa [#allocation20], 1
    %s5806 = scalar_lea.sflag [#allocation20], 1
    %5807 = vsyncpa %s5806, 1
    %5808 = vsyncpa [#allocation15], 1
    %s5809 = scalar_lea.sflag [#allocation15], 1
    %5810 = vsyncpa %s5809, 1

</llo_original>
